<compile_context>
chip_gen: v7x
topology: tpu7x:2x2x1
jax: 0.10.0
libtpu: 0.0.40
codegen_flags: <defaults>
</compile_context>

<pallas_src>
import functools

import jax
import jax.numpy as jnp
from jax.experimental import pallas as pl
from jax.experimental.pallas import tpu as pltpu

EPS = 1e-6


# ---------------------------------------------------------------------------
# Fused decoder kernel (one grid step == one batch element, whole layer stack)
# ---------------------------------------------------------------------------
def _layernorm(x, gamma, beta):
    """LayerNorm over last dim (biased variance, eps=1e-6), f32 math."""
    mean = jnp.mean(x, axis=-1, keepdims=True)
    var = jnp.mean((x - mean) ** 2, axis=-1, keepdims=True)
    return (x - mean) * jax.lax.rsqrt(var + EPS) * gamma + beta


def decoder_kernel(vis_ref, kg_ref,
                   dln_g_ref, dln_b_ref,
                   s_wq_ref, s_wk_ref, s_wv_ref, s_wo_ref, s_g_ref, s_b_ref,
                   c_wq_ref, c_wk_ref, c_wv_ref, c_wo_ref, c_g_ref, c_b_ref,
                   f_w1_ref, f_b1_ref, f_w2_ref, f_b2_ref, f_g_ref, f_b_ref,
                   o_ref,
                   *, n_layers, n_head, d_k, d_v):
    x = vis_ref[0].astype(jnp.float32)                       # (Lq, D)
    kg = kg_ref[0].astype(jnp.float32)                       # (Lk, D)
    D = x.shape[-1]

    # Decoder-level LayerNorm on the visual features.
    x = _layernorm(x, dln_g_ref[...], dln_b_ref[...])

    scale = 1.0 / (d_k ** 0.5)

    def mha(q_in, kv_in, wq, wk, wv, wo, gamma, beta):
        # q_in: (Lq, D) f32 ; kv_in: (Lk, D) f32
        # wq/wk: (H, D, d_k) bf16 ; wv: (H, D, d_v) bf16 ; wo: (H, d_v, D) bf16
        Lq = q_in.shape[0]
        Lk = kv_in.shape[0]
        qx = jnp.broadcast_to(q_in.astype(jnp.bfloat16)[None], (n_head, Lq, D))
        kx = jnp.broadcast_to(kv_in.astype(jnp.bfloat16)[None], (n_head, Lk, D))

        # Per-head projections as batched matmuls (bf16 operands, f32 accumulation).
        q = jnp.einsum("hld,hde->hle", qx, wq,
                       preferred_element_type=jnp.float32) * scale     # (H, Lq, dk)
        k = jnp.einsum("hld,hde->hle", kx, wk,
                       preferred_element_type=jnp.float32)             # (H, Lk, dk)
        v = jnp.einsum("hld,hde->hle", kx, wv,
                       preferred_element_type=jnp.float32)             # (H, Lk, dv)

        # Packed-head attention (stable softmax in f32).
        s = jnp.einsum("hqd,hkd->hqk", q.astype(jnp.bfloat16), k.astype(jnp.bfloat16),
                       preferred_element_type=jnp.float32)             # (H, Lq, Lk)
        s = s - jnp.max(s, axis=-1, keepdims=True)
        p = jnp.exp(s)
        p = p * pl.reciprocal(jnp.sum(p, axis=-1, keepdims=True), approx=True)
        ctx = jnp.einsum("hqk,hkd->hqd", p.astype(jnp.bfloat16), v.astype(jnp.bfloat16),
                         preferred_element_type=jnp.float32)           # (H, Lq, dv)

        # Output projection: batched per-head matmul + sum over heads == concat @ W_o.
        out_h = jnp.einsum("hqd,hdm->hqm", ctx.astype(jnp.bfloat16), wo,
                           preferred_element_type=jnp.float32)         # (H, Lq, D)
        out = jnp.sum(out_h, axis=0)                                   # (Lq, D)
        return _layernorm(out + q_in, gamma, beta)

    def ffn(x_in, w1, b1, w2, b2, gamma, beta):
        h = jnp.dot(x_in.astype(jnp.bfloat16), w1,
                    preferred_element_type=jnp.float32) + b1
        h = jnp.maximum(h, 0.0)
        y = jnp.dot(h.astype(jnp.bfloat16), w2,
                    preferred_element_type=jnp.float32) + b2
        return _layernorm(y + x_in, gamma, beta)

    # Static layer loop — weight refs indexed with compile-time constants.
    for l in range(n_layers):
        x = mha(x, x, s_wq_ref[l], s_wk_ref[l], s_wv_ref[l], s_wo_ref[l],
                s_g_ref[l], s_b_ref[l])
        x = mha(x, kg, c_wq_ref[l], c_wk_ref[l], c_wv_ref[l], c_wo_ref[l],
                c_g_ref[l], c_b_ref[l])
        x = ffn(x, f_w1_ref[l], f_b1_ref[l], f_w2_ref[l], f_b2_ref[l],
                f_g_ref[l], f_b_ref[l])

    o_ref[0] = x.astype(o_ref.dtype)


# ---------------------------------------------------------------------------
# pallas_call wrapper
# ---------------------------------------------------------------------------
_PARAM_ORDER = ("dec_ln_g", "dec_ln_b",
                "slf_wq", "slf_wk", "slf_wv", "slf_wo", "slf_g", "slf_b",
                "enc_wq", "enc_wk", "enc_wv", "enc_wo", "enc_g", "enc_b",
                "ffn_w1", "ffn_b1", "ffn_w2", "ffn_b2", "ffn_g", "ffn_b")


def _full_spec(shape):
    ndim = len(shape)
    return pl.BlockSpec(shape, lambda b, _n=ndim: (0,) * _n)


def decoder_forward(params, vis_feat, kg_feat, *, n_layers, n_head, d_k, d_v):
    B, Lq, D = vis_feat.shape
    _, Lk, _ = kg_feat.shape
    weights = [params[name] for name in _PARAM_ORDER]
    kern = functools.partial(decoder_kernel, n_layers=n_layers, n_head=n_head,
                             d_k=d_k, d_v=d_v)
    out = pl.pallas_call(
        kern,
        out_shape=jax.ShapeDtypeStruct((B, Lq, D), vis_feat.dtype),
        grid=(B,),
        in_specs=[pl.BlockSpec((1, Lq, D), lambda b: (b, 0, 0)),
                  pl.BlockSpec((1, Lk, D), lambda b: (b, 0, 0))]
                 + [_full_spec(w.shape) for w in weights],
        out_specs=pl.BlockSpec((1, Lq, D), lambda b: (b, 0, 0)),
        compiler_params=pltpu.CompilerParams(dimension_semantics=("parallel",)),
    )(vis_feat, kg_feat, *weights)
    return (out,)


# ---------------------------------------------------------------------------
# Parameter init (deterministic, synthetic)
# ---------------------------------------------------------------------------
def init_params(key, n_layers, n_head, d_k, d_v, d_model, d_inner,
                w_dtype=jnp.bfloat16):
    """Matmul weights stored in bf16 (halves weight DMA); LN params / biases in f32."""
    N = n_layers
    ks = jax.random.split(key, 10)

    def dense(k, shape, scale=0.05):
        return (scale * jax.random.normal(k, shape, dtype=jnp.float32)).astype(w_dtype)

    return {
        "dec_ln_g": jnp.ones((1, d_model), jnp.float32),
        "dec_ln_b": jnp.zeros((1, d_model), jnp.float32),
        # self-attention (weights stacked over layers and heads)
        "slf_wq": dense(ks[0], (N, n_head, d_model, d_k)),
        "slf_wk": dense(ks[1], (N, n_head, d_model, d_k)),
        "slf_wv": dense(ks[2], (N, n_head, d_model, d_v)),
        "slf_wo": dense(ks[3], (N, n_head, d_v, d_model)),
        "slf_g": jnp.ones((N, 1, d_model), jnp.float32),
        "slf_b": jnp.zeros((N, 1, d_model), jnp.float32),
        # cross-attention
        "enc_wq": dense(ks[4], (N, n_head, d_model, d_k)),
        "enc_wk": dense(ks[5], (N, n_head, d_model, d_k)),
        "enc_wv": dense(ks[6], (N, n_head, d_model, d_v)),
        "enc_wo": dense(ks[7], (N, n_head, d_v, d_model)),
        "enc_g": jnp.ones((N, 1, d_model), jnp.float32),
        "enc_b": jnp.zeros((N, 1, d_model), jnp.float32),
        # position-wise FFN
        "ffn_w1": dense(ks[8], (N, d_model, d_inner)),
        "ffn_b1": jnp.zeros((N, 1, d_inner), jnp.float32),
        "ffn_w2": dense(ks[9], (N, d_inner, d_model)),
        "ffn_b2": jnp.zeros((N, 1, d_model), jnp.float32),
        "ffn_g": jnp.ones((N, 1, d_model), jnp.float32),
        "ffn_b": jnp.zeros((N, 1, d_model), jnp.float32),
    }


if __name__ == "__main__":
    # Small shapes consistent with the module.
    n_layers, n_head, d_k, d_v = 2, 2, 16, 16
    d_model, d_inner = 32, 64
    B, Lq, Lk = 2, 8, 8

    key = jax.random.PRNGKey(0)
    k_vis, k_kg, k_par = jax.random.split(key, 3)
    vis_feat = jax.random.normal(k_vis, (B, Lq, d_model), dtype=jnp.float32)
    kg_feat = jax.random.normal(k_kg, (B, Lk, d_model), dtype=jnp.float32)
    params = init_params(k_par, n_layers, n_head, d_k, d_v, d_model, d_inner)

    fwd = jax.jit(functools.partial(decoder_forward, n_layers=n_layers,
                                    n_head=n_head, d_k=d_k, d_v=d_v))
    (out,) = fwd(params, vis_feat, kg_feat)
    out = jax.block_until_ready(out)
    assert out.shape == (B, Lq, d_model)
    assert bool(jnp.all(jnp.isfinite(out)))
    print("KERNEL_OK")
</pallas_src>

<mosaic_0001>
module attributes {stable_mosaic.version = 11 : i64} {
  func.func @decoder_kernel(%arg0: i32, %arg1: memref<1x8x32xf32, #tpu.memory_space<vmem>>, %arg2: memref<1x8x32xf32, #tpu.memory_space<vmem>>, %arg3: memref<1x32xf32, #tpu.memory_space<vmem>>, %arg4: memref<1x32xf32, #tpu.memory_space<vmem>>, %arg5: memref<2x2x32x16xbf16, #tpu.memory_space<vmem>>, %arg6: memref<2x2x32x16xbf16, #tpu.memory_space<vmem>>, %arg7: memref<2x2x32x16xbf16, #tpu.memory_space<vmem>>, %arg8: memref<2x2x16x32xbf16, #tpu.memory_space<vmem>>, %arg9: memref<2x1x32xf32, #tpu.memory_space<vmem>>, %arg10: memref<2x1x32xf32, #tpu.memory_space<vmem>>, %arg11: memref<2x2x32x16xbf16, #tpu.memory_space<vmem>>, %arg12: memref<2x2x32x16xbf16, #tpu.memory_space<vmem>>, %arg13: memref<2x2x32x16xbf16, #tpu.memory_space<vmem>>, %arg14: memref<2x2x16x32xbf16, #tpu.memory_space<vmem>>, %arg15: memref<2x1x32xf32, #tpu.memory_space<vmem>>, %arg16: memref<2x1x32xf32, #tpu.memory_space<vmem>>, %arg17: memref<2x32x64xbf16, #tpu.memory_space<vmem>>, %arg18: memref<2x1x64xf32, #tpu.memory_space<vmem>>, %arg19: memref<2x64x32xbf16, #tpu.memory_space<vmem>>, %arg20: memref<2x1x32xf32, #tpu.memory_space<vmem>>, %arg21: memref<2x1x32xf32, #tpu.memory_space<vmem>>, %arg22: memref<2x1x32xf32, #tpu.memory_space<vmem>>, %arg23: memref<1x8x32xf32, #tpu.memory_space<vmem>>) attributes {dimension_semantics = [#tpu.dimension_semantics<parallel>], iteration_bounds = array<i64: 2>, scalar_prefetch = 0 : i64, scratch_operands = 0 : i64, tpu.core_type = #tpu.core_type<tc>, window_params = [{transform_indices = @transform_0, window_bounds = array<i64: 1, 8, 32>}, {transform_indices = @transform_1, window_bounds = array<i64: 1, 8, 32>}, {pipeline_mode = #tpu.pipeline_mode<synchronous>, transform_indices = @transform_2, window_bounds = array<i64: 1, 32>}, {pipeline_mode = #tpu.pipeline_mode<synchronous>, transform_indices = @transform_3, window_bounds = array<i64: 1, 32>}, {pipeline_mode = #tpu.pipeline_mode<synchronous>, transform_indices = @transform_4, window_bounds = array<i64: 2, 2, 32, 16>}, {pipeline_mode = #tpu.pipeline_mode<synchronous>, transform_indices = @transform_5, window_bounds = array<i64: 2, 2, 32, 16>}, {pipeline_mode = #tpu.pipeline_mode<synchronous>, transform_indices = @transform_6, window_bounds = array<i64: 2, 2, 32, 16>}, {pipeline_mode = #tpu.pipeline_mode<synchronous>, transform_indices = @transform_7, window_bounds = array<i64: 2, 2, 16, 32>}, {pipeline_mode = #tpu.pipeline_mode<synchronous>, transform_indices = @transform_8, window_bounds = array<i64: 2, 1, 32>}, {pipeline_mode = #tpu.pipeline_mode<synchronous>, transform_indices = @transform_9, window_bounds = array<i64: 2, 1, 32>}, {pipeline_mode = #tpu.pipeline_mode<synchronous>, transform_indices = @transform_10, window_bounds = array<i64: 2, 2, 32, 16>}, {pipeline_mode = #tpu.pipeline_mode<synchronous>, transform_indices = @transform_11, window_bounds = array<i64: 2, 2, 32, 16>}, {pipeline_mode = #tpu.pipeline_mode<synchronous>, transform_indices = @transform_12, window_bounds = array<i64: 2, 2, 32, 16>}, {pipeline_mode = #tpu.pipeline_mode<synchronous>, transform_indices = @transform_13, window_bounds = array<i64: 2, 2, 16, 32>}, {pipeline_mode = #tpu.pipeline_mode<synchronous>, transform_indices = @transform_14, window_bounds = array<i64: 2, 1, 32>}, {pipeline_mode = #tpu.pipeline_mode<synchronous>, transform_indices = @transform_15, window_bounds = array<i64: 2, 1, 32>}, {pipeline_mode = #tpu.pipeline_mode<synchronous>, transform_indices = @transform_16, window_bounds = array<i64: 2, 32, 64>}, {pipeline_mode = #tpu.pipeline_mode<synchronous>, transform_indices = @transform_17, window_bounds = array<i64: 2, 1, 64>}, {pipeline_mode = #tpu.pipeline_mode<synchronous>, transform_indices = @transform_18, window_bounds = array<i64: 2, 64, 32>}, {pipeline_mode = #tpu.pipeline_mode<synchronous>, transform_indices = @transform_19, window_bounds = array<i64: 2, 1, 32>}, {pipeline_mode = #tpu.pipeline_mode<synchronous>, transform_indices = @transform_20, window_bounds = array<i64: 2, 1, 32>}, {pipeline_mode = #tpu.pipeline_mode<synchronous>, transform_indices = @transform_21, window_bounds = array<i64: 2, 1, 32>}, {transform_indices = @transform_22, window_bounds = array<i64: 1, 8, 32>}]} {
    %c0 = arith.constant 0 : index
    %c0_0 = arith.constant 0 : index
    %c0_1 = arith.constant 0 : index
    %0 = vector.load %arg1[%c0, %c0_0, %c0_1] : memref<1x8x32xf32, #tpu.memory_space<vmem>>, vector<1x8x32xf32>
    %1 = vector.shape_cast %0 : vector<1x8x32xf32> to vector<8x32xf32>
    %c0_2 = arith.constant 0 : index
    %c0_3 = arith.constant 0 : index
    %c0_4 = arith.constant 0 : index
    %2 = vector.load %arg2[%c0_2, %c0_3, %c0_4] : memref<1x8x32xf32, #tpu.memory_space<vmem>>, vector<1x8x32xf32>
    %3 = vector.shape_cast %2 : vector<1x8x32xf32> to vector<8x32xf32>
    %c0_5 = arith.constant 0 : index
    %c0_6 = arith.constant 0 : index
    %4 = vector.load %arg3[%c0_5, %c0_6] : memref<1x32xf32, #tpu.memory_space<vmem>>, vector<1x32xf32>
    %c0_7 = arith.constant 0 : index
    %c0_8 = arith.constant 0 : index
    %5 = vector.load %arg4[%c0_7, %c0_8] : memref<1x32xf32, #tpu.memory_space<vmem>>, vector<1x32xf32>
    %cst = arith.constant dense<0.000000e+00> : vector<8xf32>
    %6 = vector.multi_reduction <add>, %1, %cst [1] : vector<8x32xf32> to vector<8xf32>
    %7 = vector.shape_cast %6 : vector<8xf32> to vector<8x1xf32>
    %cst_9 = arith.constant 3.200000e+01 : f32
    %8 = vector.broadcast %cst_9 : f32 to vector<8x1xf32>
    %9 = arith.divf %7, %8 : vector<8x1xf32>
    %10 = vector.broadcast %9 : vector<8x1xf32> to vector<8x32xf32>
    %11 = arith.subf %1, %10 : vector<8x32xf32>
    %12 = arith.mulf %11, %11 : vector<8x32xf32>
    %cst_10 = arith.constant dense<0.000000e+00> : vector<8xf32>
    %13 = vector.multi_reduction <add>, %12, %cst_10 [1] : vector<8x32xf32> to vector<8xf32>
    %14 = vector.shape_cast %13 : vector<8xf32> to vector<8x1xf32>
    %cst_11 = arith.constant 3.200000e+01 : f32
    %15 = vector.broadcast %cst_11 : f32 to vector<8x1xf32>
    %16 = arith.divf %14, %15 : vector<8x1xf32>
    %17 = vector.broadcast %9 : vector<8x1xf32> to vector<8x32xf32>
    %18 = arith.subf %1, %17 : vector<8x32xf32>
    %cst_12 = arith.constant 9.99999997E-7 : f32
    %19 = vector.broadcast %cst_12 : f32 to vector<8x1xf32>
    %20 = arith.addf %16, %19 : vector<8x1xf32>
    %21 = math.rsqrt %20 : vector<8x1xf32>
    %22 = vector.broadcast %21 : vector<8x1xf32> to vector<8x32xf32>
    %23 = arith.mulf %18, %22 : vector<8x32xf32>
    %24 = vector.broadcast %4 : vector<1x32xf32> to vector<8x32xf32>
    %25 = arith.mulf %23, %24 : vector<8x32xf32>
    %26 = vector.broadcast %5 : vector<1x32xf32> to vector<8x32xf32>
    %27 = arith.addf %25, %26 : vector<8x32xf32>
    %c0_13 = arith.constant 0 : index
    %c0_14 = arith.constant 0 : index
    %c0_15 = arith.constant 0 : index
    %c0_16 = arith.constant 0 : index
    %28 = vector.load %arg5[%c0_13, %c0_14, %c0_15, %c0_16] : memref<2x2x32x16xbf16, #tpu.memory_space<vmem>>, vector<1x2x32x16xbf16>
    %29 = vector.shape_cast %28 : vector<1x2x32x16xbf16> to vector<2x32x16xbf16>
    %c0_17 = arith.constant 0 : index
    %c0_18 = arith.constant 0 : index
    %c0_19 = arith.constant 0 : index
    %c0_20 = arith.constant 0 : index
    %30 = vector.load %arg6[%c0_17, %c0_18, %c0_19, %c0_20] : memref<2x2x32x16xbf16, #tpu.memory_space<vmem>>, vector<1x2x32x16xbf16>
    %31 = vector.shape_cast %30 : vector<1x2x32x16xbf16> to vector<2x32x16xbf16>
    %c0_21 = arith.constant 0 : index
    %c0_22 = arith.constant 0 : index
    %c0_23 = arith.constant 0 : index
    %c0_24 = arith.constant 0 : index
    %32 = vector.load %arg7[%c0_21, %c0_22, %c0_23, %c0_24] : memref<2x2x32x16xbf16, #tpu.memory_space<vmem>>, vector<1x2x32x16xbf16>
    %33 = vector.shape_cast %32 : vector<1x2x32x16xbf16> to vector<2x32x16xbf16>
    %c0_25 = arith.constant 0 : index
    %c0_26 = arith.constant 0 : index
    %c0_27 = arith.constant 0 : index
    %c0_28 = arith.constant 0 : index
    %34 = vector.load %arg8[%c0_25, %c0_26, %c0_27, %c0_28] : memref<2x2x16x32xbf16, #tpu.memory_space<vmem>>, vector<1x2x16x32xbf16>
    %35 = vector.shape_cast %34 : vector<1x2x16x32xbf16> to vector<2x16x32xbf16>
    %c0_29 = arith.constant 0 : index
    %c0_30 = arith.constant 0 : index
    %c0_31 = arith.constant 0 : index
    %36 = vector.load %arg9[%c0_29, %c0_30, %c0_31] : memref<2x1x32xf32, #tpu.memory_space<vmem>>, vector<1x1x32xf32>
    %37 = vector.shape_cast %36 : vector<1x1x32xf32> to vector<1x32xf32>
    %c0_32 = arith.constant 0 : index
    %c0_33 = arith.constant 0 : index
    %c0_34 = arith.constant 0 : index
    %38 = vector.load %arg10[%c0_32, %c0_33, %c0_34] : memref<2x1x32xf32, #tpu.memory_space<vmem>>, vector<1x1x32xf32>
    %39 = vector.shape_cast %38 : vector<1x1x32xf32> to vector<1x32xf32>
    %40 = arith.truncf %27 : vector<8x32xf32> to vector<8x32xbf16>
    %41 = vector.shape_cast %40 : vector<8x32xbf16> to vector<1x8x32xbf16>
    %42 = vector.shape_cast %41 : vector<1x8x32xbf16> to vector<1x8x32xbf16>
    %43 = vector.broadcast %42 : vector<1x8x32xbf16> to vector<2x8x32xbf16>
    %44 = arith.truncf %27 : vector<8x32xf32> to vector<8x32xbf16>
    %45 = vector.shape_cast %44 : vector<8x32xbf16> to vector<1x8x32xbf16>
    %46 = vector.shape_cast %45 : vector<1x8x32xbf16> to vector<1x8x32xbf16>
    %47 = vector.broadcast %46 : vector<1x8x32xbf16> to vector<2x8x32xbf16>
    "tpu.trace_start"() <{level = 10 : i32, message = "hld,hde->hle"}> : () -> ()
    %cst_35 = arith.constant dense<0.000000e+00> : vector<2x8x16xf32>
    %48 = tpu.matmul %43, %29, %cst_35 {dimension_numbers = #tpu.dot_dimension_numbers<[2], [1], [1], [2], [0, 0, 0, 1, 1, 2], [0], [0]>} : vector<2x8x32xbf16>, vector<2x32x16xbf16>, vector<2x8x16xf32> -> vector<2x8x16xf32>
    "tpu.trace_stop"() : () -> ()
    %cst_36 = arith.constant 2.500000e-01 : f32
    %49 = vector.broadcast %cst_36 : f32 to vector<2x8x16xf32>
    %50 = arith.mulf %48, %49 : vector<2x8x16xf32>
    "tpu.trace_start"() <{level = 10 : i32, message = "hld,hde->hle"}> : () -> ()
    %cst_37 = arith.constant dense<0.000000e+00> : vector<2x8x16xf32>
    %51 = tpu.matmul %47, %31, %cst_37 {dimension_numbers = #tpu.dot_dimension_numbers<[2], [1], [1], [2], [0, 0, 0, 1, 1, 2], [0], [0]>} : vector<2x8x32xbf16>, vector<2x32x16xbf16>, vector<2x8x16xf32> -> vector<2x8x16xf32>
    %cst_38 = arith.constant dense<0.000000e+00> : vector<2x8x16xf32>
    %52 = tpu.matmul %47, %33, %cst_38 {dimension_numbers = #tpu.dot_dimension_numbers<[2], [1], [1], [2], [0, 0, 0, 1, 1, 2], [0], [0]>} : vector<2x8x32xbf16>, vector<2x32x16xbf16>, vector<2x8x16xf32> -> vector<2x8x16xf32>
    "tpu.trace_stop"() : () -> ()
    %53 = arith.truncf %50 : vector<2x8x16xf32> to vector<2x8x16xbf16>
    %54 = arith.truncf %51 : vector<2x8x16xf32> to vector<2x8x16xbf16>
    "tpu.trace_start"() <{level = 10 : i32, message = "hqd,hkd->hqk"}> : () -> ()
    %cst_39 = arith.constant dense<0.000000e+00> : vector<2x8x8xf32>
    %55 = tpu.matmul %53, %54, %cst_39 {dimension_numbers = #tpu.dot_dimension_numbers<[2], [2], [1], [1], [0, 0, 0, 1, 1, 1], [0], [0]>} : vector<2x8x16xbf16>, vector<2x8x16xbf16>, vector<2x8x8xf32> -> vector<2x8x8xf32>
    "tpu.trace_stop"() : () -> ()
    %cst_40 = arith.constant dense<0xFF800000> : vector<2x8xf32>
    %56 = vector.multi_reduction <maximumf>, %55, %cst_40 [2] : vector<2x8x8xf32> to vector<2x8xf32>
    %57 = vector.shape_cast %56 : vector<2x8xf32> to vector<2x8x1xf32>
    %58 = vector.broadcast %57 : vector<2x8x1xf32> to vector<2x8x8xf32>
    %59 = arith.subf %55, %58 : vector<2x8x8xf32>
    %60 = math.exp %59 : vector<2x8x8xf32>
    %cst_41 = arith.constant dense<0.000000e+00> : vector<2x8xf32>
    %61 = vector.multi_reduction <add>, %60, %cst_41 [2] : vector<2x8x8xf32> to vector<2x8xf32>
    %62 = vector.shape_cast %61 : vector<2x8xf32> to vector<2x8x1xf32>
    %63 = tpu.reciprocal %62 {approx = true} : vector<2x8x1xf32> -> vector<2x8x1xf32>
    %64 = vector.broadcast %63 : vector<2x8x1xf32> to vector<2x8x8xf32>
    %65 = arith.mulf %60, %64 : vector<2x8x8xf32>
    %66 = arith.truncf %65 : vector<2x8x8xf32> to vector<2x8x8xbf16>
    %67 = arith.truncf %52 : vector<2x8x16xf32> to vector<2x8x16xbf16>
    "tpu.trace_start"() <{level = 10 : i32, message = "hqk,hkd->hqd"}> : () -> ()
    %cst_42 = arith.constant dense<0.000000e+00> : vector<2x8x16xf32>
    %68 = tpu.matmul %66, %67, %cst_42 {dimension_numbers = #tpu.dot_dimension_numbers<[2], [1], [1], [2], [0, 0, 0, 1, 1, 2], [0], [0]>} : vector<2x8x8xbf16>, vector<2x8x16xbf16>, vector<2x8x16xf32> -> vector<2x8x16xf32>
    "tpu.trace_stop"() : () -> ()
    %69 = arith.truncf %68 : vector<2x8x16xf32> to vector<2x8x16xbf16>
    "tpu.trace_start"() <{level = 10 : i32, message = "hqd,hdm->hqm"}> : () -> ()
    %cst_43 = arith.constant dense<0.000000e+00> : vector<2x8x32xf32>
    %70 = tpu.matmul %69, %35, %cst_43 {dimension_numbers = #tpu.dot_dimension_numbers<[2], [1], [1], [2], [0, 0, 0, 1, 1, 2], [0], [0]>} : vector<2x8x16xbf16>, vector<2x16x32xbf16>, vector<2x8x32xf32> -> vector<2x8x32xf32>
    "tpu.trace_stop"() : () -> ()
    %cst_44 = arith.constant dense<0.000000e+00> : vector<8x32xf32>
    %71 = vector.multi_reduction <add>, %70, %cst_44 [0] : vector<2x8x32xf32> to vector<8x32xf32>
    %72 = arith.addf %71, %27 : vector<8x32xf32>
    %cst_45 = arith.constant dense<0.000000e+00> : vector<8xf32>
    %73 = vector.multi_reduction <add>, %72, %cst_45 [1] : vector<8x32xf32> to vector<8xf32>
    %74 = vector.shape_cast %73 : vector<8xf32> to vector<8x1xf32>
    %cst_46 = arith.constant 3.200000e+01 : f32
    %75 = vector.broadcast %cst_46 : f32 to vector<8x1xf32>
    %76 = arith.divf %74, %75 : vector<8x1xf32>
    %77 = vector.broadcast %76 : vector<8x1xf32> to vector<8x32xf32>
    %78 = arith.subf %72, %77 : vector<8x32xf32>
    %79 = arith.mulf %78, %78 : vector<8x32xf32>
    %cst_47 = arith.constant dense<0.000000e+00> : vector<8xf32>
    %80 = vector.multi_reduction <add>, %79, %cst_47 [1] : vector<8x32xf32> to vector<8xf32>
    %81 = vector.shape_cast %80 : vector<8xf32> to vector<8x1xf32>
    %cst_48 = arith.constant 3.200000e+01 : f32
    %82 = vector.broadcast %cst_48 : f32 to vector<8x1xf32>
    %83 = arith.divf %81, %82 : vector<8x1xf32>
    %84 = vector.broadcast %76 : vector<8x1xf32> to vector<8x32xf32>
    %85 = arith.subf %72, %84 : vector<8x32xf32>
    %cst_49 = arith.constant 9.99999997E-7 : f32
    %86 = vector.broadcast %cst_49 : f32 to vector<8x1xf32>
    %87 = arith.addf %83, %86 : vector<8x1xf32>
    %88 = math.rsqrt %87 : vector<8x1xf32>
    %89 = vector.broadcast %88 : vector<8x1xf32> to vector<8x32xf32>
    %90 = arith.mulf %85, %89 : vector<8x32xf32>
    %91 = vector.broadcast %37 : vector<1x32xf32> to vector<8x32xf32>
    %92 = arith.mulf %90, %91 : vector<8x32xf32>
    %93 = vector.broadcast %39 : vector<1x32xf32> to vector<8x32xf32>
    %94 = arith.addf %92, %93 : vector<8x32xf32>
    %c0_50 = arith.constant 0 : index
    %c0_51 = arith.constant 0 : index
    %c0_52 = arith.constant 0 : index
    %c0_53 = arith.constant 0 : index
    %95 = vector.load %arg11[%c0_50, %c0_51, %c0_52, %c0_53] : memref<2x2x32x16xbf16, #tpu.memory_space<vmem>>, vector<1x2x32x16xbf16>
    %96 = vector.shape_cast %95 : vector<1x2x32x16xbf16> to vector<2x32x16xbf16>
    %c0_54 = arith.constant 0 : index
    %c0_55 = arith.constant 0 : index
    %c0_56 = arith.constant 0 : index
    %c0_57 = arith.constant 0 : index
    %97 = vector.load %arg12[%c0_54, %c0_55, %c0_56, %c0_57] : memref<2x2x32x16xbf16, #tpu.memory_space<vmem>>, vector<1x2x32x16xbf16>
    %98 = vector.shape_cast %97 : vector<1x2x32x16xbf16> to vector<2x32x16xbf16>
    %c0_58 = arith.constant 0 : index
    %c0_59 = arith.constant 0 : index
    %c0_60 = arith.constant 0 : index
    %c0_61 = arith.constant 0 : index
    %99 = vector.load %arg13[%c0_58, %c0_59, %c0_60, %c0_61] : memref<2x2x32x16xbf16, #tpu.memory_space<vmem>>, vector<1x2x32x16xbf16>
    %100 = vector.shape_cast %99 : vector<1x2x32x16xbf16> to vector<2x32x16xbf16>
    %c0_62 = arith.constant 0 : index
    %c0_63 = arith.constant 0 : index
    %c0_64 = arith.constant 0 : index
    %c0_65 = arith.constant 0 : index
    %101 = vector.load %arg14[%c0_62, %c0_63, %c0_64, %c0_65] : memref<2x2x16x32xbf16, #tpu.memory_space<vmem>>, vector<1x2x16x32xbf16>
    %102 = vector.shape_cast %101 : vector<1x2x16x32xbf16> to vector<2x16x32xbf16>
    %c0_66 = arith.constant 0 : index
    %c0_67 = arith.constant 0 : index
    %c0_68 = arith.constant 0 : index
    %103 = vector.load %arg15[%c0_66, %c0_67, %c0_68] : memref<2x1x32xf32, #tpu.memory_space<vmem>>, vector<1x1x32xf32>
    %104 = vector.shape_cast %103 : vector<1x1x32xf32> to vector<1x32xf32>
    %c0_69 = arith.constant 0 : index
    %c0_70 = arith.constant 0 : index
    %c0_71 = arith.constant 0 : index
    %105 = vector.load %arg16[%c0_69, %c0_70, %c0_71] : memref<2x1x32xf32, #tpu.memory_space<vmem>>, vector<1x1x32xf32>
    %106 = vector.shape_cast %105 : vector<1x1x32xf32> to vector<1x32xf32>
    %107 = arith.truncf %94 : vector<8x32xf32> to vector<8x32xbf16>
    %108 = vector.shape_cast %107 : vector<8x32xbf16> to vector<1x8x32xbf16>
    %109 = vector.shape_cast %108 : vector<1x8x32xbf16> to vector<1x8x32xbf16>
    %110 = vector.broadcast %109 : vector<1x8x32xbf16> to vector<2x8x32xbf16>
    %111 = arith.truncf %3 : vector<8x32xf32> to vector<8x32xbf16>
    %112 = vector.shape_cast %111 : vector<8x32xbf16> to vector<1x8x32xbf16>
    %113 = vector.shape_cast %112 : vector<1x8x32xbf16> to vector<1x8x32xbf16>
    %114 = vector.broadcast %113 : vector<1x8x32xbf16> to vector<2x8x32xbf16>
    "tpu.trace_start"() <{level = 10 : i32, message = "hld,hde->hle"}> : () -> ()
    %cst_72 = arith.constant dense<0.000000e+00> : vector<2x8x16xf32>
    %115 = tpu.matmul %110, %96, %cst_72 {dimension_numbers = #tpu.dot_dimension_numbers<[2], [1], [1], [2], [0, 0, 0, 1, 1, 2], [0], [0]>} : vector<2x8x32xbf16>, vector<2x32x16xbf16>, vector<2x8x16xf32> -> vector<2x8x16xf32>
    "tpu.trace_stop"() : () -> ()
    %cst_73 = arith.constant 2.500000e-01 : f32
    %116 = vector.broadcast %cst_73 : f32 to vector<2x8x16xf32>
    %117 = arith.mulf %115, %116 : vector<2x8x16xf32>
    "tpu.trace_start"() <{level = 10 : i32, message = "hld,hde->hle"}> : () -> ()
    %cst_74 = arith.constant dense<0.000000e+00> : vector<2x8x16xf32>
    %118 = tpu.matmul %114, %98, %cst_74 {dimension_numbers = #tpu.dot_dimension_numbers<[2], [1], [1], [2], [0, 0, 0, 1, 1, 2], [0], [0]>} : vector<2x8x32xbf16>, vector<2x32x16xbf16>, vector<2x8x16xf32> -> vector<2x8x16xf32>
    %cst_75 = arith.constant dense<0.000000e+00> : vector<2x8x16xf32>
    %119 = tpu.matmul %114, %100, %cst_75 {dimension_numbers = #tpu.dot_dimension_numbers<[2], [1], [1], [2], [0, 0, 0, 1, 1, 2], [0], [0]>} : vector<2x8x32xbf16>, vector<2x32x16xbf16>, vector<2x8x16xf32> -> vector<2x8x16xf32>
    "tpu.trace_stop"() : () -> ()
    %120 = arith.truncf %117 : vector<2x8x16xf32> to vector<2x8x16xbf16>
    %121 = arith.truncf %118 : vector<2x8x16xf32> to vector<2x8x16xbf16>
    "tpu.trace_start"() <{level = 10 : i32, message = "hqd,hkd->hqk"}> : () -> ()
    %cst_76 = arith.constant dense<0.000000e+00> : vector<2x8x8xf32>
    %122 = tpu.matmul %120, %121, %cst_76 {dimension_numbers = #tpu.dot_dimension_numbers<[2], [2], [1], [1], [0, 0, 0, 1, 1, 1], [0], [0]>} : vector<2x8x16xbf16>, vector<2x8x16xbf16>, vector<2x8x8xf32> -> vector<2x8x8xf32>
    "tpu.trace_stop"() : () -> ()
    %cst_77 = arith.constant dense<0xFF800000> : vector<2x8xf32>
    %123 = vector.multi_reduction <maximumf>, %122, %cst_77 [2] : vector<2x8x8xf32> to vector<2x8xf32>
    %124 = vector.shape_cast %123 : vector<2x8xf32> to vector<2x8x1xf32>
    %125 = vector.broadcast %124 : vector<2x8x1xf32> to vector<2x8x8xf32>
    %126 = arith.subf %122, %125 : vector<2x8x8xf32>
    %127 = math.exp %126 : vector<2x8x8xf32>
    %cst_78 = arith.constant dense<0.000000e+00> : vector<2x8xf32>
    %128 = vector.multi_reduction <add>, %127, %cst_78 [2] : vector<2x8x8xf32> to vector<2x8xf32>
    %129 = vector.shape_cast %128 : vector<2x8xf32> to vector<2x8x1xf32>
    %130 = tpu.reciprocal %129 {approx = true} : vector<2x8x1xf32> -> vector<2x8x1xf32>
    %131 = vector.broadcast %130 : vector<2x8x1xf32> to vector<2x8x8xf32>
    %132 = arith.mulf %127, %131 : vector<2x8x8xf32>
    %133 = arith.truncf %132 : vector<2x8x8xf32> to vector<2x8x8xbf16>
    %134 = arith.truncf %119 : vector<2x8x16xf32> to vector<2x8x16xbf16>
    "tpu.trace_start"() <{level = 10 : i32, message = "hqk,hkd->hqd"}> : () -> ()
    %cst_79 = arith.constant dense<0.000000e+00> : vector<2x8x16xf32>
    %135 = tpu.matmul %133, %134, %cst_79 {dimension_numbers = #tpu.dot_dimension_numbers<[2], [1], [1], [2], [0, 0, 0, 1, 1, 2], [0], [0]>} : vector<2x8x8xbf16>, vector<2x8x16xbf16>, vector<2x8x16xf32> -> vector<2x8x16xf32>
    "tpu.trace_stop"() : () -> ()
    %136 = arith.truncf %135 : vector<2x8x16xf32> to vector<2x8x16xbf16>
    "tpu.trace_start"() <{level = 10 : i32, message = "hqd,hdm->hqm"}> : () -> ()
    %cst_80 = arith.constant dense<0.000000e+00> : vector<2x8x32xf32>
    %137 = tpu.matmul %136, %102, %cst_80 {dimension_numbers = #tpu.dot_dimension_numbers<[2], [1], [1], [2], [0, 0, 0, 1, 1, 2], [0], [0]>} : vector<2x8x16xbf16>, vector<2x16x32xbf16>, vector<2x8x32xf32> -> vector<2x8x32xf32>
    "tpu.trace_stop"() : () -> ()
    %cst_81 = arith.constant dense<0.000000e+00> : vector<8x32xf32>
    %138 = vector.multi_reduction <add>, %137, %cst_81 [0] : vector<2x8x32xf32> to vector<8x32xf32>
    %139 = arith.addf %138, %94 : vector<8x32xf32>
    %cst_82 = arith.constant dense<0.000000e+00> : vector<8xf32>
    %140 = vector.multi_reduction <add>, %139, %cst_82 [1] : vector<8x32xf32> to vector<8xf32>
    %141 = vector.shape_cast %140 : vector<8xf32> to vector<8x1xf32>
    %cst_83 = arith.constant 3.200000e+01 : f32
    %142 = vector.broadcast %cst_83 : f32 to vector<8x1xf32>
    %143 = arith.divf %141, %142 : vector<8x1xf32>
    %144 = vector.broadcast %143 : vector<8x1xf32> to vector<8x32xf32>
    %145 = arith.subf %139, %144 : vector<8x32xf32>
    %146 = arith.mulf %145, %145 : vector<8x32xf32>
    %cst_84 = arith.constant dense<0.000000e+00> : vector<8xf32>
    %147 = vector.multi_reduction <add>, %146, %cst_84 [1] : vector<8x32xf32> to vector<8xf32>
    %148 = vector.shape_cast %147 : vector<8xf32> to vector<8x1xf32>
    %cst_85 = arith.constant 3.200000e+01 : f32
    %149 = vector.broadcast %cst_85 : f32 to vector<8x1xf32>
    %150 = arith.divf %148, %149 : vector<8x1xf32>
    %151 = vector.broadcast %143 : vector<8x1xf32> to vector<8x32xf32>
    %152 = arith.subf %139, %151 : vector<8x32xf32>
    %cst_86 = arith.constant 9.99999997E-7 : f32
    %153 = vector.broadcast %cst_86 : f32 to vector<8x1xf32>
    %154 = arith.addf %150, %153 : vector<8x1xf32>
    %155 = math.rsqrt %154 : vector<8x1xf32>
    %156 = vector.broadcast %155 : vector<8x1xf32> to vector<8x32xf32>
    %157 = arith.mulf %152, %156 : vector<8x32xf32>
    %158 = vector.broadcast %104 : vector<1x32xf32> to vector<8x32xf32>
    %159 = arith.mulf %157, %158 : vector<8x32xf32>
    %160 = vector.broadcast %106 : vector<1x32xf32> to vector<8x32xf32>
    %161 = arith.addf %159, %160 : vector<8x32xf32>
    %c0_87 = arith.constant 0 : index
    %c0_88 = arith.constant 0 : index
    %c0_89 = arith.constant 0 : index
    %162 = vector.load %arg17[%c0_87, %c0_88, %c0_89] : memref<2x32x64xbf16, #tpu.memory_space<vmem>>, vector<1x32x64xbf16>
    %163 = vector.shape_cast %162 : vector<1x32x64xbf16> to vector<32x64xbf16>
    %c0_90 = arith.constant 0 : index
    %c0_91 = arith.constant 0 : index
    %c0_92 = arith.constant 0 : index
    %164 = vector.load %arg18[%c0_90, %c0_91, %c0_92] : memref<2x1x64xf32, #tpu.memory_space<vmem>>, vector<1x1x64xf32>
    %165 = vector.shape_cast %164 : vector<1x1x64xf32> to vector<1x64xf32>
    %c0_93 = arith.constant 0 : index
    %c0_94 = arith.constant 0 : index
    %c0_95 = arith.constant 0 : index
    %166 = vector.load %arg19[%c0_93, %c0_94, %c0_95] : memref<2x64x32xbf16, #tpu.memory_space<vmem>>, vector<1x64x32xbf16>
    %167 = vector.shape_cast %166 : vector<1x64x32xbf16> to vector<64x32xbf16>
    %c0_96 = arith.constant 0 : index
    %c0_97 = arith.constant 0 : index
    %c0_98 = arith.constant 0 : index
    %168 = vector.load %arg20[%c0_96, %c0_97, %c0_98] : memref<2x1x32xf32, #tpu.memory_space<vmem>>, vector<1x1x32xf32>
    %169 = vector.shape_cast %168 : vector<1x1x32xf32> to vector<1x32xf32>
    %c0_99 = arith.constant 0 : index
    %c0_100 = arith.constant 0 : index
    %c0_101 = arith.constant 0 : index
    %170 = vector.load %arg21[%c0_99, %c0_100, %c0_101] : memref<2x1x32xf32, #tpu.memory_space<vmem>>, vector<1x1x32xf32>
    %171 = vector.shape_cast %170 : vector<1x1x32xf32> to vector<1x32xf32>
    %c0_102 = arith.constant 0 : index
    %c0_103 = arith.constant 0 : index
    %c0_104 = arith.constant 0 : index
    %172 = vector.load %arg22[%c0_102, %c0_103, %c0_104] : memref<2x1x32xf32, #tpu.memory_space<vmem>>, vector<1x1x32xf32>
    %173 = vector.shape_cast %172 : vector<1x1x32xf32> to vector<1x32xf32>
    %174 = arith.truncf %161 : vector<8x32xf32> to vector<8x32xbf16>
    %cst_105 = arith.constant dense<0.000000e+00> : vector<8x64xf32>
    %175 = tpu.matmul %174, %163, %cst_105 {dimension_numbers = #tpu.dot_dimension_numbers<[1], [0], [0], [1], [0, 0, 1, 1], [], []>} : vector<8x32xbf16>, vector<32x64xbf16>, vector<8x64xf32> -> vector<8x64xf32>
    %176 = vector.broadcast %165 : vector<1x64xf32> to vector<8x64xf32>
    %177 = arith.addf %175, %176 : vector<8x64xf32>
    %cst_106 = arith.constant 0.000000e+00 : f32
    %178 = vector.broadcast %cst_106 : f32 to vector<8x64xf32>
    %179 = arith.maximumf %177, %178 : vector<8x64xf32>
    %180 = arith.truncf %179 : vector<8x64xf32> to vector<8x64xbf16>
    %cst_107 = arith.constant dense<0.000000e+00> : vector<8x32xf32>
    %181 = tpu.matmul %180, %167, %cst_107 {dimension_numbers = #tpu.dot_dimension_numbers<[1], [0], [0], [1], [0, 0, 1, 1], [], []>} : vector<8x64xbf16>, vector<64x32xbf16>, vector<8x32xf32> -> vector<8x32xf32>
    %182 = vector.broadcast %169 : vector<1x32xf32> to vector<8x32xf32>
    %183 = arith.addf %181, %182 : vector<8x32xf32>
    %184 = arith.addf %183, %161 : vector<8x32xf32>
    %cst_108 = arith.constant dense<0.000000e+00> : vector<8xf32>
    %185 = vector.multi_reduction <add>, %184, %cst_108 [1] : vector<8x32xf32> to vector<8xf32>
    %186 = vector.shape_cast %185 : vector<8xf32> to vector<8x1xf32>
    %cst_109 = arith.constant 3.200000e+01 : f32
    %187 = vector.broadcast %cst_109 : f32 to vector<8x1xf32>
    %188 = arith.divf %186, %187 : vector<8x1xf32>
    %189 = vector.broadcast %188 : vector<8x1xf32> to vector<8x32xf32>
    %190 = arith.subf %184, %189 : vector<8x32xf32>
    %191 = arith.mulf %190, %190 : vector<8x32xf32>
    %cst_110 = arith.constant dense<0.000000e+00> : vector<8xf32>
    %192 = vector.multi_reduction <add>, %191, %cst_110 [1] : vector<8x32xf32> to vector<8xf32>
    %193 = vector.shape_cast %192 : vector<8xf32> to vector<8x1xf32>
    %cst_111 = arith.constant 3.200000e+01 : f32
    %194 = vector.broadcast %cst_111 : f32 to vector<8x1xf32>
    %195 = arith.divf %193, %194 : vector<8x1xf32>
    %196 = vector.broadcast %188 : vector<8x1xf32> to vector<8x32xf32>
    %197 = arith.subf %184, %196 : vector<8x32xf32>
    %cst_112 = arith.constant 9.99999997E-7 : f32
    %198 = vector.broadcast %cst_112 : f32 to vector<8x1xf32>
    %199 = arith.addf %195, %198 : vector<8x1xf32>
    %200 = math.rsqrt %199 : vector<8x1xf32>
    %201 = vector.broadcast %200 : vector<8x1xf32> to vector<8x32xf32>
    %202 = arith.mulf %197, %201 : vector<8x32xf32>
    %203 = vector.broadcast %171 : vector<1x32xf32> to vector<8x32xf32>
    %204 = arith.mulf %202, %203 : vector<8x32xf32>
    %205 = vector.broadcast %173 : vector<1x32xf32> to vector<8x32xf32>
    %206 = arith.addf %204, %205 : vector<8x32xf32>
    %c1 = arith.constant 1 : index
    %c0_113 = arith.constant 0 : index
    %c0_114 = arith.constant 0 : index
    %c0_115 = arith.constant 0 : index
    %207 = vector.load %arg5[%c1, %c0_113, %c0_114, %c0_115] : memref<2x2x32x16xbf16, #tpu.memory_space<vmem>>, vector<1x2x32x16xbf16>
    %208 = vector.shape_cast %207 : vector<1x2x32x16xbf16> to vector<2x32x16xbf16>
    %c1_116 = arith.constant 1 : index
    %c0_117 = arith.constant 0 : index
    %c0_118 = arith.constant 0 : index
    %c0_119 = arith.constant 0 : index
    %209 = vector.load %arg6[%c1_116, %c0_117, %c0_118, %c0_119] : memref<2x2x32x16xbf16, #tpu.memory_space<vmem>>, vector<1x2x32x16xbf16>
    %210 = vector.shape_cast %209 : vector<1x2x32x16xbf16> to vector<2x32x16xbf16>
    %c1_120 = arith.constant 1 : index
    %c0_121 = arith.constant 0 : index
    %c0_122 = arith.constant 0 : index
    %c0_123 = arith.constant 0 : index
    %211 = vector.load %arg7[%c1_120, %c0_121, %c0_122, %c0_123] : memref<2x2x32x16xbf16, #tpu.memory_space<vmem>>, vector<1x2x32x16xbf16>
    %212 = vector.shape_cast %211 : vector<1x2x32x16xbf16> to vector<2x32x16xbf16>
    %c1_124 = arith.constant 1 : index
    %c0_125 = arith.constant 0 : index
    %c0_126 = arith.constant 0 : index
    %c0_127 = arith.constant 0 : index
    %213 = vector.load %arg8[%c1_124, %c0_125, %c0_126, %c0_127] : memref<2x2x16x32xbf16, #tpu.memory_space<vmem>>, vector<1x2x16x32xbf16>
    %214 = vector.shape_cast %213 : vector<1x2x16x32xbf16> to vector<2x16x32xbf16>
    %c1_128 = arith.constant 1 : index
    %c0_129 = arith.constant 0 : index
    %c0_130 = arith.constant 0 : index
    %215 = vector.load %arg9[%c1_128, %c0_129, %c0_130] : memref<2x1x32xf32, #tpu.memory_space<vmem>>, vector<1x1x32xf32>
    %216 = vector.shape_cast %215 : vector<1x1x32xf32> to vector<1x32xf32>
    %c1_131 = arith.constant 1 : index
    %c0_132 = arith.constant 0 : index
    %c0_133 = arith.constant 0 : index
    %217 = vector.load %arg10[%c1_131, %c0_132, %c0_133] : memref<2x1x32xf32, #tpu.memory_space<vmem>>, vector<1x1x32xf32>
    %218 = vector.shape_cast %217 : vector<1x1x32xf32> to vector<1x32xf32>
    %219 = arith.truncf %206 : vector<8x32xf32> to vector<8x32xbf16>
    %220 = vector.shape_cast %219 : vector<8x32xbf16> to vector<1x8x32xbf16>
    %221 = vector.shape_cast %220 : vector<1x8x32xbf16> to vector<1x8x32xbf16>
    %222 = vector.broadcast %221 : vector<1x8x32xbf16> to vector<2x8x32xbf16>
    %223 = arith.truncf %206 : vector<8x32xf32> to vector<8x32xbf16>
    %224 = vector.shape_cast %223 : vector<8x32xbf16> to vector<1x8x32xbf16>
    %225 = vector.shape_cast %224 : vector<1x8x32xbf16> to vector<1x8x32xbf16>
    %226 = vector.broadcast %225 : vector<1x8x32xbf16> to vector<2x8x32xbf16>
    "tpu.trace_start"() <{level = 10 : i32, message = "hld,hde->hle"}> : () -> ()
    %cst_134 = arith.constant dense<0.000000e+00> : vector<2x8x16xf32>
    %227 = tpu.matmul %222, %208, %cst_134 {dimension_numbers = #tpu.dot_dimension_numbers<[2], [1], [1], [2], [0, 0, 0, 1, 1, 2], [0], [0]>} : vector<2x8x32xbf16>, vector<2x32x16xbf16>, vector<2x8x16xf32> -> vector<2x8x16xf32>
    "tpu.trace_stop"() : () -> ()
    %cst_135 = arith.constant 2.500000e-01 : f32
    %228 = vector.broadcast %cst_135 : f32 to vector<2x8x16xf32>
    %229 = arith.mulf %227, %228 : vector<2x8x16xf32>
    "tpu.trace_start"() <{level = 10 : i32, message = "hld,hde->hle"}> : () -> ()
    %cst_136 = arith.constant dense<0.000000e+00> : vector<2x8x16xf32>
    %230 = tpu.matmul %226, %210, %cst_136 {dimension_numbers = #tpu.dot_dimension_numbers<[2], [1], [1], [2], [0, 0, 0, 1, 1, 2], [0], [0]>} : vector<2x8x32xbf16>, vector<2x32x16xbf16>, vector<2x8x16xf32> -> vector<2x8x16xf32>
    %cst_137 = arith.constant dense<0.000000e+00> : vector<2x8x16xf32>
    %231 = tpu.matmul %226, %212, %cst_137 {dimension_numbers = #tpu.dot_dimension_numbers<[2], [1], [1], [2], [0, 0, 0, 1, 1, 2], [0], [0]>} : vector<2x8x32xbf16>, vector<2x32x16xbf16>, vector<2x8x16xf32> -> vector<2x8x16xf32>
    "tpu.trace_stop"() : () -> ()
    %232 = arith.truncf %229 : vector<2x8x16xf32> to vector<2x8x16xbf16>
    %233 = arith.truncf %230 : vector<2x8x16xf32> to vector<2x8x16xbf16>
    "tpu.trace_start"() <{level = 10 : i32, message = "hqd,hkd->hqk"}> : () -> ()
    %cst_138 = arith.constant dense<0.000000e+00> : vector<2x8x8xf32>
    %234 = tpu.matmul %232, %233, %cst_138 {dimension_numbers = #tpu.dot_dimension_numbers<[2], [2], [1], [1], [0, 0, 0, 1, 1, 1], [0], [0]>} : vector<2x8x16xbf16>, vector<2x8x16xbf16>, vector<2x8x8xf32> -> vector<2x8x8xf32>
    "tpu.trace_stop"() : () -> ()
    %cst_139 = arith.constant dense<0xFF800000> : vector<2x8xf32>
    %235 = vector.multi_reduction <maximumf>, %234, %cst_139 [2] : vector<2x8x8xf32> to vector<2x8xf32>
    %236 = vector.shape_cast %235 : vector<2x8xf32> to vector<2x8x1xf32>
    %237 = vector.broadcast %236 : vector<2x8x1xf32> to vector<2x8x8xf32>
    %238 = arith.subf %234, %237 : vector<2x8x8xf32>
    %239 = math.exp %238 : vector<2x8x8xf32>
    %cst_140 = arith.constant dense<0.000000e+00> : vector<2x8xf32>
    %240 = vector.multi_reduction <add>, %239, %cst_140 [2] : vector<2x8x8xf32> to vector<2x8xf32>
    %241 = vector.shape_cast %240 : vector<2x8xf32> to vector<2x8x1xf32>
    %242 = tpu.reciprocal %241 {approx = true} : vector<2x8x1xf32> -> vector<2x8x1xf32>
    %243 = vector.broadcast %242 : vector<2x8x1xf32> to vector<2x8x8xf32>
    %244 = arith.mulf %239, %243 : vector<2x8x8xf32>
    %245 = arith.truncf %244 : vector<2x8x8xf32> to vector<2x8x8xbf16>
    %246 = arith.truncf %231 : vector<2x8x16xf32> to vector<2x8x16xbf16>
    "tpu.trace_start"() <{level = 10 : i32, message = "hqk,hkd->hqd"}> : () -> ()
    %cst_141 = arith.constant dense<0.000000e+00> : vector<2x8x16xf32>
    %247 = tpu.matmul %245, %246, %cst_141 {dimension_numbers = #tpu.dot_dimension_numbers<[2], [1], [1], [2], [0, 0, 0, 1, 1, 2], [0], [0]>} : vector<2x8x8xbf16>, vector<2x8x16xbf16>, vector<2x8x16xf32> -> vector<2x8x16xf32>
    "tpu.trace_stop"() : () -> ()
    %248 = arith.truncf %247 : vector<2x8x16xf32> to vector<2x8x16xbf16>
    "tpu.trace_start"() <{level = 10 : i32, message = "hqd,hdm->hqm"}> : () -> ()
    %cst_142 = arith.constant dense<0.000000e+00> : vector<2x8x32xf32>
    %249 = tpu.matmul %248, %214, %cst_142 {dimension_numbers = #tpu.dot_dimension_numbers<[2], [1], [1], [2], [0, 0, 0, 1, 1, 2], [0], [0]>} : vector<2x8x16xbf16>, vector<2x16x32xbf16>, vector<2x8x32xf32> -> vector<2x8x32xf32>
    "tpu.trace_stop"() : () -> ()
    %cst_143 = arith.constant dense<0.000000e+00> : vector<8x32xf32>
    %250 = vector.multi_reduction <add>, %249, %cst_143 [0] : vector<2x8x32xf32> to vector<8x32xf32>
    %251 = arith.addf %250, %206 : vector<8x32xf32>
    %cst_144 = arith.constant dense<0.000000e+00> : vector<8xf32>
    %252 = vector.multi_reduction <add>, %251, %cst_144 [1] : vector<8x32xf32> to vector<8xf32>
    %253 = vector.shape_cast %252 : vector<8xf32> to vector<8x1xf32>
    %cst_145 = arith.constant 3.200000e+01 : f32
    %254 = vector.broadcast %cst_145 : f32 to vector<8x1xf32>
    %255 = arith.divf %253, %254 : vector<8x1xf32>
    %256 = vector.broadcast %255 : vector<8x1xf32> to vector<8x32xf32>
    %257 = arith.subf %251, %256 : vector<8x32xf32>
    %258 = arith.mulf %257, %257 : vector<8x32xf32>
    %cst_146 = arith.constant dense<0.000000e+00> : vector<8xf32>
    %259 = vector.multi_reduction <add>, %258, %cst_146 [1] : vector<8x32xf32> to vector<8xf32>
    %260 = vector.shape_cast %259 : vector<8xf32> to vector<8x1xf32>
    %cst_147 = arith.constant 3.200000e+01 : f32
    %261 = vector.broadcast %cst_147 : f32 to vector<8x1xf32>
    %262 = arith.divf %260, %261 : vector<8x1xf32>
    %263 = vector.broadcast %255 : vector<8x1xf32> to vector<8x32xf32>
    %264 = arith.subf %251, %263 : vector<8x32xf32>
    %cst_148 = arith.constant 9.99999997E-7 : f32
    %265 = vector.broadcast %cst_148 : f32 to vector<8x1xf32>
    %266 = arith.addf %262, %265 : vector<8x1xf32>
    %267 = math.rsqrt %266 : vector<8x1xf32>
    %268 = vector.broadcast %267 : vector<8x1xf32> to vector<8x32xf32>
    %269 = arith.mulf %264, %268 : vector<8x32xf32>
    %270 = vector.broadcast %216 : vector<1x32xf32> to vector<8x32xf32>
    %271 = arith.mulf %269, %270 : vector<8x32xf32>
    %272 = vector.broadcast %218 : vector<1x32xf32> to vector<8x32xf32>
    %273 = arith.addf %271, %272 : vector<8x32xf32>
    %c1_149 = arith.constant 1 : index
    %c0_150 = arith.constant 0 : index
    %c0_151 = arith.constant 0 : index
    %c0_152 = arith.constant 0 : index
    %274 = vector.load %arg11[%c1_149, %c0_150, %c0_151, %c0_152] : memref<2x2x32x16xbf16, #tpu.memory_space<vmem>>, vector<1x2x32x16xbf16>
    %275 = vector.shape_cast %274 : vector<1x2x32x16xbf16> to vector<2x32x16xbf16>
    %c1_153 = arith.constant 1 : index
    %c0_154 = arith.constant 0 : index
    %c0_155 = arith.constant 0 : index
    %c0_156 = arith.constant 0 : index
    %276 = vector.load %arg12[%c1_153, %c0_154, %c0_155, %c0_156] : memref<2x2x32x16xbf16, #tpu.memory_space<vmem>>, vector<1x2x32x16xbf16>
    %277 = vector.shape_cast %276 : vector<1x2x32x16xbf16> to vector<2x32x16xbf16>
    %c1_157 = arith.constant 1 : index
    %c0_158 = arith.constant 0 : index
    %c0_159 = arith.constant 0 : index
    %c0_160 = arith.constant 0 : index
    %278 = vector.load %arg13[%c1_157, %c0_158, %c0_159, %c0_160] : memref<2x2x32x16xbf16, #tpu.memory_space<vmem>>, vector<1x2x32x16xbf16>
    %279 = vector.shape_cast %278 : vector<1x2x32x16xbf16> to vector<2x32x16xbf16>
    %c1_161 = arith.constant 1 : index
    %c0_162 = arith.constant 0 : index
    %c0_163 = arith.constant 0 : index
    %c0_164 = arith.constant 0 : index
    %280 = vector.load %arg14[%c1_161, %c0_162, %c0_163, %c0_164] : memref<2x2x16x32xbf16, #tpu.memory_space<vmem>>, vector<1x2x16x32xbf16>
    %281 = vector.shape_cast %280 : vector<1x2x16x32xbf16> to vector<2x16x32xbf16>
    %c1_165 = arith.constant 1 : index
    %c0_166 = arith.constant 0 : index
    %c0_167 = arith.constant 0 : index
    %282 = vector.load %arg15[%c1_165, %c0_166, %c0_167] : memref<2x1x32xf32, #tpu.memory_space<vmem>>, vector<1x1x32xf32>
    %283 = vector.shape_cast %282 : vector<1x1x32xf32> to vector<1x32xf32>
    %c1_168 = arith.constant 1 : index
    %c0_169 = arith.constant 0 : index
    %c0_170 = arith.constant 0 : index
    %284 = vector.load %arg16[%c1_168, %c0_169, %c0_170] : memref<2x1x32xf32, #tpu.memory_space<vmem>>, vector<1x1x32xf32>
    %285 = vector.shape_cast %284 : vector<1x1x32xf32> to vector<1x32xf32>
    %286 = arith.truncf %273 : vector<8x32xf32> to vector<8x32xbf16>
    %287 = vector.shape_cast %286 : vector<8x32xbf16> to vector<1x8x32xbf16>
    %288 = vector.shape_cast %287 : vector<1x8x32xbf16> to vector<1x8x32xbf16>
    %289 = vector.broadcast %288 : vector<1x8x32xbf16> to vector<2x8x32xbf16>
    %290 = arith.truncf %3 : vector<8x32xf32> to vector<8x32xbf16>
    %291 = vector.shape_cast %290 : vector<8x32xbf16> to vector<1x8x32xbf16>
    %292 = vector.shape_cast %291 : vector<1x8x32xbf16> to vector<1x8x32xbf16>
    %293 = vector.broadcast %292 : vector<1x8x32xbf16> to vector<2x8x32xbf16>
    "tpu.trace_start"() <{level = 10 : i32, message = "hld,hde->hle"}> : () -> ()
    %cst_171 = arith.constant dense<0.000000e+00> : vector<2x8x16xf32>
    %294 = tpu.matmul %289, %275, %cst_171 {dimension_numbers = #tpu.dot_dimension_numbers<[2], [1], [1], [2], [0, 0, 0, 1, 1, 2], [0], [0]>} : vector<2x8x32xbf16>, vector<2x32x16xbf16>, vector<2x8x16xf32> -> vector<2x8x16xf32>
    "tpu.trace_stop"() : () -> ()
    %cst_172 = arith.constant 2.500000e-01 : f32
    %295 = vector.broadcast %cst_172 : f32 to vector<2x8x16xf32>
    %296 = arith.mulf %294, %295 : vector<2x8x16xf32>
    "tpu.trace_start"() <{level = 10 : i32, message = "hld,hde->hle"}> : () -> ()
    %cst_173 = arith.constant dense<0.000000e+00> : vector<2x8x16xf32>
    %297 = tpu.matmul %293, %277, %cst_173 {dimension_numbers = #tpu.dot_dimension_numbers<[2], [1], [1], [2], [0, 0, 0, 1, 1, 2], [0], [0]>} : vector<2x8x32xbf16>, vector<2x32x16xbf16>, vector<2x8x16xf32> -> vector<2x8x16xf32>
    %cst_174 = arith.constant dense<0.000000e+00> : vector<2x8x16xf32>
    %298 = tpu.matmul %293, %279, %cst_174 {dimension_numbers = #tpu.dot_dimension_numbers<[2], [1], [1], [2], [0, 0, 0, 1, 1, 2], [0], [0]>} : vector<2x8x32xbf16>, vector<2x32x16xbf16>, vector<2x8x16xf32> -> vector<2x8x16xf32>
    "tpu.trace_stop"() : () -> ()
    %299 = arith.truncf %296 : vector<2x8x16xf32> to vector<2x8x16xbf16>
    %300 = arith.truncf %297 : vector<2x8x16xf32> to vector<2x8x16xbf16>
    "tpu.trace_start"() <{level = 10 : i32, message = "hqd,hkd->hqk"}> : () -> ()
    %cst_175 = arith.constant dense<0.000000e+00> : vector<2x8x8xf32>
    %301 = tpu.matmul %299, %300, %cst_175 {dimension_numbers = #tpu.dot_dimension_numbers<[2], [2], [1], [1], [0, 0, 0, 1, 1, 1], [0], [0]>} : vector<2x8x16xbf16>, vector<2x8x16xbf16>, vector<2x8x8xf32> -> vector<2x8x8xf32>
    "tpu.trace_stop"() : () -> ()
    %cst_176 = arith.constant dense<0xFF800000> : vector<2x8xf32>
    %302 = vector.multi_reduction <maximumf>, %301, %cst_176 [2] : vector<2x8x8xf32> to vector<2x8xf32>
    %303 = vector.shape_cast %302 : vector<2x8xf32> to vector<2x8x1xf32>
    %304 = vector.broadcast %303 : vector<2x8x1xf32> to vector<2x8x8xf32>
    %305 = arith.subf %301, %304 : vector<2x8x8xf32>
    %306 = math.exp %305 : vector<2x8x8xf32>
    %cst_177 = arith.constant dense<0.000000e+00> : vector<2x8xf32>
    %307 = vector.multi_reduction <add>, %306, %cst_177 [2] : vector<2x8x8xf32> to vector<2x8xf32>
    %308 = vector.shape_cast %307 : vector<2x8xf32> to vector<2x8x1xf32>
    %309 = tpu.reciprocal %308 {approx = true} : vector<2x8x1xf32> -> vector<2x8x1xf32>
    %310 = vector.broadcast %309 : vector<2x8x1xf32> to vector<2x8x8xf32>
    %311 = arith.mulf %306, %310 : vector<2x8x8xf32>
    %312 = arith.truncf %311 : vector<2x8x8xf32> to vector<2x8x8xbf16>
    %313 = arith.truncf %298 : vector<2x8x16xf32> to vector<2x8x16xbf16>
    "tpu.trace_start"() <{level = 10 : i32, message = "hqk,hkd->hqd"}> : () -> ()
    %cst_178 = arith.constant dense<0.000000e+00> : vector<2x8x16xf32>
    %314 = tpu.matmul %312, %313, %cst_178 {dimension_numbers = #tpu.dot_dimension_numbers<[2], [1], [1], [2], [0, 0, 0, 1, 1, 2], [0], [0]>} : vector<2x8x8xbf16>, vector<2x8x16xbf16>, vector<2x8x16xf32> -> vector<2x8x16xf32>
    "tpu.trace_stop"() : () -> ()
    %315 = arith.truncf %314 : vector<2x8x16xf32> to vector<2x8x16xbf16>
    "tpu.trace_start"() <{level = 10 : i32, message = "hqd,hdm->hqm"}> : () -> ()
    %cst_179 = arith.constant dense<0.000000e+00> : vector<2x8x32xf32>
    %316 = tpu.matmul %315, %281, %cst_179 {dimension_numbers = #tpu.dot_dimension_numbers<[2], [1], [1], [2], [0, 0, 0, 1, 1, 2], [0], [0]>} : vector<2x8x16xbf16>, vector<2x16x32xbf16>, vector<2x8x32xf32> -> vector<2x8x32xf32>
    "tpu.trace_stop"() : () -> ()
    %cst_180 = arith.constant dense<0.000000e+00> : vector<8x32xf32>
    %317 = vector.multi_reduction <add>, %316, %cst_180 [0] : vector<2x8x32xf32> to vector<8x32xf32>
    %318 = arith.addf %317, %273 : vector<8x32xf32>
    %cst_181 = arith.constant dense<0.000000e+00> : vector<8xf32>
    %319 = vector.multi_reduction <add>, %318, %cst_181 [1] : vector<8x32xf32> to vector<8xf32>
    %320 = vector.shape_cast %319 : vector<8xf32> to vector<8x1xf32>
    %cst_182 = arith.constant 3.200000e+01 : f32
    %321 = vector.broadcast %cst_182 : f32 to vector<8x1xf32>
    %322 = arith.divf %320, %321 : vector<8x1xf32>
    %323 = vector.broadcast %322 : vector<8x1xf32> to vector<8x32xf32>
    %324 = arith.subf %318, %323 : vector<8x32xf32>
    %325 = arith.mulf %324, %324 : vector<8x32xf32>
    %cst_183 = arith.constant dense<0.000000e+00> : vector<8xf32>
    %326 = vector.multi_reduction <add>, %325, %cst_183 [1] : vector<8x32xf32> to vector<8xf32>
    %327 = vector.shape_cast %326 : vector<8xf32> to vector<8x1xf32>
    %cst_184 = arith.constant 3.200000e+01 : f32
    %328 = vector.broadcast %cst_184 : f32 to vector<8x1xf32>
    %329 = arith.divf %327, %328 : vector<8x1xf32>
    %330 = vector.broadcast %322 : vector<8x1xf32> to vector<8x32xf32>
    %331 = arith.subf %318, %330 : vector<8x32xf32>
    %cst_185 = arith.constant 9.99999997E-7 : f32
    %332 = vector.broadcast %cst_185 : f32 to vector<8x1xf32>
    %333 = arith.addf %329, %332 : vector<8x1xf32>
    %334 = math.rsqrt %333 : vector<8x1xf32>
    %335 = vector.broadcast %334 : vector<8x1xf32> to vector<8x32xf32>
    %336 = arith.mulf %331, %335 : vector<8x32xf32>
    %337 = vector.broadcast %283 : vector<1x32xf32> to vector<8x32xf32>
    %338 = arith.mulf %336, %337 : vector<8x32xf32>
    %339 = vector.broadcast %285 : vector<1x32xf32> to vector<8x32xf32>
    %340 = arith.addf %338, %339 : vector<8x32xf32>
    %c1_186 = arith.constant 1 : index
    %c0_187 = arith.constant 0 : index
    %c0_188 = arith.constant 0 : index
    %341 = vector.load %arg17[%c1_186, %c0_187, %c0_188] : memref<2x32x64xbf16, #tpu.memory_space<vmem>>, vector<1x32x64xbf16>
    %342 = vector.shape_cast %341 : vector<1x32x64xbf16> to vector<32x64xbf16>
    %c1_189 = arith.constant 1 : index
    %c0_190 = arith.constant 0 : index
    %c0_191 = arith.constant 0 : index
    %343 = vector.load %arg18[%c1_189, %c0_190, %c0_191] : memref<2x1x64xf32, #tpu.memory_space<vmem>>, vector<1x1x64xf32>
    %344 = vector.shape_cast %343 : vector<1x1x64xf32> to vector<1x64xf32>
    %c1_192 = arith.constant 1 : index
    %c0_193 = arith.constant 0 : index
    %c0_194 = arith.constant 0 : index
    %345 = vector.load %arg19[%c1_192, %c0_193, %c0_194] : memref<2x64x32xbf16, #tpu.memory_space<vmem>>, vector<1x64x32xbf16>
    %346 = vector.shape_cast %345 : vector<1x64x32xbf16> to vector<64x32xbf16>
    %c1_195 = arith.constant 1 : index
    %c0_196 = arith.constant 0 : index
    %c0_197 = arith.constant 0 : index
    %347 = vector.load %arg20[%c1_195, %c0_196, %c0_197] : memref<2x1x32xf32, #tpu.memory_space<vmem>>, vector<1x1x32xf32>
    %348 = vector.shape_cast %347 : vector<1x1x32xf32> to vector<1x32xf32>
    %c1_198 = arith.constant 1 : index
    %c0_199 = arith.constant 0 : index
    %c0_200 = arith.constant 0 : index
    %349 = vector.load %arg21[%c1_198, %c0_199, %c0_200] : memref<2x1x32xf32, #tpu.memory_space<vmem>>, vector<1x1x32xf32>
    %350 = vector.shape_cast %349 : vector<1x1x32xf32> to vector<1x32xf32>
    %c1_201 = arith.constant 1 : index
    %c0_202 = arith.constant 0 : index
    %c0_203 = arith.constant 0 : index
    %351 = vector.load %arg22[%c1_201, %c0_202, %c0_203] : memref<2x1x32xf32, #tpu.memory_space<vmem>>, vector<1x1x32xf32>
    %352 = vector.shape_cast %351 : vector<1x1x32xf32> to vector<1x32xf32>
    %353 = arith.truncf %340 : vector<8x32xf32> to vector<8x32xbf16>
    %cst_204 = arith.constant dense<0.000000e+00> : vector<8x64xf32>
    %354 = tpu.matmul %353, %342, %cst_204 {dimension_numbers = #tpu.dot_dimension_numbers<[1], [0], [0], [1], [0, 0, 1, 1], [], []>} : vector<8x32xbf16>, vector<32x64xbf16>, vector<8x64xf32> -> vector<8x64xf32>
    %355 = vector.broadcast %344 : vector<1x64xf32> to vector<8x64xf32>
    %356 = arith.addf %354, %355 : vector<8x64xf32>
    %cst_205 = arith.constant 0.000000e+00 : f32
    %357 = vector.broadcast %cst_205 : f32 to vector<8x64xf32>
    %358 = arith.maximumf %356, %357 : vector<8x64xf32>
    %359 = arith.truncf %358 : vector<8x64xf32> to vector<8x64xbf16>
    %cst_206 = arith.constant dense<0.000000e+00> : vector<8x32xf32>
    %360 = tpu.matmul %359, %346, %cst_206 {dimension_numbers = #tpu.dot_dimension_numbers<[1], [0], [0], [1], [0, 0, 1, 1], [], []>} : vector<8x64xbf16>, vector<64x32xbf16>, vector<8x32xf32> -> vector<8x32xf32>
    %361 = vector.broadcast %348 : vector<1x32xf32> to vector<8x32xf32>
    %362 = arith.addf %360, %361 : vector<8x32xf32>
    %363 = arith.addf %362, %340 : vector<8x32xf32>
    %cst_207 = arith.constant dense<0.000000e+00> : vector<8xf32>
    %364 = vector.multi_reduction <add>, %363, %cst_207 [1] : vector<8x32xf32> to vector<8xf32>
    %365 = vector.shape_cast %364 : vector<8xf32> to vector<8x1xf32>
    %cst_208 = arith.constant 3.200000e+01 : f32
    %366 = vector.broadcast %cst_208 : f32 to vector<8x1xf32>
    %367 = arith.divf %365, %366 : vector<8x1xf32>
    %368 = vector.broadcast %367 : vector<8x1xf32> to vector<8x32xf32>
    %369 = arith.subf %363, %368 : vector<8x32xf32>
    %370 = arith.mulf %369, %369 : vector<8x32xf32>
    %cst_209 = arith.constant dense<0.000000e+00> : vector<8xf32>
    %371 = vector.multi_reduction <add>, %370, %cst_209 [1] : vector<8x32xf32> to vector<8xf32>
    %372 = vector.shape_cast %371 : vector<8xf32> to vector<8x1xf32>
    %cst_210 = arith.constant 3.200000e+01 : f32
    %373 = vector.broadcast %cst_210 : f32 to vector<8x1xf32>
    %374 = arith.divf %372, %373 : vector<8x1xf32>
    %375 = vector.broadcast %367 : vector<8x1xf32> to vector<8x32xf32>
    %376 = arith.subf %363, %375 : vector<8x32xf32>
    %cst_211 = arith.constant 9.99999997E-7 : f32
    %377 = vector.broadcast %cst_211 : f32 to vector<8x1xf32>
    %378 = arith.addf %374, %377 : vector<8x1xf32>
    %379 = math.rsqrt %378 : vector<8x1xf32>
    %380 = vector.broadcast %379 : vector<8x1xf32> to vector<8x32xf32>
    %381 = arith.mulf %376, %380 : vector<8x32xf32>
    %382 = vector.broadcast %350 : vector<1x32xf32> to vector<8x32xf32>
    %383 = arith.mulf %381, %382 : vector<8x32xf32>
    %384 = vector.broadcast %352 : vector<1x32xf32> to vector<8x32xf32>
    %385 = arith.addf %383, %384 : vector<8x32xf32>
    %c0_212 = arith.constant 0 : index
    %c0_213 = arith.constant 0 : index
    %c0_214 = arith.constant 0 : index
    %386 = vector.load %arg23[%c0_212, %c0_213, %c0_214] : memref<1x8x32xf32, #tpu.memory_space<vmem>>, vector<1x8x32xf32>
    %387 = vector.shape_cast %386 : vector<1x8x32xf32> to vector<8x32xf32>
    %388 = vector.shape_cast %385 : vector<8x32xf32> to vector<1x8x32xf32>
    tpu.vector_store %arg23[%c0_212, %c0_213, %c0_214], %388 {strides = array<i32>} : memref<1x8x32xf32, #tpu.memory_space<vmem>>, vector<1x8x32xf32>,
    return
  }
  func.func @transform_0(%arg0: i32) -> (i32, i32, i32) {
    %c0_i32 = arith.constant 0 : i32
    %c0_i32_0 = arith.constant 0 : i32
    %c0_i32_1 = arith.constant 0 : i32
    return %arg0, %c0_i32, %c0_i32_0 : i32, i32, i32
  }
  func.func @transform_1(%arg0: i32) -> (i32, i32, i32) {
    %c0_i32 = arith.constant 0 : i32
    %c0_i32_0 = arith.constant 0 : i32
    %c0_i32_1 = arith.constant 0 : i32
    return %arg0, %c0_i32, %c0_i32_0 : i32, i32, i32
  }
  func.func @transform_2(%arg0: i32) -> (i32, i32) {
    %c0_i32 = arith.constant 0 : i32
    %c0_i32_0 = arith.constant 0 : i32
    %c0_i32_1 = arith.constant 0 : i32
    return %c0_i32, %c0_i32_0 : i32, i32
  }
  func.func @transform_3(%arg0: i32) -> (i32, i32) {
    %c0_i32 = arith.constant 0 : i32
    %c0_i32_0 = arith.constant 0 : i32
    %c0_i32_1 = arith.constant 0 : i32
    return %c0_i32, %c0_i32_0 : i32, i32
  }
  func.func @transform_4(%arg0: i32) -> (i32, i32, i32, i32) {
    %c0_i32 = arith.constant 0 : i32
    %c0_i32_0 = arith.constant 0 : i32
    %c0_i32_1 = arith.constant 0 : i32
    %c0_i32_2 = arith.constant 0 : i32
    %c0_i32_3 = arith.constant 0 : i32
    return %c0_i32, %c0_i32_0, %c0_i32_1, %c0_i32_2 : i32, i32, i32, i32
  }
  func.func @transform_5(%arg0: i32) -> (i32, i32, i32, i32) {
    %c0_i32 = arith.constant 0 : i32
    %c0_i32_0 = arith.constant 0 : i32
    %c0_i32_1 = arith.constant 0 : i32
    %c0_i32_2 = arith.constant 0 : i32
    %c0_i32_3 = arith.constant 0 : i32
    return %c0_i32, %c0_i32_0, %c0_i32_1, %c0_i32_2 : i32, i32, i32, i32
  }
  func.func @transform_6(%arg0: i32) -> (i32, i32, i32, i32) {
    %c0_i32 = arith.constant 0 : i32
    %c0_i32_0 = arith.constant 0 : i32
    %c0_i32_1 = arith.constant 0 : i32
    %c0_i32_2 = arith.constant 0 : i32
    %c0_i32_3 = arith.constant 0 : i32
    return %c0_i32, %c0_i32_0, %c0_i32_1, %c0_i32_2 : i32, i32, i32, i32
  }
  func.func @transform_7(%arg0: i32) -> (i32, i32, i32, i32) {
    %c0_i32 = arith.constant 0 : i32
    %c0_i32_0 = arith.constant 0 : i32
    %c0_i32_1 = arith.constant 0 : i32
    %c0_i32_2 = arith.constant 0 : i32
    %c0_i32_3 = arith.constant 0 : i32
    return %c0_i32, %c0_i32_0, %c0_i32_1, %c0_i32_2 : i32, i32, i32, i32
  }
  func.func @transform_8(%arg0: i32) -> (i32, i32, i32) {
    %c0_i32 = arith.constant 0 : i32
    %c0_i32_0 = arith.constant 0 : i32
    %c0_i32_1 = arith.constant 0 : i32
    %c0_i32_2 = arith.constant 0 : i32
    return %c0_i32, %c0_i32_0, %c0_i32_1 : i32, i32, i32
  }
  func.func @transform_9(%arg0: i32) -> (i32, i32, i32) {
    %c0_i32 = arith.constant 0 : i32
    %c0_i32_0 = arith.constant 0 : i32
    %c0_i32_1 = arith.constant 0 : i32
    %c0_i32_2 = arith.constant 0 : i32
    return %c0_i32, %c0_i32_0, %c0_i32_1 : i32, i32, i32
  }
  func.func @transform_10(%arg0: i32) -> (i32, i32, i32, i32) {
    %c0_i32 = arith.constant 0 : i32
    %c0_i32_0 = arith.constant 0 : i32
    %c0_i32_1 = arith.constant 0 : i32
    %c0_i32_2 = arith.constant 0 : i32
    %c0_i32_3 = arith.constant 0 : i32
    return %c0_i32, %c0_i32_0, %c0_i32_1, %c0_i32_2 : i32, i32, i32, i32
  }
  func.func @transform_11(%arg0: i32) -> (i32, i32, i32, i32) {
    %c0_i32 = arith.constant 0 : i32
    %c0_i32_0 = arith.constant 0 : i32
    %c0_i32_1 = arith.constant 0 : i32
    %c0_i32_2 = arith.constant 0 : i32
    %c0_i32_3 = arith.constant 0 : i32
    return %c0_i32, %c0_i32_0, %c0_i32_1, %c0_i32_2 : i32, i32, i32, i32
  }
  func.func @transform_12(%arg0: i32) -> (i32, i32, i32, i32) {
    %c0_i32 = arith.constant 0 : i32
    %c0_i32_0 = arith.constant 0 : i32
    %c0_i32_1 = arith.constant 0 : i32
    %c0_i32_2 = arith.constant 0 : i32
    %c0_i32_3 = arith.constant 0 : i32
    return %c0_i32, %c0_i32_0, %c0_i32_1, %c0_i32_2 : i32, i32, i32, i32
  }
  func.func @transform_13(%arg0: i32) -> (i32, i32, i32, i32) {
    %c0_i32 = arith.constant 0 : i32
    %c0_i32_0 = arith.constant 0 : i32
    %c0_i32_1 = arith.constant 0 : i32
    %c0_i32_2 = arith.constant 0 : i32
    %c0_i32_3 = arith.constant 0 : i32
    return %c0_i32, %c0_i32_0, %c0_i32_1, %c0_i32_2 : i32, i32, i32, i32
  }
  func.func @transform_14(%arg0: i32) -> (i32, i32, i32) {
    %c0_i32 = arith.constant 0 : i32
    %c0_i32_0 = arith.constant 0 : i32
    %c0_i32_1 = arith.constant 0 : i32
    %c0_i32_2 = arith.constant 0 : i32
    return %c0_i32, %c0_i32_0, %c0_i32_1 : i32, i32, i32
  }
  func.func @transform_15(%arg0: i32) -> (i32, i32, i32) {
    %c0_i32 = arith.constant 0 : i32
    %c0_i32_0 = arith.constant 0 : i32
    %c0_i32_1 = arith.constant 0 : i32
    %c0_i32_2 = arith.constant 0 : i32
    return %c0_i32, %c0_i32_0, %c0_i32_1 : i32, i32, i32
  }
  func.func @transform_16(%arg0: i32) -> (i32, i32, i32) {
    %c0_i32 = arith.constant 0 : i32
    %c0_i32_0 = arith.constant 0 : i32
    %c0_i32_1 = arith.constant 0 : i32
    %c0_i32_2 = arith.constant 0 : i32
    return %c0_i32, %c0_i32_0, %c0_i32_1 : i32, i32, i32
  }
  func.func @transform_17(%arg0: i32) -> (i32, i32, i32) {
    %c0_i32 = arith.constant 0 : i32
    %c0_i32_0 = arith.constant 0 : i32
    %c0_i32_1 = arith.constant 0 : i32
    %c0_i32_2 = arith.constant 0 : i32
    return %c0_i32, %c0_i32_0, %c0_i32_1 : i32, i32, i32
  }
  func.func @transform_18(%arg0: i32) -> (i32, i32, i32) {
    %c0_i32 = arith.constant 0 : i32
    %c0_i32_0 = arith.constant 0 : i32
    %c0_i32_1 = arith.constant 0 : i32
    %c0_i32_2 = arith.constant 0 : i32
    return %c0_i32, %c0_i32_0, %c0_i32_1 : i32, i32, i32
  }
  func.func @transform_19(%arg0: i32) -> (i32, i32, i32) {
    %c0_i32 = arith.constant 0 : i32
    %c0_i32_0 = arith.constant 0 : i32
    %c0_i32_1 = arith.constant 0 : i32
    %c0_i32_2 = arith.constant 0 : i32
    return %c0_i32, %c0_i32_0, %c0_i32_1 : i32, i32, i32
  }
  func.func @transform_20(%arg0: i32) -> (i32, i32, i32) {
    %c0_i32 = arith.constant 0 : i32
    %c0_i32_0 = arith.constant 0 : i32
    %c0_i32_1 = arith.constant 0 : i32
    %c0_i32_2 = arith.constant 0 : i32
    return %c0_i32, %c0_i32_0, %c0_i32_1 : i32, i32, i32
  }
  func.func @transform_21(%arg0: i32) -> (i32, i32, i32) {
    %c0_i32 = arith.constant 0 : i32
    %c0_i32_0 = arith.constant 0 : i32
    %c0_i32_1 = arith.constant 0 : i32
    %c0_i32_2 = arith.constant 0 : i32
    return %c0_i32, %c0_i32_0, %c0_i32_1 : i32, i32, i32
  }
  func.func @transform_22(%arg0: i32) -> (i32, i32, i32) {
    %c0_i32 = arith.constant 0 : i32
    %c0_i32_0 = arith.constant 0 : i32
    %c0_i32_1 = arith.constant 0 : i32
    return %arg0, %c0_i32, %c0_i32_0 : i32, i32, i32
  }
}

</mosaic_0001>

<llo_original>
// kernel: decoder_forward.1
$region0: #{decoder_forward.1}
  #allocation0 [shape = 'u32[]', space=smem, size = 0x4, offset = 0x4, fixed_abs, tag = 'smem constant byte address 0x4 - core index']
  #allocation1 [shape = 'u32[144,128]{1,0:T(1,128)}', space=vmem, size = 0x12000, scoped, tag = 'internal scratch']
  %s0 = inlined_call_operand.vmem [shape: f32[2,8,32], index: 0, kind: input, shape index: {}]
  %s1 = inlined_call_operand.vmem [shape: f32[2,8,32], index: 1, kind: input, shape index: {}]
  %s2 = inlined_call_operand.vmem [shape: f32[1,32], index: 2, kind: input, shape index: {}]
  %s3 = inlined_call_operand.vmem [shape: f32[1,32], index: 3, kind: input, shape index: {}]
  %s4 = inlined_call_operand.vmem [shape: bf16[2,2,32,16], index: 4, kind: input, shape index: {}]
  %s5 = inlined_call_operand.vmem [shape: bf16[2,2,32,16], index: 5, kind: input, shape index: {}]
  %s6 = inlined_call_operand.vmem [shape: bf16[2,2,32,16], index: 6, kind: input, shape index: {}]
  %s7 = inlined_call_operand.vmem [shape: bf16[2,2,16,32], index: 7, kind: input, shape index: {}]
  %s8 = inlined_call_operand.vmem [shape: f32[2,1,32], index: 8, kind: input, shape index: {}]
  %s9 = inlined_call_operand.vmem [shape: f32[2,1,32], index: 9, kind: input, shape index: {}]
  %s10 = inlined_call_operand.vmem [shape: bf16[2,2,32,16], index: 10, kind: input, shape index: {}]
  %s11 = inlined_call_operand.vmem [shape: bf16[2,2,32,16], index: 11, kind: input, shape index: {}]
  %s12 = inlined_call_operand.vmem [shape: bf16[2,2,32,16], index: 12, kind: input, shape index: {}]
  %s13 = inlined_call_operand.vmem [shape: bf16[2,2,16,32], index: 13, kind: input, shape index: {}]
  %s14 = inlined_call_operand.vmem [shape: f32[2,1,32], index: 14, kind: input, shape index: {}]
  %s15 = inlined_call_operand.vmem [shape: f32[2,1,32], index: 15, kind: input, shape index: {}]
  %s16 = inlined_call_operand.vmem [shape: bf16[2,32,64], index: 16, kind: input, shape index: {}]
  %s17 = inlined_call_operand.vmem [shape: f32[2,1,64], index: 17, kind: input, shape index: {}]
  %s18 = inlined_call_operand.vmem [shape: bf16[2,64,32], index: 18, kind: input, shape index: {}]
  %s19 = inlined_call_operand.vmem [shape: f32[2,1,32], index: 19, kind: input, shape index: {}]
  %s20 = inlined_call_operand.vmem [shape: f32[2,1,32], index: 20, kind: input, shape index: {}]
  %s21 = inlined_call_operand.vmem [shape: f32[2,1,32], index: 21, kind: input, shape index: {}]
  %s22 = inlined_call_operand.hbm [shape: f32[2,8,32], index: 22, kind: output, shape index: {}]
  %s23 = sld [smem:[#allocation0]]
  $region121: #{decoder_forward.1} parent=0
    _
  %s25 = ssub.s32 1, %s23
  %s26 = scalar_select 0, %s25, %s23
  $region1: #{decoder_forward.1} parent=0
    #allocation2 [shape = 'u8[8192]{0}', space=vmem, size = 0x2000, scoped, tag = 'output window, operand 0']
    #allocation3 [shape = 's32[2]{0}', space=sflag, size = 0x8, scoped, tag = 'scoped memory for decoder_forward.1']
    %27 = vsyncpa [#allocation3], 0
    %s28 = scalar_lea.sflag [#allocation3], 1
    %29 = vsyncpa %s28, 0
    loop: start=0, step=1, limit=4
    $region2: #{decoder_forward.1} parent=1 // loop_pre_header
      _
    $region3: #{decoder_forward.1} parent=1 // loop_header
      %s31 = sphi 0, %s35
      %p32 = scmp.ge.s32.totalorder %s31, 4
      %s41 = sphi 0, %s43
      %s44 = sphi 0, %s41
      %s45 = sphi 0, %s44
      %s61 = sphi 0, %s45
      %s67 = sphi 0, %s69
      %s70 = sphi 0, %s67
      %s71 = sphi 0, %s70
      %s87 = sphi 0, %s71
      %s91 = sphi 0, %s91
      %s93 = sphi 0, %s91
      %s94 = sphi 0, %s93
      %s108 = sphi 0, %s94
      %s112 = sphi 0, %s112
      %s114 = sphi 0, %s112
      %s115 = sphi 0, %s114
      %s129 = sphi 0, %s115
      %s133 = sphi 0, %s133
      %s135 = sphi 0, %s133
      %s136 = sphi 0, %s135
      %s150 = sphi 0, %s136
      %s154 = sphi 0, %s154
      %s156 = sphi 0, %s154
      %s157 = sphi 0, %s156
      %s171 = sphi 0, %s157
      %s175 = sphi 0, %s175
      %s177 = sphi 0, %s175
      %s178 = sphi 0, %s177
      %s192 = sphi 0, %s178
      %s196 = sphi 0, %s196
      %s198 = sphi 0, %s196
      %s199 = sphi 0, %s198
      %s213 = sphi 0, %s199
      %s217 = sphi 0, %s217
      %s219 = sphi 0, %s217
      %s220 = sphi 0, %s219
      %s234 = sphi 0, %s220
      %s238 = sphi 0, %s238
      %s240 = sphi 0, %s238
      %s241 = sphi 0, %s240
      %s255 = sphi 0, %s241
      %s259 = sphi 0, %s259
      %s261 = sphi 0, %s259
      %s262 = sphi 0, %s261
      %s276 = sphi 0, %s262
      %s280 = sphi 0, %s280
      %s282 = sphi 0, %s280
      %s283 = sphi 0, %s282
      %s297 = sphi 0, %s283
      %s301 = sphi 0, %s301
      %s303 = sphi 0, %s301
      %s304 = sphi 0, %s303
      %s318 = sphi 0, %s304
      %s322 = sphi 0, %s322
      %s324 = sphi 0, %s322
      %s325 = sphi 0, %s324
      %s339 = sphi 0, %s325
      %s343 = sphi 0, %s343
      %s345 = sphi 0, %s343
      %s346 = sphi 0, %s345
      %s360 = sphi 0, %s346
      %s364 = sphi 0, %s364
      %s366 = sphi 0, %s364
      %s367 = sphi 0, %s366
      %s381 = sphi 0, %s367
      %s385 = sphi 0, %s385
      %s387 = sphi 0, %s385
      %s388 = sphi 0, %s387
      %s402 = sphi 0, %s388
      %s406 = sphi 0, %s406
      %s408 = sphi 0, %s406
      %s409 = sphi 0, %s408
      %s423 = sphi 0, %s409
      %s427 = sphi 0, %s427
      %s429 = sphi 0, %s427
      %s430 = sphi 0, %s429
      %s444 = sphi 0, %s430
      %s448 = sphi 0, %s448
      %s450 = sphi 0, %s448
      %s451 = sphi 0, %s450
      %s465 = sphi 0, %s451
      %s469 = sphi 0, %s469
      %s471 = sphi 0, %s469
      %s472 = sphi 0, %s471
      %s486 = sphi 0, %s472
      %s490 = sphi 0, %s490
      %s492 = sphi 0, %s490
      %s493 = sphi 0, %s492
      %s507 = sphi 0, %s493
      %s513 = sphi 0, %s515
      %s516 = sphi 0, %s513
      %s517 = sphi 0, %s516
      %s533 = sphi 0, %s517
    $region4: #{decoder_forward.1} parent=1 // loop_header_branch
      %34 = sbr.rel (%p32) target = $region8
    $region5: #{decoder_forward.1} parent=1 // loop_body
      %s36 = ssub.s32 %s31, 1
      %s37 = ssub.s32 %s31, 2
      %s38 = sadd.s32 %s31, 1
      %s39 = ssub.s32 %s31, %s38
      %p40 = scmp.eq.s32.totalorder %s39, 0
      %s42 = sadd.s32 %s41, 1
      %s43 = scalar_select %p40, %s41, %s42
      %p46 = pneg %p40
      %p47 = scmp.eq.s32.totalorder %s31, 1
      %p48 = por %p46, %p47
      %p49 = scmp.ne.s32.totalorder %s41, %s44
      %p50 = scmp.eq.s32.totalorder %s31, 0
      %p51 = por %p49, %p50
      %p52 = scmp.ne.s32.totalorder %s41, %s44
      %p53 = scmp.eq.s32.totalorder %s36, 1
      %p54 = por %p52, %p53
      %p55 = scmp.ne.s32.totalorder %s44, %s45
      %p56 = scmp.eq.s32.totalorder %s36, 0
      %p57 = por %p55, %p56
      %p58 = scmp.ne.s32.totalorder %s44, %s45
      %p59 = scmp.eq.s32.totalorder %s37, 1
      %p60 = por %p58, %p59
      %p62 = scmp.ne.s32.totalorder %s45, %s61
      %p63 = scmp.eq.s32.totalorder %s37, 0
      %p64 = por %p62, %p63
      %s65 = ssub.s32 %s31, %s38
      %p66 = scmp.eq.s32.totalorder %s65, 0
      %s68 = sadd.s32 %s67, 1
      %s69 = scalar_select %p66, %s67, %s68
      %p72 = pneg %p66
      %p73 = scmp.eq.s32.totalorder %s31, 1
      %p74 = por %p72, %p73
      %p75 = scmp.ne.s32.totalorder %s67, %s70
      %p76 = scmp.eq.s32.totalorder %s31, 0
      %p77 = por %p75, %p76
      %p78 = scmp.ne.s32.totalorder %s67, %s70
      %p79 = scmp.eq.s32.totalorder %s36, 1
      %p80 = por %p78, %p79
      %p81 = scmp.ne.s32.totalorder %s70, %s71
      %p82 = scmp.eq.s32.totalorder %s36, 0
      %p83 = por %p81, %p82
      %p84 = scmp.ne.s32.totalorder %s70, %s71
      %p85 = scmp.eq.s32.totalorder %s37, 1
      %p86 = por %p84, %p85
      %p88 = scmp.ne.s32.totalorder %s71, %s87
      %p89 = scmp.eq.s32.totalorder %s37, 0
      %p90 = por %p88, %p89
      %s92 = sadd.s32 %s91, 1
      %p95 = scmp.eq.s32.totalorder %s31, 1
      %p96 = scmp.ne.s32.totalorder %s91, %s93
      %p97 = scmp.eq.s32.totalorder %s31, 0
      %p98 = por %p96, %p97
      %p99 = scmp.ne.s32.totalorder %s91, %s93
      %p100 = scmp.eq.s32.totalorder %s36, 1
      %p101 = por %p99, %p100
      %p102 = scmp.ne.s32.totalorder %s93, %s94
      %p103 = scmp.eq.s32.totalorder %s36, 0
      %p104 = por %p102, %p103
      %p105 = scmp.ne.s32.totalorder %s93, %s94
      %p106 = scmp.eq.s32.totalorder %s37, 1
      %p107 = por %p105, %p106
      %p109 = scmp.ne.s32.totalorder %s94, %s108
      %p110 = scmp.eq.s32.totalorder %s37, 0
      %p111 = por %p109, %p110
      %s113 = sadd.s32 %s112, 1
      %p116 = scmp.eq.s32.totalorder %s31, 1
      %p117 = scmp.ne.s32.totalorder %s112, %s114
      %p118 = scmp.eq.s32.totalorder %s31, 0
      %p119 = por %p117, %p118
      %p120 = scmp.ne.s32.totalorder %s112, %s114
      %p121 = scmp.eq.s32.totalorder %s36, 1
      %p122 = por %p120, %p121
      %p123 = scmp.ne.s32.totalorder %s114, %s115
      %p124 = scmp.eq.s32.totalorder %s36, 0
      %p125 = por %p123, %p124
      %p126 = scmp.ne.s32.totalorder %s114, %s115
      %p127 = scmp.eq.s32.totalorder %s37, 1
      %p128 = por %p126, %p127
      %p130 = scmp.ne.s32.totalorder %s115, %s129
      %p131 = scmp.eq.s32.totalorder %s37, 0
      %p132 = por %p130, %p131
      %s134 = sadd.s32 %s133, 1
      %p137 = scmp.eq.s32.totalorder %s31, 1
      %p138 = scmp.ne.s32.totalorder %s133, %s135
      %p139 = scmp.eq.s32.totalorder %s31, 0
      %p140 = por %p138, %p139
      %p141 = scmp.ne.s32.totalorder %s133, %s135
      %p142 = scmp.eq.s32.totalorder %s36, 1
      %p143 = por %p141, %p142
      %p144 = scmp.ne.s32.totalorder %s135, %s136
      %p145 = scmp.eq.s32.totalorder %s36, 0
      %p146 = por %p144, %p145
      %p147 = scmp.ne.s32.totalorder %s135, %s136
      %p148 = scmp.eq.s32.totalorder %s37, 1
      %p149 = por %p147, %p148
      %p151 = scmp.ne.s32.totalorder %s136, %s150
      %p152 = scmp.eq.s32.totalorder %s37, 0
      %p153 = por %p151, %p152
      %s155 = sadd.s32 %s154, 1
      %p158 = scmp.eq.s32.totalorder %s31, 1
      %p159 = scmp.ne.s32.totalorder %s154, %s156
      %p160 = scmp.eq.s32.totalorder %s31, 0
      %p161 = por %p159, %p160
      %p162 = scmp.ne.s32.totalorder %s154, %s156
      %p163 = scmp.eq.s32.totalorder %s36, 1
      %p164 = por %p162, %p163
      %p165 = scmp.ne.s32.totalorder %s156, %s157
      %p166 = scmp.eq.s32.totalorder %s36, 0
      %p167 = por %p165, %p166
      %p168 = scmp.ne.s32.totalorder %s156, %s157
      %p169 = scmp.eq.s32.totalorder %s37, 1
      %p170 = por %p168, %p169
      %p172 = scmp.ne.s32.totalorder %s157, %s171
      %p173 = scmp.eq.s32.totalorder %s37, 0
      %p174 = por %p172, %p173
      %s176 = sadd.s32 %s175, 1
      %p179 = scmp.eq.s32.totalorder %s31, 1
      %p180 = scmp.ne.s32.totalorder %s175, %s177
      %p181 = scmp.eq.s32.totalorder %s31, 0
      %p182 = por %p180, %p181
      %p183 = scmp.ne.s32.totalorder %s175, %s177
      %p184 = scmp.eq.s32.totalorder %s36, 1
      %p185 = por %p183, %p184
      %p186 = scmp.ne.s32.totalorder %s177, %s178
      %p187 = scmp.eq.s32.totalorder %s36, 0
      %p188 = por %p186, %p187
      %p189 = scmp.ne.s32.totalorder %s177, %s178
      %p190 = scmp.eq.s32.totalorder %s37, 1
      %p191 = por %p189, %p190
      %p193 = scmp.ne.s32.totalorder %s178, %s192
      %p194 = scmp.eq.s32.totalorder %s37, 0
      %p195 = por %p193, %p194
      %s197 = sadd.s32 %s196, 1
      %p200 = scmp.eq.s32.totalorder %s31, 1
      %p201 = scmp.ne.s32.totalorder %s196, %s198
      %p202 = scmp.eq.s32.totalorder %s31, 0
      %p203 = por %p201, %p202
      %p204 = scmp.ne.s32.totalorder %s196, %s198
      %p205 = scmp.eq.s32.totalorder %s36, 1
      %p206 = por %p204, %p205
      %p207 = scmp.ne.s32.totalorder %s198, %s199
      %p208 = scmp.eq.s32.totalorder %s36, 0
      %p209 = por %p207, %p208
      %p210 = scmp.ne.s32.totalorder %s198, %s199
      %p211 = scmp.eq.s32.totalorder %s37, 1
      %p212 = por %p210, %p211
      %p214 = scmp.ne.s32.totalorder %s199, %s213
      %p215 = scmp.eq.s32.totalorder %s37, 0
      %p216 = por %p214, %p215
      %s218 = sadd.s32 %s217, 1
      %p221 = scmp.eq.s32.totalorder %s31, 1
      %p222 = scmp.ne.s32.totalorder %s217, %s219
      %p223 = scmp.eq.s32.totalorder %s31, 0
      %p224 = por %p222, %p223
      %p225 = scmp.ne.s32.totalorder %s217, %s219
      %p226 = scmp.eq.s32.totalorder %s36, 1
      %p227 = por %p225, %p226
      %p228 = scmp.ne.s32.totalorder %s219, %s220
      %p229 = scmp.eq.s32.totalorder %s36, 0
      %p230 = por %p228, %p229
      %p231 = scmp.ne.s32.totalorder %s219, %s220
      %p232 = scmp.eq.s32.totalorder %s37, 1
      %p233 = por %p231, %p232
      %p235 = scmp.ne.s32.totalorder %s220, %s234
      %p236 = scmp.eq.s32.totalorder %s37, 0
      %p237 = por %p235, %p236
      %s239 = sadd.s32 %s238, 1
      %p242 = scmp.eq.s32.totalorder %s31, 1
      %p243 = scmp.ne.s32.totalorder %s238, %s240
      %p244 = scmp.eq.s32.totalorder %s31, 0
      %p245 = por %p243, %p244
      %p246 = scmp.ne.s32.totalorder %s238, %s240
      %p247 = scmp.eq.s32.totalorder %s36, 1
      %p248 = por %p246, %p247
      %p249 = scmp.ne.s32.totalorder %s240, %s241
      %p250 = scmp.eq.s32.totalorder %s36, 0
      %p251 = por %p249, %p250
      %p252 = scmp.ne.s32.totalorder %s240, %s241
      %p253 = scmp.eq.s32.totalorder %s37, 1
      %p254 = por %p252, %p253
      %p256 = scmp.ne.s32.totalorder %s241, %s255
      %p257 = scmp.eq.s32.totalorder %s37, 0
      %p258 = por %p256, %p257
      %s260 = sadd.s32 %s259, 1
      %p263 = scmp.eq.s32.totalorder %s31, 1
      %p264 = scmp.ne.s32.totalorder %s259, %s261
      %p265 = scmp.eq.s32.totalorder %s31, 0
      %p266 = por %p264, %p265
      %p267 = scmp.ne.s32.totalorder %s259, %s261
      %p268 = scmp.eq.s32.totalorder %s36, 1
      %p269 = por %p267, %p268
      %p270 = scmp.ne.s32.totalorder %s261, %s262
      %p271 = scmp.eq.s32.totalorder %s36, 0
      %p272 = por %p270, %p271
      %p273 = scmp.ne.s32.totalorder %s261, %s262
      %p274 = scmp.eq.s32.totalorder %s37, 1
      %p275 = por %p273, %p274
      %p277 = scmp.ne.s32.totalorder %s262, %s276
      %p278 = scmp.eq.s32.totalorder %s37, 0
      %p279 = por %p277, %p278
      %s281 = sadd.s32 %s280, 1
      %p284 = scmp.eq.s32.totalorder %s31, 1
      %p285 = scmp.ne.s32.totalorder %s280, %s282
      %p286 = scmp.eq.s32.totalorder %s31, 0
      %p287 = por %p285, %p286
      %p288 = scmp.ne.s32.totalorder %s280, %s282
      %p289 = scmp.eq.s32.totalorder %s36, 1
      %p290 = por %p288, %p289
      %p291 = scmp.ne.s32.totalorder %s282, %s283
      %p292 = scmp.eq.s32.totalorder %s36, 0
      %p293 = por %p291, %p292
      %p294 = scmp.ne.s32.totalorder %s282, %s283
      %p295 = scmp.eq.s32.totalorder %s37, 1
      %p296 = por %p294, %p295
      %p298 = scmp.ne.s32.totalorder %s283, %s297
      %p299 = scmp.eq.s32.totalorder %s37, 0
      %p300 = por %p298, %p299
      %s302 = sadd.s32 %s301, 1
      %p305 = scmp.eq.s32.totalorder %s31, 1
      %p306 = scmp.ne.s32.totalorder %s301, %s303
      %p307 = scmp.eq.s32.totalorder %s31, 0
      %p308 = por %p306, %p307
      %p309 = scmp.ne.s32.totalorder %s301, %s303
      %p310 = scmp.eq.s32.totalorder %s36, 1
      %p311 = por %p309, %p310
      %p312 = scmp.ne.s32.totalorder %s303, %s304
      %p313 = scmp.eq.s32.totalorder %s36, 0
      %p314 = por %p312, %p313
      %p315 = scmp.ne.s32.totalorder %s303, %s304
      %p316 = scmp.eq.s32.totalorder %s37, 1
      %p317 = por %p315, %p316
      %p319 = scmp.ne.s32.totalorder %s304, %s318
      %p320 = scmp.eq.s32.totalorder %s37, 0
      %p321 = por %p319, %p320
      %s323 = sadd.s32 %s322, 1
      %p326 = scmp.eq.s32.totalorder %s31, 1
      %p327 = scmp.ne.s32.totalorder %s322, %s324
      %p328 = scmp.eq.s32.totalorder %s31, 0
      %p329 = por %p327, %p328
      %p330 = scmp.ne.s32.totalorder %s322, %s324
      %p331 = scmp.eq.s32.totalorder %s36, 1
      %p332 = por %p330, %p331
      %p333 = scmp.ne.s32.totalorder %s324, %s325
      %p334 = scmp.eq.s32.totalorder %s36, 0
      %p335 = por %p333, %p334
      %p336 = scmp.ne.s32.totalorder %s324, %s325
      %p337 = scmp.eq.s32.totalorder %s37, 1
      %p338 = por %p336, %p337
      %p340 = scmp.ne.s32.totalorder %s325, %s339
      %p341 = scmp.eq.s32.totalorder %s37, 0
      %p342 = por %p340, %p341
      %s344 = sadd.s32 %s343, 1
      %p347 = scmp.eq.s32.totalorder %s31, 1
      %p348 = scmp.ne.s32.totalorder %s343, %s345
      %p349 = scmp.eq.s32.totalorder %s31, 0
      %p350 = por %p348, %p349
      %p351 = scmp.ne.s32.totalorder %s343, %s345
      %p352 = scmp.eq.s32.totalorder %s36, 1
      %p353 = por %p351, %p352
      %p354 = scmp.ne.s32.totalorder %s345, %s346
      %p355 = scmp.eq.s32.totalorder %s36, 0
      %p356 = por %p354, %p355
      %p357 = scmp.ne.s32.totalorder %s345, %s346
      %p358 = scmp.eq.s32.totalorder %s37, 1
      %p359 = por %p357, %p358
      %p361 = scmp.ne.s32.totalorder %s346, %s360
      %p362 = scmp.eq.s32.totalorder %s37, 0
      %p363 = por %p361, %p362
      %s365 = sadd.s32 %s364, 1
      %p368 = scmp.eq.s32.totalorder %s31, 1
      %p369 = scmp.ne.s32.totalorder %s364, %s366
      %p370 = scmp.eq.s32.totalorder %s31, 0
      %p371 = por %p369, %p370
      %p372 = scmp.ne.s32.totalorder %s364, %s366
      %p373 = scmp.eq.s32.totalorder %s36, 1
      %p374 = por %p372, %p373
      %p375 = scmp.ne.s32.totalorder %s366, %s367
      %p376 = scmp.eq.s32.totalorder %s36, 0
      %p377 = por %p375, %p376
      %p378 = scmp.ne.s32.totalorder %s366, %s367
      %p379 = scmp.eq.s32.totalorder %s37, 1
      %p380 = por %p378, %p379
      %p382 = scmp.ne.s32.totalorder %s367, %s381
      %p383 = scmp.eq.s32.totalorder %s37, 0
      %p384 = por %p382, %p383
      %s386 = sadd.s32 %s385, 1
      %p389 = scmp.eq.s32.totalorder %s31, 1
      %p390 = scmp.ne.s32.totalorder %s385, %s387
      %p391 = scmp.eq.s32.totalorder %s31, 0
      %p392 = por %p390, %p391
      %p393 = scmp.ne.s32.totalorder %s385, %s387
      %p394 = scmp.eq.s32.totalorder %s36, 1
      %p395 = por %p393, %p394
      %p396 = scmp.ne.s32.totalorder %s387, %s388
      %p397 = scmp.eq.s32.totalorder %s36, 0
      %p398 = por %p396, %p397
      %p399 = scmp.ne.s32.totalorder %s387, %s388
      %p400 = scmp.eq.s32.totalorder %s37, 1
      %p401 = por %p399, %p400
      %p403 = scmp.ne.s32.totalorder %s388, %s402
      %p404 = scmp.eq.s32.totalorder %s37, 0
      %p405 = por %p403, %p404
      %s407 = sadd.s32 %s406, 1
      %p410 = scmp.eq.s32.totalorder %s31, 1
      %p411 = scmp.ne.s32.totalorder %s406, %s408
      %p412 = scmp.eq.s32.totalorder %s31, 0
      %p413 = por %p411, %p412
      %p414 = scmp.ne.s32.totalorder %s406, %s408
      %p415 = scmp.eq.s32.totalorder %s36, 1
      %p416 = por %p414, %p415
      %p417 = scmp.ne.s32.totalorder %s408, %s409
      %p418 = scmp.eq.s32.totalorder %s36, 0
      %p419 = por %p417, %p418
      %p420 = scmp.ne.s32.totalorder %s408, %s409
      %p421 = scmp.eq.s32.totalorder %s37, 1
      %p422 = por %p420, %p421
      %p424 = scmp.ne.s32.totalorder %s409, %s423
      %p425 = scmp.eq.s32.totalorder %s37, 0
      %p426 = por %p424, %p425
      %s428 = sadd.s32 %s427, 1
      %p431 = scmp.eq.s32.totalorder %s31, 1
      %p432 = scmp.ne.s32.totalorder %s427, %s429
      %p433 = scmp.eq.s32.totalorder %s31, 0
      %p434 = por %p432, %p433
      %p435 = scmp.ne.s32.totalorder %s427, %s429
      %p436 = scmp.eq.s32.totalorder %s36, 1
      %p437 = por %p435, %p436
      %p438 = scmp.ne.s32.totalorder %s429, %s430
      %p439 = scmp.eq.s32.totalorder %s36, 0
      %p440 = por %p438, %p439
      %p441 = scmp.ne.s32.totalorder %s429, %s430
      %p442 = scmp.eq.s32.totalorder %s37, 1
      %p443 = por %p441, %p442
      %p445 = scmp.ne.s32.totalorder %s430, %s444
      %p446 = scmp.eq.s32.totalorder %s37, 0
      %p447 = por %p445, %p446
      %s449 = sadd.s32 %s448, 1
      %p452 = scmp.eq.s32.totalorder %s31, 1
      %p453 = scmp.ne.s32.totalorder %s448, %s450
      %p454 = scmp.eq.s32.totalorder %s31, 0
      %p455 = por %p453, %p454
      %p456 = scmp.ne.s32.totalorder %s448, %s450
      %p457 = scmp.eq.s32.totalorder %s36, 1
      %p458 = por %p456, %p457
      %p459 = scmp.ne.s32.totalorder %s450, %s451
      %p460 = scmp.eq.s32.totalorder %s36, 0
      %p461 = por %p459, %p460
      %p462 = scmp.ne.s32.totalorder %s450, %s451
      %p463 = scmp.eq.s32.totalorder %s37, 1
      %p464 = por %p462, %p463
      %p466 = scmp.ne.s32.totalorder %s451, %s465
      %p467 = scmp.eq.s32.totalorder %s37, 0
      %p468 = por %p466, %p467
      %s470 = sadd.s32 %s469, 1
      %p473 = scmp.eq.s32.totalorder %s31, 1
      %p474 = scmp.ne.s32.totalorder %s469, %s471
      %p475 = scmp.eq.s32.totalorder %s31, 0
      %p476 = por %p474, %p475
      %p477 = scmp.ne.s32.totalorder %s469, %s471
      %p478 = scmp.eq.s32.totalorder %s36, 1
      %p479 = por %p477, %p478
      %p480 = scmp.ne.s32.totalorder %s471, %s472
      %p481 = scmp.eq.s32.totalorder %s36, 0
      %p482 = por %p480, %p481
      %p483 = scmp.ne.s32.totalorder %s471, %s472
      %p484 = scmp.eq.s32.totalorder %s37, 1
      %p485 = por %p483, %p484
      %p487 = scmp.ne.s32.totalorder %s472, %s486
      %p488 = scmp.eq.s32.totalorder %s37, 0
      %p489 = por %p487, %p488
      %s491 = sadd.s32 %s490, 1
      %p494 = scmp.eq.s32.totalorder %s31, 1
      %p495 = scmp.ne.s32.totalorder %s490, %s492
      %p496 = scmp.eq.s32.totalorder %s31, 0
      %p497 = por %p495, %p496
      %p498 = scmp.ne.s32.totalorder %s490, %s492
      %p499 = scmp.eq.s32.totalorder %s36, 1
      %p500 = por %p498, %p499
      %p501 = scmp.ne.s32.totalorder %s492, %s493
      %p502 = scmp.eq.s32.totalorder %s36, 0
      %p503 = por %p501, %p502
      %p504 = scmp.ne.s32.totalorder %s492, %s493
      %p505 = scmp.eq.s32.totalorder %s37, 1
      %p506 = por %p504, %p505
      %p508 = scmp.ne.s32.totalorder %s493, %s507
      %p509 = scmp.eq.s32.totalorder %s37, 0
      %p510 = por %p508, %p509
      %s511 = ssub.s32 %s31, %s38
      %p512 = scmp.eq.s32.totalorder %s511, 0
      %s514 = sadd.s32 %s513, 1
      %s515 = scalar_select %p512, %s513, %s514
      %p518 = pneg %p512
      %p519 = scmp.eq.s32.totalorder %s31, 1
      %p520 = por %p518, %p519
      %p521 = scmp.ne.s32.totalorder %s513, %s516
      %p522 = scmp.eq.s32.totalorder %s31, 0
      %p523 = por %p521, %p522
      %p524 = scmp.ne.s32.totalorder %s513, %s516
      %p525 = scmp.eq.s32.totalorder %s36, 1
      %p526 = por %p524, %p525
      %p527 = scmp.ne.s32.totalorder %s516, %s517
      %p528 = scmp.eq.s32.totalorder %s36, 0
      %p529 = por %p527, %p528
      %p530 = scmp.ne.s32.totalorder %s516, %s517
      %p531 = scmp.eq.s32.totalorder %s37, 1
      %p532 = por %p530, %p531
      %p534 = scmp.ne.s32.totalorder %s517, %s533
      %p535 = scmp.eq.s32.totalorder %s37, 0
      %p536 = por %p534, %p535
      %p537 = scmp.le.s32.totalorder 1, %s31
      %p538 = scmp.lt.s32.totalorder %s31, 3
      %p539 = pnand %p537, %p538
      %p540 = pneg %p539
      // Predicated region
      $region9: #{decoder_forward.1} parent=5 // pred_check
        _
      $region10: #{decoder_forward.1} parent=5 // pred_check_branch
        %542 = sbr.rel (%p539) target = $region12
      $region11: #{decoder_forward.1} parent=5 // pred_region
        %s543 = ssub.s32 %s31, 1
        // Predicated region
        $region13: #{decoder_forward.1} parent=11 // pred_check
          %p544 = pneg %p104
        $region14: #{decoder_forward.1} parent=11 // pred_check_branch
          %546 = sbr.rel (%p544) target = $region16
        $region15: #{decoder_forward.1} parent=11 // pred_region
          _
        $region16: #{decoder_forward.1} parent=11 // pred_fallthru
          _
        // Predicated region
        $region17: #{decoder_forward.1} parent=11 // pred_check
          %p547 = pneg %p125
        $region18: #{decoder_forward.1} parent=11 // pred_check_branch
          %549 = sbr.rel (%p547) target = $region20
        $region19: #{decoder_forward.1} parent=11 // pred_region
          _
        $region20: #{decoder_forward.1} parent=11 // pred_fallthru
          _
        // Predicated region
        $region21: #{decoder_forward.1} parent=11 // pred_check
          %p550 = pneg %p146
        $region22: #{decoder_forward.1} parent=11 // pred_check_branch
          %552 = sbr.rel (%p550) target = $region24
        $region23: #{decoder_forward.1} parent=11 // pred_region
          _
        $region24: #{decoder_forward.1} parent=11 // pred_fallthru
          _
        // Predicated region
        $region25: #{decoder_forward.1} parent=11 // pred_check
          %p553 = pneg %p167
        $region26: #{decoder_forward.1} parent=11 // pred_check_branch
          %555 = sbr.rel (%p553) target = $region28
        $region27: #{decoder_forward.1} parent=11 // pred_region
          _
        $region28: #{decoder_forward.1} parent=11 // pred_fallthru
          _
        // Predicated region
        $region29: #{decoder_forward.1} parent=11 // pred_check
          %p556 = pneg %p188
        $region30: #{decoder_forward.1} parent=11 // pred_check_branch
          %558 = sbr.rel (%p556) target = $region32
        $region31: #{decoder_forward.1} parent=11 // pred_region
          _
        $region32: #{decoder_forward.1} parent=11 // pred_fallthru
          _
        // Predicated region
        $region33: #{decoder_forward.1} parent=11 // pred_check
          %p559 = pneg %p209
        $region34: #{decoder_forward.1} parent=11 // pred_check_branch
          %561 = sbr.rel (%p559) target = $region36
        $region35: #{decoder_forward.1} parent=11 // pred_region
          _
        $region36: #{decoder_forward.1} parent=11 // pred_fallthru
          _
        // Predicated region
        $region37: #{decoder_forward.1} parent=11 // pred_check
          %p562 = pneg %p230
        $region38: #{decoder_forward.1} parent=11 // pred_check_branch
          %564 = sbr.rel (%p562) target = $region40
        $region39: #{decoder_forward.1} parent=11 // pred_region
          _
        $region40: #{decoder_forward.1} parent=11 // pred_fallthru
          _
        // Predicated region
        $region41: #{decoder_forward.1} parent=11 // pred_check
          %p565 = pneg %p251
        $region42: #{decoder_forward.1} parent=11 // pred_check_branch
          %567 = sbr.rel (%p565) target = $region44
        $region43: #{decoder_forward.1} parent=11 // pred_region
          _
        $region44: #{decoder_forward.1} parent=11 // pred_fallthru
          _
        // Predicated region
        $region45: #{decoder_forward.1} parent=11 // pred_check
          %p568 = pneg %p272
        $region46: #{decoder_forward.1} parent=11 // pred_check_branch
          %570 = sbr.rel (%p568) target = $region48
        $region47: #{decoder_forward.1} parent=11 // pred_region
          _
        $region48: #{decoder_forward.1} parent=11 // pred_fallthru
          _
        // Predicated region
        $region49: #{decoder_forward.1} parent=11 // pred_check
          %p571 = pneg %p293
        $region50: #{decoder_forward.1} parent=11 // pred_check_branch
          %573 = sbr.rel (%p571) target = $region52
        $region51: #{decoder_forward.1} parent=11 // pred_region
          _
        $region52: #{decoder_forward.1} parent=11 // pred_fallthru
          _
        // Predicated region
        $region53: #{decoder_forward.1} parent=11 // pred_check
          %p574 = pneg %p314
        $region54: #{decoder_forward.1} parent=11 // pred_check_branch
          %576 = sbr.rel (%p574) target = $region56
        $region55: #{decoder_forward.1} parent=11 // pred_region
          _
        $region56: #{decoder_forward.1} parent=11 // pred_fallthru
          _
        // Predicated region
        $region57: #{decoder_forward.1} parent=11 // pred_check
          %p577 = pneg %p335
        $region58: #{decoder_forward.1} parent=11 // pred_check_branch
          %579 = sbr.rel (%p577) target = $region60
        $region59: #{decoder_forward.1} parent=11 // pred_region
          _
        $region60: #{decoder_forward.1} parent=11 // pred_fallthru
          _
        // Predicated region
        $region61: #{decoder_forward.1} parent=11 // pred_check
          %p580 = pneg %p356
        $region62: #{decoder_forward.1} parent=11 // pred_check_branch
          %582 = sbr.rel (%p580) target = $region64
        $region63: #{decoder_forward.1} parent=11 // pred_region
          _
        $region64: #{decoder_forward.1} parent=11 // pred_fallthru
          _
        // Predicated region
        $region65: #{decoder_forward.1} parent=11 // pred_check
          %p583 = pneg %p377
        $region66: #{decoder_forward.1} parent=11 // pred_check_branch
          %585 = sbr.rel (%p583) target = $region68
        $region67: #{decoder_forward.1} parent=11 // pred_region
          _
        $region68: #{decoder_forward.1} parent=11 // pred_fallthru
          _
        // Predicated region
        $region69: #{decoder_forward.1} parent=11 // pred_check
          %p586 = pneg %p398
        $region70: #{decoder_forward.1} parent=11 // pred_check_branch
          %588 = sbr.rel (%p586) target = $region72
        $region71: #{decoder_forward.1} parent=11 // pred_region
          _
        $region72: #{decoder_forward.1} parent=11 // pred_fallthru
          _
        // Predicated region
        $region73: #{decoder_forward.1} parent=11 // pred_check
          %p589 = pneg %p419
        $region74: #{decoder_forward.1} parent=11 // pred_check_branch
          %591 = sbr.rel (%p589) target = $region76
        $region75: #{decoder_forward.1} parent=11 // pred_region
          _
        $region76: #{decoder_forward.1} parent=11 // pred_fallthru
          _
        // Predicated region
        $region77: #{decoder_forward.1} parent=11 // pred_check
          %p592 = pneg %p440
        $region78: #{decoder_forward.1} parent=11 // pred_check_branch
          %594 = sbr.rel (%p592) target = $region80
        $region79: #{decoder_forward.1} parent=11 // pred_region
          _
        $region80: #{decoder_forward.1} parent=11 // pred_fallthru
          _
        // Predicated region
        $region81: #{decoder_forward.1} parent=11 // pred_check
          %p595 = pneg %p461
        $region82: #{decoder_forward.1} parent=11 // pred_check_branch
          %597 = sbr.rel (%p595) target = $region84
        $region83: #{decoder_forward.1} parent=11 // pred_region
          _
        $region84: #{decoder_forward.1} parent=11 // pred_fallthru
          _
        // Predicated region
        $region85: #{decoder_forward.1} parent=11 // pred_check
          %p598 = pneg %p482
        $region86: #{decoder_forward.1} parent=11 // pred_check_branch
          %600 = sbr.rel (%p598) target = $region88
        $region87: #{decoder_forward.1} parent=11 // pred_region
          _
        $region88: #{decoder_forward.1} parent=11 // pred_fallthru
          _
        // Predicated region
        $region89: #{decoder_forward.1} parent=11 // pred_check
          %p601 = pneg %p503
        $region90: #{decoder_forward.1} parent=11 // pred_check_branch
          %603 = sbr.rel (%p601) target = $region92
        $region91: #{decoder_forward.1} parent=11 // pred_region
          _
        $region92: #{decoder_forward.1} parent=11 // pred_fallthru
          _
      $region12: #{decoder_forward.1} parent=5 // pred_fallthru
        _
      %p604 = scmp.lt.s32.totalorder %s31, 2
      // Predicated region
      $region93: #{decoder_forward.1} parent=5 // pred_check
        %p605 = pneg %p604
      $region94: #{decoder_forward.1} parent=5 // pred_check_branch
        %607 = sbr.rel (%p605) target = $region96
      $region95: #{decoder_forward.1} parent=5 // pred_region
        // Predicated region
        $region97: #{decoder_forward.1} parent=95 // pred_check
          %p608 = pneg %p51
        $region98: #{decoder_forward.1} parent=95 // pred_check_branch
          %610 = sbr.rel (%p608) target = $region100
        $region99: #{decoder_forward.1} parent=95 // pred_region
          %p611 = scmp.lt.s32.totalorder %s31, 1
          %s612 = scalar_select %p611, %s31, 1
          %s613 = smul.addr %s612, 8
          %s614 = scalar_lea.vmem %s0, %s613
        $region100: #{decoder_forward.1} parent=95 // pred_fallthru
          _
        // Predicated region
        $region101: #{decoder_forward.1} parent=95 // pred_check
          %p615 = pneg %p77
        $region102: #{decoder_forward.1} parent=95 // pred_check_branch
          %617 = sbr.rel (%p615) target = $region104
        $region103: #{decoder_forward.1} parent=95 // pred_region
          %p618 = scmp.lt.s32.totalorder %s31, 1
          %s619 = scalar_select %p618, %s31, 1
          %s620 = smul.addr %s619, 8
          %s621 = scalar_lea.vmem %s1, %s620
        $region104: #{decoder_forward.1} parent=95 // pred_fallthru
          _
      $region96: #{decoder_forward.1} parent=5 // pred_fallthru
        _
      %p622 = scmp.le.s32.totalorder 1, %s31
      %p623 = scmp.lt.s32.totalorder %s31, 3
      %p624 = pnand %p622, %p623
      %p625 = pneg %p624
      // Predicated region
      $region105: #{decoder_forward.1} parent=5 // pred_check
        _
      $region106: #{decoder_forward.1} parent=5 // pred_check_branch
        %627 = sbr.rel (%p624) target = $region108
      $region107: #{decoder_forward.1} parent=5 // pred_region
        %s628 = ssub.s32 %s31, 1
        %p629 = scmp.lt.s32.totalorder %s36, 1
        %s630 = scalar_select %p629, %s36, 1
        %s631 = smul.addr %s630, 8
        %s632 = scalar_lea.vmem %s0, %s631
        %p633 = pneg %p57
        %p634 = pneg %p54
        %p635 = scmp.lt.s32.totalorder %s36, 1
        %s636 = scalar_select %p635, %s36, 1
        %s637 = smul.addr %s636, 8
        %s638 = scalar_lea.vmem %s1, %s637
        %p639 = pneg %p83
        %p640 = pneg %p80
        %p641 = pneg %p104
        %p642 = pneg %p101
        %p643 = pneg %p125
        %p644 = pneg %p122
        %p645 = pneg %p146
        %p646 = pneg %p143
        %p647 = pneg %p167
        %p648 = pneg %p164
        %p649 = pneg %p188
        %p650 = pneg %p185
        %p651 = pneg %p209
        %p652 = pneg %p206
        %p653 = pneg %p230
        %p654 = pneg %p227
        %p655 = pneg %p251
        %p656 = pneg %p248
        %p657 = pneg %p272
        %p658 = pneg %p269
        %p659 = pneg %p293
        %p660 = pneg %p290
        %p661 = pneg %p314
        %p662 = pneg %p311
        %p663 = pneg %p335
        %p664 = pneg %p332
        %p665 = pneg %p356
        %p666 = pneg %p353
        %p667 = pneg %p377
        %p668 = pneg %p374
        %p669 = pneg %p398
        %p670 = pneg %p395
        %p671 = pneg %p419
        %p672 = pneg %p416
        %p673 = pneg %p440
        %p674 = pneg %p437
        %p675 = pneg %p461
        %p676 = pneg %p458
        %p677 = pneg %p482
        %p678 = pneg %p479
        %p679 = pneg %p503
        %p680 = pneg %p500
        %p681 = pneg %p529
        %p682 = pneg %p526
        %s683 = sand.u32 %s516, 1
        %s684 = scalar_lea.sflag [#allocation3], %s683
        %s685 = sand.u32 %s516, 1
        %s686 = smul.addr %s685, 8
        %s687 = scalar_lea.vmem [#allocation2], %s686
        %p688 = scmp.lt.s32.totalorder %s36, 1
        %s689 = scalar_select %p688, %s36, 1
        %s690 = smul.addr %s689, 8
        %s691 = scalar_lea.vmem %s0, %s690
        %p692 = scmp.lt.s32.totalorder %s36, 1
        %s693 = scalar_select %p692, %s36, 1
        %s694 = smul.addr %s693, 8
        %s695 = scalar_lea.vmem %s1, %s694
        %v697 = vld [vmem:[%s691] sm:$0xff]
        %v698 = vld [vmem:[%s695] sm:$0xff]
        %v699 = vld [vmem:[%s2] sm:$0x1]
        %v700 = vld [vmem:[%s3] sm:$0x1]
        %vm701 = vcmask 261120
        %v702 = vsel %vm701, %v697, 0.0
        %703 = vadd.xlane.f32.xlu0 %v702
        %v704 = vpop.xlane.xlu0 %703
        %v705 = vrcp.pop 32.0
        %v706 = vmul.f32 %v704, %v705
        %v707 = vsub.f32 %v697, %v706
        %v708 = vmul.f32 %v707, %v707
        %v709 = vsel %vm701, %v708, 0.0
        %710 = vadd.xlane.f32.xlu0 %v709
        %v711 = vpop.xlane.xlu0 %710
        %v712 = vmul.f32 %v711, %v705
        %v713 = vadd.f32 %v712, 1e-06
        %v714 = vrsqrt.pop %v713
        %v715 = vmul.f32 %v707, %v714
        %v717 = vlaneseq
        %v718 = vshrl.u32 %v717, 7
        %v719 = vsub.s32 0, %v718
        %v720 = vrot.slane %v699, %v719
        %v722 = vmul.f32 %v715, %v720
        %v724 = vlaneseq
        %v725 = vshrl.u32 %v724, 7
        %v726 = vsub.s32 0, %v725
        %v727 = vrot.slane %v700, %v726
        %v729 = vadd.f32 %v722, %v727
        %v730 = vld [vmem:[%s4] sm:$0xf]
        %v731 = vld [vmem:[%s4 + $0x4] sm:$0xf]
        %v732 = vld [vmem:[%s4 + $0x8] sm:$0xf]
        %v733 = vld [vmem:[%s4 + $0xc] sm:$0xf]
        %v734 = vld [vmem:[%s4 + $0x10] sm:$0xf]
        %v735 = vld [vmem:[%s4 + $0x14] sm:$0xf]
        %v736 = vld [vmem:[%s4 + $0x18] sm:$0xf]
        %v737 = vld [vmem:[%s4 + $0x1c] sm:$0xf]
        %v738 = vld [vmem:[%s5] sm:$0xf]
        %v739 = vld [vmem:[%s5 + $0x4] sm:$0xf]
        %v740 = vld [vmem:[%s5 + $0x8] sm:$0xf]
        %v741 = vld [vmem:[%s5 + $0xc] sm:$0xf]
        %v742 = vld [vmem:[%s5 + $0x10] sm:$0xf]
        %v743 = vld [vmem:[%s5 + $0x14] sm:$0xf]
        %v744 = vld [vmem:[%s5 + $0x18] sm:$0xf]
        %v745 = vld [vmem:[%s5 + $0x1c] sm:$0xf]
        %v746 = vld [vmem:[%s6] sm:$0xf]
        %v747 = vld [vmem:[%s6 + $0x4] sm:$0xf]
        %v748 = vld [vmem:[%s6 + $0x8] sm:$0xf]
        %v749 = vld [vmem:[%s6 + $0xc] sm:$0xf]
        %v750 = vld [vmem:[%s6 + $0x10] sm:$0xf]
        %v751 = vld [vmem:[%s6 + $0x14] sm:$0xf]
        %v752 = vld [vmem:[%s6 + $0x18] sm:$0xf]
        %v753 = vld [vmem:[%s6 + $0x1c] sm:$0xf]
        %v754 = vld [vmem:[%s7] sm:$0xf]
        %v755 = vld [vmem:[%s7 + $0x4] sm:$0xf]
        %v756 = vld [vmem:[%s7 + $0x8] sm:$0xf]
        %v757 = vld [vmem:[%s7 + $0xc] sm:$0xf]
        %v758 = vld [vmem:[%s8] sm:$0x1]
        %v759 = vld [vmem:[%s9] sm:$0x1]
        %v760 = vpack.c.bf16 %v729, %v729
        %v765 = vunpack.c.l.b16 %v730
        %v766 = vunpack.c.l.b16 %v731
        %v767 = vunpack.c.l.b16 %v732
        %v768 = vunpack.c.l.b16 %v733
        %v769 = vpack.c.b16 %v766, %v765
        %v770 = vpack.c.b16 %v768, %v767
        %v774 = vsel %vm701, %v760, 0
        %776 = vmatprep.subr.bf16.mxu0 0
        %777 = vmatpush1.bf16.msra.mxu0 %v769
        %778 = vmatprep.subr.bf16.mxu0 0
        %779 = vmatpush1.bf16.msra.mxu0 %v770
        %780 = vmatprep.subr.bf16.mxu0 0
        %781 = vmatpush1.bf16.msra.mxu0 0
        %782 = vmatprep.subr.bf16.mxu0 0
        %783 = vmatpush1.bf16.msra.mxu0 0
        %784 = vmatprep.subr.bf16.mxu0 0
        %785 = vmatpush1.bf16.msra.mxu0 0
        %786 = vmatprep.subr.bf16.mxu0 0
        %787 = vmatpush1.bf16.msra.mxu0 0
        %788 = vmatprep.subr.bf16.mxu0 0
        %789 = vmatpush1.bf16.msra.mxu0 0
        %790 = vmatprep.subr.bf16.mxu0 0
        %791 = vmatpush1.bf16.msra.mxu0 0
        %792 = vmatprep.subr.bf16.mxu0 0
        %793 = vmatpush1.bf16.msra.mxu0 0
        %794 = vmatprep.subr.bf16.mxu0 0
        %795 = vmatpush1.bf16.msra.mxu0 0
        %796 = vmatprep.subr.bf16.mxu0 0
        %797 = vmatpush1.bf16.msra.mxu0 0
        %798 = vmatprep.subr.bf16.mxu0 0
        %799 = vmatpush1.bf16.msra.mxu0 0
        %800 = vmatprep.subr.bf16.mxu0 0
        %801 = vmatpush1.bf16.msra.mxu0 0
        %802 = vmatprep.subr.bf16.mxu0 0
        %803 = vmatpush1.bf16.msra.mxu0 0
        %804 = vmatprep.subr.bf16.mxu0 0
        %805 = vmatpush1.bf16.msra.mxu0 0
        %806 = vmatprep.subr.bf16.mxu0 0
        %807 = vmatpush1.bf16.msra.mxu0 0
        %808 = vmatprep.mubr.bf16.mxu0 0
        %809 = vmatmul.mubr.bf16.gmra.mrb[0].mxu0 %v774
        %v810 = vpop.f32.mrb[0].mxu0
        %v811 = vadd.f32 0.0, %v810
        %v812 = vpop.f32.mrb[0].mxu0
        %v813 = vpop.f32.mrb[0].mxu0
        %v814 = vpop.f32.mrb[0].mxu0
        %815 = vdwg.mxu0
        %v820 = vunpack.c.l.b16 %v734
        %v821 = vunpack.c.l.b16 %v735
        %v822 = vunpack.c.l.b16 %v736
        %v823 = vunpack.c.l.b16 %v737
        %v824 = vpack.c.b16 %v821, %v820
        %v825 = vpack.c.b16 %v823, %v822
        %828 = vmatprep.subr.bf16.mxu0 0
        %829 = vmatpush1.bf16.msra.mxu0 %v824
        %830 = vmatprep.subr.bf16.mxu0 0
        %831 = vmatpush1.bf16.msra.mxu0 %v825
        %832 = vmatprep.subr.bf16.mxu0 0
        %833 = vmatpush1.bf16.msra.mxu0 0
        %834 = vmatprep.subr.bf16.mxu0 0
        %835 = vmatpush1.bf16.msra.mxu0 0
        %836 = vmatprep.subr.bf16.mxu0 0
        %837 = vmatpush1.bf16.msra.mxu0 0
        %838 = vmatprep.subr.bf16.mxu0 0
        %839 = vmatpush1.bf16.msra.mxu0 0
        %840 = vmatprep.subr.bf16.mxu0 0
        %841 = vmatpush1.bf16.msra.mxu0 0
        %842 = vmatprep.subr.bf16.mxu0 0
        %843 = vmatpush1.bf16.msra.mxu0 0
        %844 = vmatprep.subr.bf16.mxu0 0
        %845 = vmatpush1.bf16.msra.mxu0 0
        %846 = vmatprep.subr.bf16.mxu0 0
        %847 = vmatpush1.bf16.msra.mxu0 0
        %848 = vmatprep.subr.bf16.mxu0 0
        %849 = vmatpush1.bf16.msra.mxu0 0
        %850 = vmatprep.subr.bf16.mxu0 0
        %851 = vmatpush1.bf16.msra.mxu0 0
        %852 = vmatprep.subr.bf16.mxu0 0
        %853 = vmatpush1.bf16.msra.mxu0 0
        %854 = vmatprep.subr.bf16.mxu0 0
        %855 = vmatpush1.bf16.msra.mxu0 0
        %856 = vmatprep.subr.bf16.mxu0 0
        %857 = vmatpush1.bf16.msra.mxu0 0
        %858 = vmatprep.subr.bf16.mxu0 0
        %859 = vmatpush1.bf16.msra.mxu0 0
        %860 = vmatprep.mubr.bf16.mxu0 0
        %861 = vmatmul.mubr.bf16.gmra.mrb[0].mxu0 %v774
        %v862 = vpop.f32.mrb[0].mxu0
        %v863 = vadd.f32 0.0, %v862
        %v864 = vpop.f32.mrb[0].mxu0
        %v865 = vpop.f32.mrb[0].mxu0
        %v866 = vpop.f32.mrb[0].mxu0
        %867 = vdwg.mxu0
        %v868 = vmul.f32 %v811, 0.25
        %v869 = vmul.f32 %v863, 0.25
        %v874 = vunpack.c.l.b16 %v738
        %v875 = vunpack.c.l.b16 %v739
        %v876 = vunpack.c.l.b16 %v740
        %v877 = vunpack.c.l.b16 %v741
        %v878 = vpack.c.b16 %v875, %v874
        %v879 = vpack.c.b16 %v877, %v876
        %882 = vmatprep.subr.bf16.mxu0 0
        %883 = vmatpush1.bf16.msra.mxu0 %v878
        %884 = vmatprep.subr.bf16.mxu0 0
        %885 = vmatpush1.bf16.msra.mxu0 %v879
        %886 = vmatprep.subr.bf16.mxu0 0
        %887 = vmatpush1.bf16.msra.mxu0 0
        %888 = vmatprep.subr.bf16.mxu0 0
        %889 = vmatpush1.bf16.msra.mxu0 0
        %890 = vmatprep.subr.bf16.mxu0 0
        %891 = vmatpush1.bf16.msra.mxu0 0
        %892 = vmatprep.subr.bf16.mxu0 0
        %893 = vmatpush1.bf16.msra.mxu0 0
        %894 = vmatprep.subr.bf16.mxu0 0
        %895 = vmatpush1.bf16.msra.mxu0 0
        %896 = vmatprep.subr.bf16.mxu0 0
        %897 = vmatpush1.bf16.msra.mxu0 0
        %898 = vmatprep.subr.bf16.mxu0 0
        %899 = vmatpush1.bf16.msra.mxu0 0
        %900 = vmatprep.subr.bf16.mxu0 0
        %901 = vmatpush1.bf16.msra.mxu0 0
        %902 = vmatprep.subr.bf16.mxu0 0
        %903 = vmatpush1.bf16.msra.mxu0 0
        %904 = vmatprep.subr.bf16.mxu0 0
        %905 = vmatpush1.bf16.msra.mxu0 0
        %906 = vmatprep.subr.bf16.mxu0 0
        %907 = vmatpush1.bf16.msra.mxu0 0
        %908 = vmatprep.subr.bf16.mxu0 0
        %909 = vmatpush1.bf16.msra.mxu0 0
        %910 = vmatprep.subr.bf16.mxu0 0
        %911 = vmatpush1.bf16.msra.mxu0 0
        %912 = vmatprep.subr.bf16.mxu0 0
        %913 = vmatpush1.bf16.msra.mxu0 0
        %914 = vmatprep.mubr.bf16.mxu0 0
        %915 = vmatmul.mubr.bf16.gmra.mrb[0].mxu0 %v774
        %v916 = vpop.f32.mrb[0].mxu0
        %v917 = vadd.f32 0.0, %v916
        %v918 = vpop.f32.mrb[0].mxu0
        %v919 = vpop.f32.mrb[0].mxu0
        %v920 = vpop.f32.mrb[0].mxu0
        %921 = vdwg.mxu0
        %v926 = vunpack.c.l.b16 %v742
        %v927 = vunpack.c.l.b16 %v743
        %v928 = vunpack.c.l.b16 %v744
        %v929 = vunpack.c.l.b16 %v745
        %v930 = vpack.c.b16 %v927, %v926
        %v931 = vpack.c.b16 %v929, %v928
        %934 = vmatprep.subr.bf16.mxu0 0
        %935 = vmatpush1.bf16.msra.mxu0 %v930
        %936 = vmatprep.subr.bf16.mxu0 0
        %937 = vmatpush1.bf16.msra.mxu0 %v931
        %938 = vmatprep.subr.bf16.mxu0 0
        %939 = vmatpush1.bf16.msra.mxu0 0
        %940 = vmatprep.subr.bf16.mxu0 0
        %941 = vmatpush1.bf16.msra.mxu0 0
        %942 = vmatprep.subr.bf16.mxu0 0
        %943 = vmatpush1.bf16.msra.mxu0 0
        %944 = vmatprep.subr.bf16.mxu0 0
        %945 = vmatpush1.bf16.msra.mxu0 0
        %946 = vmatprep.subr.bf16.mxu0 0
        %947 = vmatpush1.bf16.msra.mxu0 0
        %948 = vmatprep.subr.bf16.mxu0 0
        %949 = vmatpush1.bf16.msra.mxu0 0
        %950 = vmatprep.subr.bf16.mxu0 0
        %951 = vmatpush1.bf16.msra.mxu0 0
        %952 = vmatprep.subr.bf16.mxu0 0
        %953 = vmatpush1.bf16.msra.mxu0 0
        %954 = vmatprep.subr.bf16.mxu0 0
        %955 = vmatpush1.bf16.msra.mxu0 0
        %956 = vmatprep.subr.bf16.mxu0 0
        %957 = vmatpush1.bf16.msra.mxu0 0
        %958 = vmatprep.subr.bf16.mxu0 0
        %959 = vmatpush1.bf16.msra.mxu0 0
        %960 = vmatprep.subr.bf16.mxu0 0
        %961 = vmatpush1.bf16.msra.mxu0 0
        %962 = vmatprep.subr.bf16.mxu0 0
        %963 = vmatpush1.bf16.msra.mxu0 0
        %964 = vmatprep.subr.bf16.mxu0 0
        %965 = vmatpush1.bf16.msra.mxu0 0
        %966 = vmatprep.mubr.bf16.mxu0 0
        %967 = vmatmul.mubr.bf16.gmra.mrb[0].mxu0 %v774
        %v968 = vpop.f32.mrb[0].mxu0
        %v969 = vadd.f32 0.0, %v968
        %v970 = vpop.f32.mrb[0].mxu0
        %v971 = vpop.f32.mrb[0].mxu0
        %v972 = vpop.f32.mrb[0].mxu0
        %973 = vdwg.mxu0
        %v978 = vunpack.c.l.b16 %v746
        %v979 = vunpack.c.l.b16 %v747
        %v980 = vunpack.c.l.b16 %v748
        %v981 = vunpack.c.l.b16 %v749
        %v982 = vpack.c.b16 %v979, %v978
        %v983 = vpack.c.b16 %v981, %v980
        %986 = vmatprep.subr.bf16.mxu0 0
        %987 = vmatpush1.bf16.msra.mxu0 %v982
        %988 = vmatprep.subr.bf16.mxu0 0
        %989 = vmatpush1.bf16.msra.mxu0 %v983
        %990 = vmatprep.subr.bf16.mxu0 0
        %991 = vmatpush1.bf16.msra.mxu0 0
        %992 = vmatprep.subr.bf16.mxu0 0
        %993 = vmatpush1.bf16.msra.mxu0 0
        %994 = vmatprep.subr.bf16.mxu0 0
        %995 = vmatpush1.bf16.msra.mxu0 0
        %996 = vmatprep.subr.bf16.mxu0 0
        %997 = vmatpush1.bf16.msra.mxu0 0
        %998 = vmatprep.subr.bf16.mxu0 0
        %999 = vmatpush1.bf16.msra.mxu0 0
        %1000 = vmatprep.subr.bf16.mxu0 0
        %1001 = vmatpush1.bf16.msra.mxu0 0
        %1002 = vmatprep.subr.bf16.mxu0 0
        %1003 = vmatpush1.bf16.msra.mxu0 0
        %1004 = vmatprep.subr.bf16.mxu0 0
        %1005 = vmatpush1.bf16.msra.mxu0 0
        %1006 = vmatprep.subr.bf16.mxu0 0
        %1007 = vmatpush1.bf16.msra.mxu0 0
        %1008 = vmatprep.subr.bf16.mxu0 0
        %1009 = vmatpush1.bf16.msra.mxu0 0
        %1010 = vmatprep.subr.bf16.mxu0 0
        %1011 = vmatpush1.bf16.msra.mxu0 0
        %1012 = vmatprep.subr.bf16.mxu0 0
        %1013 = vmatpush1.bf16.msra.mxu0 0
        %1014 = vmatprep.subr.bf16.mxu0 0
        %1015 = vmatpush1.bf16.msra.mxu0 0
        %1016 = vmatprep.subr.bf16.mxu0 0
        %1017 = vmatpush1.bf16.msra.mxu0 0
        %1018 = vmatprep.mubr.bf16.mxu0 0
        %1019 = vmatmul.mubr.bf16.gmra.mrb[0].mxu0 %v774
        %v1020 = vpop.f32.mrb[0].mxu0
        %v1021 = vadd.f32 0.0, %v1020
        %v1022 = vpop.f32.mrb[0].mxu0
        %v1023 = vpop.f32.mrb[0].mxu0
        %v1024 = vpop.f32.mrb[0].mxu0
        %1025 = vdwg.mxu0
        %v1030 = vunpack.c.l.b16 %v750
        %v1031 = vunpack.c.l.b16 %v751
        %v1032 = vunpack.c.l.b16 %v752
        %v1033 = vunpack.c.l.b16 %v753
        %v1034 = vpack.c.b16 %v1031, %v1030
        %v1035 = vpack.c.b16 %v1033, %v1032
        %1038 = vmatprep.subr.bf16.mxu0 0
        %1039 = vmatpush1.bf16.msra.mxu0 %v1034
        %1040 = vmatprep.subr.bf16.mxu0 0
        %1041 = vmatpush1.bf16.msra.mxu0 %v1035
        %1042 = vmatprep.subr.bf16.mxu0 0
        %1043 = vmatpush1.bf16.msra.mxu0 0
        %1044 = vmatprep.subr.bf16.mxu0 0
        %1045 = vmatpush1.bf16.msra.mxu0 0
        %1046 = vmatprep.subr.bf16.mxu0 0
        %1047 = vmatpush1.bf16.msra.mxu0 0
        %1048 = vmatprep.subr.bf16.mxu0 0
        %1049 = vmatpush1.bf16.msra.mxu0 0
        %1050 = vmatprep.subr.bf16.mxu0 0
        %1051 = vmatpush1.bf16.msra.mxu0 0
        %1052 = vmatprep.subr.bf16.mxu0 0
        %1053 = vmatpush1.bf16.msra.mxu0 0
        %1054 = vmatprep.subr.bf16.mxu0 0
        %1055 = vmatpush1.bf16.msra.mxu0 0
        %1056 = vmatprep.subr.bf16.mxu0 0
        %1057 = vmatpush1.bf16.msra.mxu0 0
        %1058 = vmatprep.subr.bf16.mxu0 0
        %1059 = vmatpush1.bf16.msra.mxu0 0
        %1060 = vmatprep.subr.bf16.mxu0 0
        %1061 = vmatpush1.bf16.msra.mxu0 0
        %1062 = vmatprep.subr.bf16.mxu0 0
        %1063 = vmatpush1.bf16.msra.mxu0 0
        %1064 = vmatprep.subr.bf16.mxu0 0
        %1065 = vmatpush1.bf16.msra.mxu0 0
        %1066 = vmatprep.subr.bf16.mxu0 0
        %1067 = vmatpush1.bf16.msra.mxu0 0
        %1068 = vmatprep.subr.bf16.mxu0 0
        %1069 = vmatpush1.bf16.msra.mxu0 0
        %1070 = vmatprep.mubr.bf16.mxu0 0
        %1071 = vmatmul.mubr.bf16.gmra.mrb[0].mxu0 %v774
        %v1072 = vpop.f32.mrb[0].mxu0
        %v1073 = vadd.f32 0.0, %v1072
        %v1074 = vpop.f32.mrb[0].mxu0
        %v1075 = vpop.f32.mrb[0].mxu0
        %v1076 = vpop.f32.mrb[0].mxu0
        %1077 = vdwg.mxu0
        %v1078 = vpack.c.bf16 %v868, %v868
        %v1079 = vpack.c.bf16 %v869, %v869
        %v1080 = vpack.c.bf16 %v917, %v917
        %v1081 = vpack.c.bf16 %v969, %v969
        %vm1082 = vcmask 130048
        %v1084 = vsel %vm1082, %v1078, 0
        %v1087 = vsel %vm1082, %v1080, 0
        %1089 = vmatprep.subr.bf16.mxu0 0
        %1090 = vmatpush1.bf16.xpose.msra.mxu0 %v1087
        %1091 = vmatprep.subr.bf16.mxu0 0
        %1092 = vmatpush1.bf16.xpose.msra.mxu0 0
        %1093 = vmatprep.subr.bf16.mxu0 0
        %1094 = vmatpush1.bf16.xpose.msra.mxu0 0
        %1095 = vmatprep.subr.bf16.mxu0 0
        %1096 = vmatpush1.bf16.xpose.msra.mxu0 0
        %1097 = vmatprep.subr.bf16.mxu0 0
        %1098 = vmatpush1.bf16.xpose.msra.mxu0 0
        %1099 = vmatprep.subr.bf16.mxu0 0
        %1100 = vmatpush1.bf16.xpose.msra.mxu0 0
        %1101 = vmatprep.subr.bf16.mxu0 0
        %1102 = vmatpush1.bf16.xpose.msra.mxu0 0
        %1103 = vmatprep.subr.bf16.mxu0 0
        %1104 = vmatpush1.bf16.xpose.msra.mxu0 0
        %1105 = vmatprep.subr.bf16.mxu0 0
        %1106 = vmatpush1.bf16.xpose.msra.mxu0 0
        %1107 = vmatprep.subr.bf16.mxu0 0
        %1108 = vmatpush1.bf16.xpose.msra.mxu0 0
        %1109 = vmatprep.subr.bf16.mxu0 0
        %1110 = vmatpush1.bf16.xpose.msra.mxu0 0
        %1111 = vmatprep.subr.bf16.mxu0 0
        %1112 = vmatpush1.bf16.xpose.msra.mxu0 0
        %1113 = vmatprep.subr.bf16.mxu0 0
        %1114 = vmatpush1.bf16.xpose.msra.mxu0 0
        %1115 = vmatprep.subr.bf16.mxu0 0
        %1116 = vmatpush1.bf16.xpose.msra.mxu0 0
        %1117 = vmatprep.subr.bf16.mxu0 0
        %1118 = vmatpush1.bf16.xpose.msra.mxu0 0
        %1119 = vmatprep.subr.bf16.mxu0 0
        %1120 = vmatpush1.bf16.xpose.msra.mxu0 0
        %1121 = vmatprep.mubr.bf16.mxu0 0
        %1122 = vmatmul.mubr.bf16.gmra.mrb[0].mxu0 %v1084
        %v1123 = vpop.f32.mrb[0].mxu0
        %v1124 = vadd.f32 0.0, %v1123
        %v1125 = vpop.f32.mrb[0].mxu0
        %v1126 = vpop.f32.mrb[0].mxu0
        %v1127 = vpop.f32.mrb[0].mxu0
        %1128 = vdwg.mxu0
        %v1130 = vsel %vm1082, %v1079, 0
        %v1133 = vsel %vm1082, %v1081, 0
        %1135 = vmatprep.subr.bf16.mxu0 0
        %1136 = vmatpush1.bf16.xpose.msra.mxu0 %v1133
        %1137 = vmatprep.subr.bf16.mxu0 0
        %1138 = vmatpush1.bf16.xpose.msra.mxu0 0
        %1139 = vmatprep.subr.bf16.mxu0 0
        %1140 = vmatpush1.bf16.xpose.msra.mxu0 0
        %1141 = vmatprep.subr.bf16.mxu0 0
        %1142 = vmatpush1.bf16.xpose.msra.mxu0 0
        %1143 = vmatprep.subr.bf16.mxu0 0
        %1144 = vmatpush1.bf16.xpose.msra.mxu0 0
        %1145 = vmatprep.subr.bf16.mxu0 0
        %1146 = vmatpush1.bf16.xpose.msra.mxu0 0
        %1147 = vmatprep.subr.bf16.mxu0 0
        %1148 = vmatpush1.bf16.xpose.msra.mxu0 0
        %1149 = vmatprep.subr.bf16.mxu0 0
        %1150 = vmatpush1.bf16.xpose.msra.mxu0 0
        %1151 = vmatprep.subr.bf16.mxu0 0
        %1152 = vmatpush1.bf16.xpose.msra.mxu0 0
        %1153 = vmatprep.subr.bf16.mxu0 0
        %1154 = vmatpush1.bf16.xpose.msra.mxu0 0
        %1155 = vmatprep.subr.bf16.mxu0 0
        %1156 = vmatpush1.bf16.xpose.msra.mxu0 0
        %1157 = vmatprep.subr.bf16.mxu0 0
        %1158 = vmatpush1.bf16.xpose.msra.mxu0 0
        %1159 = vmatprep.subr.bf16.mxu0 0
        %1160 = vmatpush1.bf16.xpose.msra.mxu0 0
        %1161 = vmatprep.subr.bf16.mxu0 0
        %1162 = vmatpush1.bf16.xpose.msra.mxu0 0
        %1163 = vmatprep.subr.bf16.mxu0 0
        %1164 = vmatpush1.bf16.xpose.msra.mxu0 0
        %1165 = vmatprep.subr.bf16.mxu0 0
        %1166 = vmatpush1.bf16.xpose.msra.mxu0 0
        %1167 = vmatprep.mubr.bf16.mxu0 0
        %1168 = vmatmul.mubr.bf16.gmra.mrb[0].mxu0 %v1130
        %v1169 = vpop.f32.mrb[0].mxu0
        %v1170 = vadd.f32 0.0, %v1169
        %v1171 = vpop.f32.mrb[0].mxu0
        %v1172 = vpop.f32.mrb[0].mxu0
        %v1173 = vpop.f32.mrb[0].mxu0
        %1174 = vdwg.mxu0
        %vm1175 = vcmask 64512
        %v1176 = vsel %vm1175, %v1124, -inf
        %1177 = vmax.xlane.f32.xlu0 %v1176
        %v1178 = vpop.xlane.xlu0 %1177
        %v1179 = vsel %vm1175, %v1170, -inf
        %1180 = vmax.xlane.f32.xlu0 %v1179
        %v1181 = vpop.xlane.xlu0 %1180
        %v1182 = vsub.f32 %v1124, %v1178
        %v1183 = vsub.f32 %v1170, %v1181
        %v1184 = vmul.f32 %v1182, 1.442695
        %v1185 = vpow.pop %v1184
        %v1186 = vmul.f32 %v1183, 1.442695
        %v1187 = vpow.pop %v1186
        %v1188 = vsel %vm1175, %v1185, 0.0
        %1189 = vadd.xlane.f32.xlu0 %v1188
        %v1190 = vpop.xlane.xlu0 %1189
        %v1191 = vsel %vm1175, %v1187, 0.0
        %1192 = vadd.xlane.f32.xlu0 %v1191
        %v1193 = vpop.xlane.xlu0 %1192
        %v1194 = vrcp.pop %v1190
        %v1195 = vrcp.pop %v1193
        %v1196 = vmul.f32 %v1185, %v1194
        %v1197 = vmul.f32 %v1187, %v1195
        %v1198 = vpack.c.bf16 %v1196, %v1196
        %v1199 = vpack.c.bf16 %v1197, %v1197
        %v1200 = vpack.c.bf16 %v1021, %v1021
        %v1201 = vpack.c.bf16 %v1073, %v1073
        %v1203 = vsel %vm1175, %v1198, 0
        %vm1205 = vcmask 1043456
        %v1207 = vsel %vm1205, %v1200, 0
        %1209 = vmatprep.subr.bf16.mxu0 0
        %1210 = vmatpush1.bf16.msra.mxu0 %v1207
        %1211 = vmatprep.subr.bf16.mxu0 0
        %1212 = vmatpush1.bf16.msra.mxu0 0
        %1213 = vmatprep.subr.bf16.mxu0 0
        %1214 = vmatpush1.bf16.msra.mxu0 0
        %1215 = vmatprep.subr.bf16.mxu0 0
        %1216 = vmatpush1.bf16.msra.mxu0 0
        %1217 = vmatprep.subr.bf16.mxu0 0
        %1218 = vmatpush1.bf16.msra.mxu0 0
        %1219 = vmatprep.subr.bf16.mxu0 0
        %1220 = vmatpush1.bf16.msra.mxu0 0
        %1221 = vmatprep.subr.bf16.mxu0 0
        %1222 = vmatpush1.bf16.msra.mxu0 0
        %1223 = vmatprep.subr.bf16.mxu0 0
        %1224 = vmatpush1.bf16.msra.mxu0 0
        %1225 = vmatprep.subr.bf16.mxu0 0
        %1226 = vmatpush1.bf16.msra.mxu0 0
        %1227 = vmatprep.subr.bf16.mxu0 0
        %1228 = vmatpush1.bf16.msra.mxu0 0
        %1229 = vmatprep.subr.bf16.mxu0 0
        %1230 = vmatpush1.bf16.msra.mxu0 0
        %1231 = vmatprep.subr.bf16.mxu0 0
        %1232 = vmatpush1.bf16.msra.mxu0 0
        %1233 = vmatprep.subr.bf16.mxu0 0
        %1234 = vmatpush1.bf16.msra.mxu0 0
        %1235 = vmatprep.subr.bf16.mxu0 0
        %1236 = vmatpush1.bf16.msra.mxu0 0
        %1237 = vmatprep.subr.bf16.mxu0 0
        %1238 = vmatpush1.bf16.msra.mxu0 0
        %1239 = vmatprep.subr.bf16.mxu0 0
        %1240 = vmatpush1.bf16.msra.mxu0 0
        %1241 = vmatprep.mubr.bf16.mxu0 0
        %1242 = vmatmul.mubr.bf16.gmra.mrb[0].mxu0 %v1203
        %v1243 = vpop.f32.mrb[0].mxu0
        %v1244 = vadd.f32 0.0, %v1243
        %v1245 = vpop.f32.mrb[0].mxu0
        %v1246 = vpop.f32.mrb[0].mxu0
        %v1247 = vpop.f32.mrb[0].mxu0
        %1248 = vdwg.mxu0
        %v1250 = vsel %vm1175, %v1199, 0
        %v1253 = vsel %vm1205, %v1201, 0
        %1255 = vmatprep.subr.bf16.mxu0 0
        %1256 = vmatpush1.bf16.msra.mxu0 %v1253
        %1257 = vmatprep.subr.bf16.mxu0 0
        %1258 = vmatpush1.bf16.msra.mxu0 0
        %1259 = vmatprep.subr.bf16.mxu0 0
        %1260 = vmatpush1.bf16.msra.mxu0 0
        %1261 = vmatprep.subr.bf16.mxu0 0
        %1262 = vmatpush1.bf16.msra.mxu0 0
        %1263 = vmatprep.subr.bf16.mxu0 0
        %1264 = vmatpush1.bf16.msra.mxu0 0
        %1265 = vmatprep.subr.bf16.mxu0 0
        %1266 = vmatpush1.bf16.msra.mxu0 0
        %1267 = vmatprep.subr.bf16.mxu0 0
        %1268 = vmatpush1.bf16.msra.mxu0 0
        %1269 = vmatprep.subr.bf16.mxu0 0
        %1270 = vmatpush1.bf16.msra.mxu0 0
        %1271 = vmatprep.subr.bf16.mxu0 0
        %1272 = vmatpush1.bf16.msra.mxu0 0
        %1273 = vmatprep.subr.bf16.mxu0 0
        %1274 = vmatpush1.bf16.msra.mxu0 0
        %1275 = vmatprep.subr.bf16.mxu0 0
        %1276 = vmatpush1.bf16.msra.mxu0 0
        %1277 = vmatprep.subr.bf16.mxu0 0
        %1278 = vmatpush1.bf16.msra.mxu0 0
        %1279 = vmatprep.subr.bf16.mxu0 0
        %1280 = vmatpush1.bf16.msra.mxu0 0
        %1281 = vmatprep.subr.bf16.mxu0 0
        %1282 = vmatpush1.bf16.msra.mxu0 0
        %1283 = vmatprep.subr.bf16.mxu0 0
        %1284 = vmatpush1.bf16.msra.mxu0 0
        %1285 = vmatprep.subr.bf16.mxu0 0
        %1286 = vmatpush1.bf16.msra.mxu0 0
        %1287 = vmatprep.mubr.bf16.mxu0 0
        %1288 = vmatmul.mubr.bf16.gmra.mrb[0].mxu0 %v1250
        %v1289 = vpop.f32.mrb[0].mxu0
        %v1290 = vadd.f32 0.0, %v1289
        %v1291 = vpop.f32.mrb[0].mxu0
        %v1292 = vpop.f32.mrb[0].mxu0
        %v1293 = vpop.f32.mrb[0].mxu0
        %1294 = vdwg.mxu0
        %v1295 = vpack.c.bf16 %v1244, %v1244
        %v1296 = vpack.c.bf16 %v1290, %v1290
        %v1299 = vunpack.c.l.b16 %v754
        %v1300 = vunpack.c.l.b16 %v755
        %v1301 = vpack.c.b16 %v1300, %v1299
        %v1304 = vsel %vm1082, %v1295, 0
        %1306 = vmatprep.subr.bf16.mxu0 0
        %1307 = vmatpush1.bf16.msra.mxu0 %v1301
        %1308 = vmatprep.subr.bf16.mxu0 0
        %1309 = vmatpush1.bf16.msra.mxu0 0
        %1310 = vmatprep.subr.bf16.mxu0 0
        %1311 = vmatpush1.bf16.msra.mxu0 0
        %1312 = vmatprep.subr.bf16.mxu0 0
        %1313 = vmatpush1.bf16.msra.mxu0 0
        %1314 = vmatprep.subr.bf16.mxu0 0
        %1315 = vmatpush1.bf16.msra.mxu0 0
        %1316 = vmatprep.subr.bf16.mxu0 0
        %1317 = vmatpush1.bf16.msra.mxu0 0
        %1318 = vmatprep.subr.bf16.mxu0 0
        %1319 = vmatpush1.bf16.msra.mxu0 0
        %1320 = vmatprep.subr.bf16.mxu0 0
        %1321 = vmatpush1.bf16.msra.mxu0 0
        %1322 = vmatprep.subr.bf16.mxu0 0
        %1323 = vmatpush1.bf16.msra.mxu0 0
        %1324 = vmatprep.subr.bf16.mxu0 0
        %1325 = vmatpush1.bf16.msra.mxu0 0
        %1326 = vmatprep.subr.bf16.mxu0 0
        %1327 = vmatpush1.bf16.msra.mxu0 0
        %1328 = vmatprep.subr.bf16.mxu0 0
        %1329 = vmatpush1.bf16.msra.mxu0 0
        %1330 = vmatprep.subr.bf16.mxu0 0
        %1331 = vmatpush1.bf16.msra.mxu0 0
        %1332 = vmatprep.subr.bf16.mxu0 0
        %1333 = vmatpush1.bf16.msra.mxu0 0
        %1334 = vmatprep.subr.bf16.mxu0 0
        %1335 = vmatpush1.bf16.msra.mxu0 0
        %1336 = vmatprep.subr.bf16.mxu0 0
        %1337 = vmatpush1.bf16.msra.mxu0 0
        %1338 = vmatprep.mubr.bf16.mxu0 0
        %1339 = vmatmul.mubr.bf16.gmra.mrb[0].mxu0 %v1304
        %v1340 = vpop.f32.mrb[0].mxu0
        %v1341 = vadd.f32 0.0, %v1340
        %v1342 = vpop.f32.mrb[0].mxu0
        %v1343 = vpop.f32.mrb[0].mxu0
        %v1344 = vpop.f32.mrb[0].mxu0
        %1345 = vdwg.mxu0
        %v1348 = vunpack.c.l.b16 %v756
        %v1349 = vunpack.c.l.b16 %v757
        %v1350 = vpack.c.b16 %v1349, %v1348
        %v1353 = vsel %vm1082, %v1296, 0
        %1355 = vmatprep.subr.bf16.mxu0 0
        %1356 = vmatpush1.bf16.msra.mxu0 %v1350
        %1357 = vmatprep.subr.bf16.mxu0 0
        %1358 = vmatpush1.bf16.msra.mxu0 0
        %1359 = vmatprep.subr.bf16.mxu0 0
        %1360 = vmatpush1.bf16.msra.mxu0 0
        %1361 = vmatprep.subr.bf16.mxu0 0
        %1362 = vmatpush1.bf16.msra.mxu0 0
        %1363 = vmatprep.subr.bf16.mxu0 0
        %1364 = vmatpush1.bf16.msra.mxu0 0
        %1365 = vmatprep.subr.bf16.mxu0 0
        %1366 = vmatpush1.bf16.msra.mxu0 0
        %1367 = vmatprep.subr.bf16.mxu0 0
        %1368 = vmatpush1.bf16.msra.mxu0 0
        %1369 = vmatprep.subr.bf16.mxu0 0
        %1370 = vmatpush1.bf16.msra.mxu0 0
        %1371 = vmatprep.subr.bf16.mxu0 0
        %1372 = vmatpush1.bf16.msra.mxu0 0
        %1373 = vmatprep.subr.bf16.mxu0 0
        %1374 = vmatpush1.bf16.msra.mxu0 0
        %1375 = vmatprep.subr.bf16.mxu0 0
        %1376 = vmatpush1.bf16.msra.mxu0 0
        %1377 = vmatprep.subr.bf16.mxu0 0
        %1378 = vmatpush1.bf16.msra.mxu0 0
        %1379 = vmatprep.subr.bf16.mxu0 0
        %1380 = vmatpush1.bf16.msra.mxu0 0
        %1381 = vmatprep.subr.bf16.mxu0 0
        %1382 = vmatpush1.bf16.msra.mxu0 0
        %1383 = vmatprep.subr.bf16.mxu0 0
        %1384 = vmatpush1.bf16.msra.mxu0 0
        %1385 = vmatprep.subr.bf16.mxu0 0
        %1386 = vmatpush1.bf16.msra.mxu0 0
        %1387 = vmatprep.mubr.bf16.mxu0 0
        %1388 = vmatmul.mubr.bf16.gmra.mrb[0].mxu0 %v1353
        %v1389 = vpop.f32.mrb[0].mxu0
        %v1390 = vadd.f32 0.0, %v1389
        %v1391 = vpop.f32.mrb[0].mxu0
        %v1392 = vpop.f32.mrb[0].mxu0
        %v1393 = vpop.f32.mrb[0].mxu0
        %1394 = vdwg.mxu0
        %v1395 = vsel %vm701, %v1341, 0.0
        %v1396 = vsel %vm701, %v1390, 0.0
        %v1397 = vadd.f32 %v1395, %v1396
        %v1398 = vadd.f32 %v1397, %v729
        %v1399 = vsel %vm701, %v1398, 0.0
        %1400 = vadd.xlane.f32.xlu0 %v1399
        %v1401 = vpop.xlane.xlu0 %1400
        %v1402 = vmul.f32 %v1401, %v705
        %v1403 = vsub.f32 %v1398, %v1402
        %v1404 = vmul.f32 %v1403, %v1403
        %v1405 = vsel %vm701, %v1404, 0.0
        %1406 = vadd.xlane.f32.xlu0 %v1405
        %v1407 = vpop.xlane.xlu0 %1406
        %v1408 = vmul.f32 %v1407, %v705
        %v1409 = vadd.f32 %v1408, 1e-06
        %v1410 = vrsqrt.pop %v1409
        %v1411 = vmul.f32 %v1403, %v1410
        %v1413 = vlaneseq
        %v1414 = vshrl.u32 %v1413, 7
        %v1415 = vsub.s32 0, %v1414
        %v1416 = vrot.slane %v758, %v1415
        %v1418 = vmul.f32 %v1411, %v1416
        %v1420 = vlaneseq
        %v1421 = vshrl.u32 %v1420, 7
        %v1422 = vsub.s32 0, %v1421
        %v1423 = vrot.slane %v759, %v1422
        %v1425 = vadd.f32 %v1418, %v1423
        %v1426 = vld [vmem:[%s10] sm:$0xf]
        %v1427 = vld [vmem:[%s10 + $0x4] sm:$0xf]
        %v1428 = vld [vmem:[%s10 + $0x8] sm:$0xf]
        %v1429 = vld [vmem:[%s10 + $0xc] sm:$0xf]
        %v1430 = vld [vmem:[%s10 + $0x10] sm:$0xf]
        %v1431 = vld [vmem:[%s10 + $0x14] sm:$0xf]
        %v1432 = vld [vmem:[%s10 + $0x18] sm:$0xf]
        %v1433 = vld [vmem:[%s10 + $0x1c] sm:$0xf]
        %v1434 = vld [vmem:[%s11] sm:$0xf]
        %v1435 = vld [vmem:[%s11 + $0x4] sm:$0xf]
        %v1436 = vld [vmem:[%s11 + $0x8] sm:$0xf]
        %v1437 = vld [vmem:[%s11 + $0xc] sm:$0xf]
        %v1438 = vld [vmem:[%s11 + $0x10] sm:$0xf]
        %v1439 = vld [vmem:[%s11 + $0x14] sm:$0xf]
        %v1440 = vld [vmem:[%s11 + $0x18] sm:$0xf]
        %v1441 = vld [vmem:[%s11 + $0x1c] sm:$0xf]
        %v1442 = vld [vmem:[%s12] sm:$0xf]
        %v1443 = vld [vmem:[%s12 + $0x4] sm:$0xf]
        %v1444 = vld [vmem:[%s12 + $0x8] sm:$0xf]
        %v1445 = vld [vmem:[%s12 + $0xc] sm:$0xf]
        %v1446 = vld [vmem:[%s12 + $0x10] sm:$0xf]
        %v1447 = vld [vmem:[%s12 + $0x14] sm:$0xf]
        %v1448 = vld [vmem:[%s12 + $0x18] sm:$0xf]
        %v1449 = vld [vmem:[%s12 + $0x1c] sm:$0xf]
        %v1450 = vld [vmem:[%s13] sm:$0xf]
        %v1451 = vld [vmem:[%s13 + $0x4] sm:$0xf]
        %v1452 = vld [vmem:[%s13 + $0x8] sm:$0xf]
        %v1453 = vld [vmem:[%s13 + $0xc] sm:$0xf]
        %v1454 = vld [vmem:[%s14] sm:$0x1]
        %v1455 = vld [vmem:[%s15] sm:$0x1]
        %v1456 = vpack.c.bf16 %v1425, %v1425
        %v1457 = vpack.c.bf16 %v698, %v698
        %v1462 = vunpack.c.l.b16 %v1426
        %v1463 = vunpack.c.l.b16 %v1427
        %v1464 = vunpack.c.l.b16 %v1428
        %v1465 = vunpack.c.l.b16 %v1429
        %v1466 = vpack.c.b16 %v1463, %v1462
        %v1467 = vpack.c.b16 %v1465, %v1464
        %v1471 = vsel %vm701, %v1456, 0
        %1473 = vmatprep.subr.bf16.mxu0 0
        %1474 = vmatpush1.bf16.msra.mxu0 %v1466
        %1475 = vmatprep.subr.bf16.mxu0 0
        %1476 = vmatpush1.bf16.msra.mxu0 %v1467
        %1477 = vmatprep.subr.bf16.mxu0 0
        %1478 = vmatpush1.bf16.msra.mxu0 0
        %1479 = vmatprep.subr.bf16.mxu0 0
        %1480 = vmatpush1.bf16.msra.mxu0 0
        %1481 = vmatprep.subr.bf16.mxu0 0
        %1482 = vmatpush1.bf16.msra.mxu0 0
        %1483 = vmatprep.subr.bf16.mxu0 0
        %1484 = vmatpush1.bf16.msra.mxu0 0
        %1485 = vmatprep.subr.bf16.mxu0 0
        %1486 = vmatpush1.bf16.msra.mxu0 0
        %1487 = vmatprep.subr.bf16.mxu0 0
        %1488 = vmatpush1.bf16.msra.mxu0 0
        %1489 = vmatprep.subr.bf16.mxu0 0
        %1490 = vmatpush1.bf16.msra.mxu0 0
        %1491 = vmatprep.subr.bf16.mxu0 0
        %1492 = vmatpush1.bf16.msra.mxu0 0
        %1493 = vmatprep.subr.bf16.mxu0 0
        %1494 = vmatpush1.bf16.msra.mxu0 0
        %1495 = vmatprep.subr.bf16.mxu0 0
        %1496 = vmatpush1.bf16.msra.mxu0 0
        %1497 = vmatprep.subr.bf16.mxu0 0
        %1498 = vmatpush1.bf16.msra.mxu0 0
        %1499 = vmatprep.subr.bf16.mxu0 0
        %1500 = vmatpush1.bf16.msra.mxu0 0
        %1501 = vmatprep.subr.bf16.mxu0 0
        %1502 = vmatpush1.bf16.msra.mxu0 0
        %1503 = vmatprep.subr.bf16.mxu0 0
        %1504 = vmatpush1.bf16.msra.mxu0 0
        %1505 = vmatprep.mubr.bf16.mxu0 0
        %1506 = vmatmul.mubr.bf16.gmra.mrb[0].mxu0 %v1471
        %v1507 = vpop.f32.mrb[0].mxu0
        %v1508 = vadd.f32 0.0, %v1507
        %v1509 = vpop.f32.mrb[0].mxu0
        %v1510 = vpop.f32.mrb[0].mxu0
        %v1511 = vpop.f32.mrb[0].mxu0
        %1512 = vdwg.mxu0
        %v1517 = vunpack.c.l.b16 %v1430
        %v1518 = vunpack.c.l.b16 %v1431
        %v1519 = vunpack.c.l.b16 %v1432
        %v1520 = vunpack.c.l.b16 %v1433
        %v1521 = vpack.c.b16 %v1518, %v1517
        %v1522 = vpack.c.b16 %v1520, %v1519
        %1525 = vmatprep.subr.bf16.mxu0 0
        %1526 = vmatpush1.bf16.msra.mxu0 %v1521
        %1527 = vmatprep.subr.bf16.mxu0 0
        %1528 = vmatpush1.bf16.msra.mxu0 %v1522
        %1529 = vmatprep.subr.bf16.mxu0 0
        %1530 = vmatpush1.bf16.msra.mxu0 0
        %1531 = vmatprep.subr.bf16.mxu0 0
        %1532 = vmatpush1.bf16.msra.mxu0 0
        %1533 = vmatprep.subr.bf16.mxu0 0
        %1534 = vmatpush1.bf16.msra.mxu0 0
        %1535 = vmatprep.subr.bf16.mxu0 0
        %1536 = vmatpush1.bf16.msra.mxu0 0
        %1537 = vmatprep.subr.bf16.mxu0 0
        %1538 = vmatpush1.bf16.msra.mxu0 0
        %1539 = vmatprep.subr.bf16.mxu0 0
        %1540 = vmatpush1.bf16.msra.mxu0 0
        %1541 = vmatprep.subr.bf16.mxu0 0
        %1542 = vmatpush1.bf16.msra.mxu0 0
        %1543 = vmatprep.subr.bf16.mxu0 0
        %1544 = vmatpush1.bf16.msra.mxu0 0
        %1545 = vmatprep.subr.bf16.mxu0 0
        %1546 = vmatpush1.bf16.msra.mxu0 0
        %1547 = vmatprep.subr.bf16.mxu0 0
        %1548 = vmatpush1.bf16.msra.mxu0 0
        %1549 = vmatprep.subr.bf16.mxu0 0
        %1550 = vmatpush1.bf16.msra.mxu0 0
        %1551 = vmatprep.subr.bf16.mxu0 0
        %1552 = vmatpush1.bf16.msra.mxu0 0
        %1553 = vmatprep.subr.bf16.mxu0 0
        %1554 = vmatpush1.bf16.msra.mxu0 0
        %1555 = vmatprep.subr.bf16.mxu0 0
        %1556 = vmatpush1.bf16.msra.mxu0 0
        %1557 = vmatprep.mubr.bf16.mxu0 0
        %1558 = vmatmul.mubr.bf16.gmra.mrb[0].mxu0 %v1471
        %v1559 = vpop.f32.mrb[0].mxu0
        %v1560 = vadd.f32 0.0, %v1559
        %v1561 = vpop.f32.mrb[0].mxu0
        %v1562 = vpop.f32.mrb[0].mxu0
        %v1563 = vpop.f32.mrb[0].mxu0
        %1564 = vdwg.mxu0
        %v1565 = vmul.f32 %v1508, 0.25
        %v1566 = vmul.f32 %v1560, 0.25
        %v1571 = vunpack.c.l.b16 %v1434
        %v1572 = vunpack.c.l.b16 %v1435
        %v1573 = vunpack.c.l.b16 %v1436
        %v1574 = vunpack.c.l.b16 %v1437
        %v1575 = vpack.c.b16 %v1572, %v1571
        %v1576 = vpack.c.b16 %v1574, %v1573
        %v1580 = vsel %vm701, %v1457, 0
        %1582 = vmatprep.subr.bf16.mxu0 0
        %1583 = vmatpush1.bf16.msra.mxu0 %v1575
        %1584 = vmatprep.subr.bf16.mxu0 0
        %1585 = vmatpush1.bf16.msra.mxu0 %v1576
        %1586 = vmatprep.subr.bf16.mxu0 0
        %1587 = vmatpush1.bf16.msra.mxu0 0
        %1588 = vmatprep.subr.bf16.mxu0 0
        %1589 = vmatpush1.bf16.msra.mxu0 0
        %1590 = vmatprep.subr.bf16.mxu0 0
        %1591 = vmatpush1.bf16.msra.mxu0 0
        %1592 = vmatprep.subr.bf16.mxu0 0
        %1593 = vmatpush1.bf16.msra.mxu0 0
        %1594 = vmatprep.subr.bf16.mxu0 0
        %1595 = vmatpush1.bf16.msra.mxu0 0
        %1596 = vmatprep.subr.bf16.mxu0 0
        %1597 = vmatpush1.bf16.msra.mxu0 0
        %1598 = vmatprep.subr.bf16.mxu0 0
        %1599 = vmatpush1.bf16.msra.mxu0 0
        %1600 = vmatprep.subr.bf16.mxu0 0
        %1601 = vmatpush1.bf16.msra.mxu0 0
        %1602 = vmatprep.subr.bf16.mxu0 0
        %1603 = vmatpush1.bf16.msra.mxu0 0
        %1604 = vmatprep.subr.bf16.mxu0 0
        %1605 = vmatpush1.bf16.msra.mxu0 0
        %1606 = vmatprep.subr.bf16.mxu0 0
        %1607 = vmatpush1.bf16.msra.mxu0 0
        %1608 = vmatprep.subr.bf16.mxu0 0
        %1609 = vmatpush1.bf16.msra.mxu0 0
        %1610 = vmatprep.subr.bf16.mxu0 0
        %1611 = vmatpush1.bf16.msra.mxu0 0
        %1612 = vmatprep.subr.bf16.mxu0 0
        %1613 = vmatpush1.bf16.msra.mxu0 0
        %1614 = vmatprep.mubr.bf16.mxu0 0
        %1615 = vmatmul.mubr.bf16.gmra.mrb[0].mxu0 %v1580
        %v1616 = vpop.f32.mrb[0].mxu0
        %v1617 = vadd.f32 0.0, %v1616
        %v1618 = vpop.f32.mrb[0].mxu0
        %v1619 = vpop.f32.mrb[0].mxu0
        %v1620 = vpop.f32.mrb[0].mxu0
        %1621 = vdwg.mxu0
        %v1626 = vunpack.c.l.b16 %v1438
        %v1627 = vunpack.c.l.b16 %v1439
        %v1628 = vunpack.c.l.b16 %v1440
        %v1629 = vunpack.c.l.b16 %v1441
        %v1630 = vpack.c.b16 %v1627, %v1626
        %v1631 = vpack.c.b16 %v1629, %v1628
        %1634 = vmatprep.subr.bf16.mxu0 0
        %1635 = vmatpush1.bf16.msra.mxu0 %v1630
        %1636 = vmatprep.subr.bf16.mxu0 0
        %1637 = vmatpush1.bf16.msra.mxu0 %v1631
        %1638 = vmatprep.subr.bf16.mxu0 0
        %1639 = vmatpush1.bf16.msra.mxu0 0
        %1640 = vmatprep.subr.bf16.mxu0 0
        %1641 = vmatpush1.bf16.msra.mxu0 0
        %1642 = vmatprep.subr.bf16.mxu0 0
        %1643 = vmatpush1.bf16.msra.mxu0 0
        %1644 = vmatprep.subr.bf16.mxu0 0
        %1645 = vmatpush1.bf16.msra.mxu0 0
        %1646 = vmatprep.subr.bf16.mxu0 0
        %1647 = vmatpush1.bf16.msra.mxu0 0
        %1648 = vmatprep.subr.bf16.mxu0 0
        %1649 = vmatpush1.bf16.msra.mxu0 0
        %1650 = vmatprep.subr.bf16.mxu0 0
        %1651 = vmatpush1.bf16.msra.mxu0 0
        %1652 = vmatprep.subr.bf16.mxu0 0
        %1653 = vmatpush1.bf16.msra.mxu0 0
        %1654 = vmatprep.subr.bf16.mxu0 0
        %1655 = vmatpush1.bf16.msra.mxu0 0
        %1656 = vmatprep.subr.bf16.mxu0 0
        %1657 = vmatpush1.bf16.msra.mxu0 0
        %1658 = vmatprep.subr.bf16.mxu0 0
        %1659 = vmatpush1.bf16.msra.mxu0 0
        %1660 = vmatprep.subr.bf16.mxu0 0
        %1661 = vmatpush1.bf16.msra.mxu0 0
        %1662 = vmatprep.subr.bf16.mxu0 0
        %1663 = vmatpush1.bf16.msra.mxu0 0
        %1664 = vmatprep.subr.bf16.mxu0 0
        %1665 = vmatpush1.bf16.msra.mxu0 0
        %1666 = vmatprep.mubr.bf16.mxu0 0
        %1667 = vmatmul.mubr.bf16.gmra.mrb[0].mxu0 %v1580
        %v1668 = vpop.f32.mrb[0].mxu0
        %v1669 = vadd.f32 0.0, %v1668
        %v1670 = vpop.f32.mrb[0].mxu0
        %v1671 = vpop.f32.mrb[0].mxu0
        %v1672 = vpop.f32.mrb[0].mxu0
        %1673 = vdwg.mxu0
        %v1678 = vunpack.c.l.b16 %v1442
        %v1679 = vunpack.c.l.b16 %v1443
        %v1680 = vunpack.c.l.b16 %v1444
        %v1681 = vunpack.c.l.b16 %v1445
        %v1682 = vpack.c.b16 %v1679, %v1678
        %v1683 = vpack.c.b16 %v1681, %v1680
        %1686 = vmatprep.subr.bf16.mxu0 0
        %1687 = vmatpush1.bf16.msra.mxu0 %v1682
        %1688 = vmatprep.subr.bf16.mxu0 0
        %1689 = vmatpush1.bf16.msra.mxu0 %v1683
        %1690 = vmatprep.subr.bf16.mxu0 0
        %1691 = vmatpush1.bf16.msra.mxu0 0
        %1692 = vmatprep.subr.bf16.mxu0 0
        %1693 = vmatpush1.bf16.msra.mxu0 0
        %1694 = vmatprep.subr.bf16.mxu0 0
        %1695 = vmatpush1.bf16.msra.mxu0 0
        %1696 = vmatprep.subr.bf16.mxu0 0
        %1697 = vmatpush1.bf16.msra.mxu0 0
        %1698 = vmatprep.subr.bf16.mxu0 0
        %1699 = vmatpush1.bf16.msra.mxu0 0
        %1700 = vmatprep.subr.bf16.mxu0 0
        %1701 = vmatpush1.bf16.msra.mxu0 0
        %1702 = vmatprep.subr.bf16.mxu0 0
        %1703 = vmatpush1.bf16.msra.mxu0 0
        %1704 = vmatprep.subr.bf16.mxu0 0
        %1705 = vmatpush1.bf16.msra.mxu0 0
        %1706 = vmatprep.subr.bf16.mxu0 0
        %1707 = vmatpush1.bf16.msra.mxu0 0
        %1708 = vmatprep.subr.bf16.mxu0 0
        %1709 = vmatpush1.bf16.msra.mxu0 0
        %1710 = vmatprep.subr.bf16.mxu0 0
        %1711 = vmatpush1.bf16.msra.mxu0 0
        %1712 = vmatprep.subr.bf16.mxu0 0
        %1713 = vmatpush1.bf16.msra.mxu0 0
        %1714 = vmatprep.subr.bf16.mxu0 0
        %1715 = vmatpush1.bf16.msra.mxu0 0
        %1716 = vmatprep.subr.bf16.mxu0 0
        %1717 = vmatpush1.bf16.msra.mxu0 0
        %1718 = vmatprep.mubr.bf16.mxu0 0
        %1719 = vmatmul.mubr.bf16.gmra.mrb[0].mxu0 %v1580
        %v1720 = vpop.f32.mrb[0].mxu0
        %v1721 = vadd.f32 0.0, %v1720
        %v1722 = vpop.f32.mrb[0].mxu0
        %v1723 = vpop.f32.mrb[0].mxu0
        %v1724 = vpop.f32.mrb[0].mxu0
        %1725 = vdwg.mxu0
        %v1730 = vunpack.c.l.b16 %v1446
        %v1731 = vunpack.c.l.b16 %v1447
        %v1732 = vunpack.c.l.b16 %v1448
        %v1733 = vunpack.c.l.b16 %v1449
        %v1734 = vpack.c.b16 %v1731, %v1730
        %v1735 = vpack.c.b16 %v1733, %v1732
        %1738 = vmatprep.subr.bf16.mxu0 0
        %1739 = vmatpush1.bf16.msra.mxu0 %v1734
        %1740 = vmatprep.subr.bf16.mxu0 0
        %1741 = vmatpush1.bf16.msra.mxu0 %v1735
        %1742 = vmatprep.subr.bf16.mxu0 0
        %1743 = vmatpush1.bf16.msra.mxu0 0
        %1744 = vmatprep.subr.bf16.mxu0 0
        %1745 = vmatpush1.bf16.msra.mxu0 0
        %1746 = vmatprep.subr.bf16.mxu0 0
        %1747 = vmatpush1.bf16.msra.mxu0 0
        %1748 = vmatprep.subr.bf16.mxu0 0
        %1749 = vmatpush1.bf16.msra.mxu0 0
        %1750 = vmatprep.subr.bf16.mxu0 0
        %1751 = vmatpush1.bf16.msra.mxu0 0
        %1752 = vmatprep.subr.bf16.mxu0 0
        %1753 = vmatpush1.bf16.msra.mxu0 0
        %1754 = vmatprep.subr.bf16.mxu0 0
        %1755 = vmatpush1.bf16.msra.mxu0 0
        %1756 = vmatprep.subr.bf16.mxu0 0
        %1757 = vmatpush1.bf16.msra.mxu0 0
        %1758 = vmatprep.subr.bf16.mxu0 0
        %1759 = vmatpush1.bf16.msra.mxu0 0
        %1760 = vmatprep.subr.bf16.mxu0 0
        %1761 = vmatpush1.bf16.msra.mxu0 0
        %1762 = vmatprep.subr.bf16.mxu0 0
        %1763 = vmatpush1.bf16.msra.mxu0 0
        %1764 = vmatprep.subr.bf16.mxu0 0
        %1765 = vmatpush1.bf16.msra.mxu0 0
        %1766 = vmatprep.subr.bf16.mxu0 0
        %1767 = vmatpush1.bf16.msra.mxu0 0
        %1768 = vmatprep.subr.bf16.mxu0 0
        %1769 = vmatpush1.bf16.msra.mxu0 0
        %1770 = vmatprep.mubr.bf16.mxu0 0
        %1771 = vmatmul.mubr.bf16.gmra.mrb[0].mxu0 %v1580
        %v1772 = vpop.f32.mrb[0].mxu0
        %v1773 = vadd.f32 0.0, %v1772
        %v1774 = vpop.f32.mrb[0].mxu0
        %v1775 = vpop.f32.mrb[0].mxu0
        %v1776 = vpop.f32.mrb[0].mxu0
        %1777 = vdwg.mxu0
        %v1778 = vpack.c.bf16 %v1565, %v1565
        %v1779 = vpack.c.bf16 %v1566, %v1566
        %v1780 = vpack.c.bf16 %v1617, %v1617
        %v1781 = vpack.c.bf16 %v1669, %v1669
        %v1783 = vsel %vm1082, %v1778, 0
        %v1786 = vsel %vm1082, %v1780, 0
        %1788 = vmatprep.subr.bf16.mxu0 0
        %1789 = vmatpush1.bf16.xpose.msra.mxu0 %v1786
        %1790 = vmatprep.subr.bf16.mxu0 0
        %1791 = vmatpush1.bf16.xpose.msra.mxu0 0
        %1792 = vmatprep.subr.bf16.mxu0 0
        %1793 = vmatpush1.bf16.xpose.msra.mxu0 0
        %1794 = vmatprep.subr.bf16.mxu0 0
        %1795 = vmatpush1.bf16.xpose.msra.mxu0 0
        %1796 = vmatprep.subr.bf16.mxu0 0
        %1797 = vmatpush1.bf16.xpose.msra.mxu0 0
        %1798 = vmatprep.subr.bf16.mxu0 0
        %1799 = vmatpush1.bf16.xpose.msra.mxu0 0
        %1800 = vmatprep.subr.bf16.mxu0 0
        %1801 = vmatpush1.bf16.xpose.msra.mxu0 0
        %1802 = vmatprep.subr.bf16.mxu0 0
        %1803 = vmatpush1.bf16.xpose.msra.mxu0 0
        %1804 = vmatprep.subr.bf16.mxu0 0
        %1805 = vmatpush1.bf16.xpose.msra.mxu0 0
        %1806 = vmatprep.subr.bf16.mxu0 0
        %1807 = vmatpush1.bf16.xpose.msra.mxu0 0
        %1808 = vmatprep.subr.bf16.mxu0 0
        %1809 = vmatpush1.bf16.xpose.msra.mxu0 0
        %1810 = vmatprep.subr.bf16.mxu0 0
        %1811 = vmatpush1.bf16.xpose.msra.mxu0 0
        %1812 = vmatprep.subr.bf16.mxu0 0
        %1813 = vmatpush1.bf16.xpose.msra.mxu0 0
        %1814 = vmatprep.subr.bf16.mxu0 0
        %1815 = vmatpush1.bf16.xpose.msra.mxu0 0
        %1816 = vmatprep.subr.bf16.mxu0 0
        %1817 = vmatpush1.bf16.xpose.msra.mxu0 0
        %1818 = vmatprep.subr.bf16.mxu0 0
        %1819 = vmatpush1.bf16.xpose.msra.mxu0 0
        %1820 = vmatprep.mubr.bf16.mxu0 0
        %1821 = vmatmul.mubr.bf16.gmra.mrb[0].mxu0 %v1783
        %v1822 = vpop.f32.mrb[0].mxu0
        %v1823 = vadd.f32 0.0, %v1822
        %v1824 = vpop.f32.mrb[0].mxu0
        %v1825 = vpop.f32.mrb[0].mxu0
        %v1826 = vpop.f32.mrb[0].mxu0
        %1827 = vdwg.mxu0
        %v1829 = vsel %vm1082, %v1779, 0
        %v1832 = vsel %vm1082, %v1781, 0
        %1834 = vmatprep.subr.bf16.mxu0 0
        %1835 = vmatpush1.bf16.xpose.msra.mxu0 %v1832
        %1836 = vmatprep.subr.bf16.mxu0 0
        %1837 = vmatpush1.bf16.xpose.msra.mxu0 0
        %1838 = vmatprep.subr.bf16.mxu0 0
        %1839 = vmatpush1.bf16.xpose.msra.mxu0 0
        %1840 = vmatprep.subr.bf16.mxu0 0
        %1841 = vmatpush1.bf16.xpose.msra.mxu0 0
        %1842 = vmatprep.subr.bf16.mxu0 0
        %1843 = vmatpush1.bf16.xpose.msra.mxu0 0
        %1844 = vmatprep.subr.bf16.mxu0 0
        %1845 = vmatpush1.bf16.xpose.msra.mxu0 0
        %1846 = vmatprep.subr.bf16.mxu0 0
        %1847 = vmatpush1.bf16.xpose.msra.mxu0 0
        %1848 = vmatprep.subr.bf16.mxu0 0
        %1849 = vmatpush1.bf16.xpose.msra.mxu0 0
        %1850 = vmatprep.subr.bf16.mxu0 0
        %1851 = vmatpush1.bf16.xpose.msra.mxu0 0
        %1852 = vmatprep.subr.bf16.mxu0 0
        %1853 = vmatpush1.bf16.xpose.msra.mxu0 0
        %1854 = vmatprep.subr.bf16.mxu0 0
        %1855 = vmatpush1.bf16.xpose.msra.mxu0 0
        %1856 = vmatprep.subr.bf16.mxu0 0
        %1857 = vmatpush1.bf16.xpose.msra.mxu0 0
        %1858 = vmatprep.subr.bf16.mxu0 0
        %1859 = vmatpush1.bf16.xpose.msra.mxu0 0
        %1860 = vmatprep.subr.bf16.mxu0 0
        %1861 = vmatpush1.bf16.xpose.msra.mxu0 0
        %1862 = vmatprep.subr.bf16.mxu0 0
        %1863 = vmatpush1.bf16.xpose.msra.mxu0 0
        %1864 = vmatprep.subr.bf16.mxu0 0
        %1865 = vmatpush1.bf16.xpose.msra.mxu0 0
        %1866 = vmatprep.mubr.bf16.mxu0 0
        %1867 = vmatmul.mubr.bf16.gmra.mrb[0].mxu0 %v1829
        %v1868 = vpop.f32.mrb[0].mxu0
        %v1869 = vadd.f32 0.0, %v1868
        %v1870 = vpop.f32.mrb[0].mxu0
        %v1871 = vpop.f32.mrb[0].mxu0
        %v1872 = vpop.f32.mrb[0].mxu0
        %1873 = vdwg.mxu0
        %v1874 = vsel %vm1175, %v1823, -inf
        %1875 = vmax.xlane.f32.xlu0 %v1874
        %v1876 = vpop.xlane.xlu0 %1875
        %v1877 = vsel %vm1175, %v1869, -inf
        %1878 = vmax.xlane.f32.xlu0 %v1877
        %v1879 = vpop.xlane.xlu0 %1878
        %v1880 = vsub.f32 %v1823, %v1876
        %v1881 = vsub.f32 %v1869, %v1879
        %v1882 = vmul.f32 %v1880, 1.442695
        %v1883 = vpow.pop %v1882
        %v1884 = vmul.f32 %v1881, 1.442695
        %v1885 = vpow.pop %v1884
        %v1886 = vsel %vm1175, %v1883, 0.0
        %1887 = vadd.xlane.f32.xlu0 %v1886
        %v1888 = vpop.xlane.xlu0 %1887
        %v1889 = vsel %vm1175, %v1885, 0.0
        %1890 = vadd.xlane.f32.xlu0 %v1889
        %v1891 = vpop.xlane.xlu0 %1890
        %v1892 = vrcp.pop %v1888
        %v1893 = vrcp.pop %v1891
        %v1894 = vmul.f32 %v1883, %v1892
        %v1895 = vmul.f32 %v1885, %v1893
        %v1896 = vpack.c.bf16 %v1894, %v1894
        %v1897 = vpack.c.bf16 %v1895, %v1895
        %v1898 = vpack.c.bf16 %v1721, %v1721
        %v1899 = vpack.c.bf16 %v1773, %v1773
        %v1901 = vsel %vm1175, %v1896, 0
        %v1904 = vsel %vm1205, %v1898, 0
        %1906 = vmatprep.subr.bf16.mxu0 0
        %1907 = vmatpush1.bf16.msra.mxu0 %v1904
        %1908 = vmatprep.subr.bf16.mxu0 0
        %1909 = vmatpush1.bf16.msra.mxu0 0
        %1910 = vmatprep.subr.bf16.mxu0 0
        %1911 = vmatpush1.bf16.msra.mxu0 0
        %1912 = vmatprep.subr.bf16.mxu0 0
        %1913 = vmatpush1.bf16.msra.mxu0 0
        %1914 = vmatprep.subr.bf16.mxu0 0
        %1915 = vmatpush1.bf16.msra.mxu0 0
        %1916 = vmatprep.subr.bf16.mxu0 0
        %1917 = vmatpush1.bf16.msra.mxu0 0
        %1918 = vmatprep.subr.bf16.mxu0 0
        %1919 = vmatpush1.bf16.msra.mxu0 0
        %1920 = vmatprep.subr.bf16.mxu0 0
        %1921 = vmatpush1.bf16.msra.mxu0 0
        %1922 = vmatprep.subr.bf16.mxu0 0
        %1923 = vmatpush1.bf16.msra.mxu0 0
        %1924 = vmatprep.subr.bf16.mxu0 0
        %1925 = vmatpush1.bf16.msra.mxu0 0
        %1926 = vmatprep.subr.bf16.mxu0 0
        %1927 = vmatpush1.bf16.msra.mxu0 0
        %1928 = vmatprep.subr.bf16.mxu0 0
        %1929 = vmatpush1.bf16.msra.mxu0 0
        %1930 = vmatprep.subr.bf16.mxu0 0
        %1931 = vmatpush1.bf16.msra.mxu0 0
        %1932 = vmatprep.subr.bf16.mxu0 0
        %1933 = vmatpush1.bf16.msra.mxu0 0
        %1934 = vmatprep.subr.bf16.mxu0 0
        %1935 = vmatpush1.bf16.msra.mxu0 0
        %1936 = vmatprep.subr.bf16.mxu0 0
        %1937 = vmatpush1.bf16.msra.mxu0 0
        %1938 = vmatprep.mubr.bf16.mxu0 0
        %1939 = vmatmul.mubr.bf16.gmra.mrb[0].mxu0 %v1901
        %v1940 = vpop.f32.mrb[0].mxu0
        %v1941 = vadd.f32 0.0, %v1940
        %v1942 = vpop.f32.mrb[0].mxu0
        %v1943 = vpop.f32.mrb[0].mxu0
        %v1944 = vpop.f32.mrb[0].mxu0
        %1945 = vdwg.mxu0
        %v1947 = vsel %vm1175, %v1897, 0
        %v1950 = vsel %vm1205, %v1899, 0
        %1952 = vmatprep.subr.bf16.mxu0 0
        %1953 = vmatpush1.bf16.msra.mxu0 %v1950
        %1954 = vmatprep.subr.bf16.mxu0 0
        %1955 = vmatpush1.bf16.msra.mxu0 0
        %1956 = vmatprep.subr.bf16.mxu0 0
        %1957 = vmatpush1.bf16.msra.mxu0 0
        %1958 = vmatprep.subr.bf16.mxu0 0
        %1959 = vmatpush1.bf16.msra.mxu0 0
        %1960 = vmatprep.subr.bf16.mxu0 0
        %1961 = vmatpush1.bf16.msra.mxu0 0
        %1962 = vmatprep.subr.bf16.mxu0 0
        %1963 = vmatpush1.bf16.msra.mxu0 0
        %1964 = vmatprep.subr.bf16.mxu0 0
        %1965 = vmatpush1.bf16.msra.mxu0 0
        %1966 = vmatprep.subr.bf16.mxu0 0
        %1967 = vmatpush1.bf16.msra.mxu0 0
        %1968 = vmatprep.subr.bf16.mxu0 0
        %1969 = vmatpush1.bf16.msra.mxu0 0
        %1970 = vmatprep.subr.bf16.mxu0 0
        %1971 = vmatpush1.bf16.msra.mxu0 0
        %1972 = vmatprep.subr.bf16.mxu0 0
        %1973 = vmatpush1.bf16.msra.mxu0 0
        %1974 = vmatprep.subr.bf16.mxu0 0
        %1975 = vmatpush1.bf16.msra.mxu0 0
        %1976 = vmatprep.subr.bf16.mxu0 0
        %1977 = vmatpush1.bf16.msra.mxu0 0
        %1978 = vmatprep.subr.bf16.mxu0 0
        %1979 = vmatpush1.bf16.msra.mxu0 0
        %1980 = vmatprep.subr.bf16.mxu0 0
        %1981 = vmatpush1.bf16.msra.mxu0 0
        %1982 = vmatprep.subr.bf16.mxu0 0
        %1983 = vmatpush1.bf16.msra.mxu0 0
        %1984 = vmatprep.mubr.bf16.mxu0 0
        %1985 = vmatmul.mubr.bf16.gmra.mrb[0].mxu0 %v1947
        %v1986 = vpop.f32.mrb[0].mxu0
        %v1987 = vadd.f32 0.0, %v1986
        %v1988 = vpop.f32.mrb[0].mxu0
        %v1989 = vpop.f32.mrb[0].mxu0
        %v1990 = vpop.f32.mrb[0].mxu0
        %1991 = vdwg.mxu0
        %v1992 = vpack.c.bf16 %v1941, %v1941
        %v1993 = vpack.c.bf16 %v1987, %v1987
        %v1996 = vunpack.c.l.b16 %v1450
        %v1997 = vunpack.c.l.b16 %v1451
        %v1998 = vpack.c.b16 %v1997, %v1996
        %v2001 = vsel %vm1082, %v1992, 0
        %2003 = vmatprep.subr.bf16.mxu0 0
        %2004 = vmatpush1.bf16.msra.mxu0 %v1998
        %2005 = vmatprep.subr.bf16.mxu0 0
        %2006 = vmatpush1.bf16.msra.mxu0 0
        %2007 = vmatprep.subr.bf16.mxu0 0
        %2008 = vmatpush1.bf16.msra.mxu0 0
        %2009 = vmatprep.subr.bf16.mxu0 0
        %2010 = vmatpush1.bf16.msra.mxu0 0
        %2011 = vmatprep.subr.bf16.mxu0 0
        %2012 = vmatpush1.bf16.msra.mxu0 0
        %2013 = vmatprep.subr.bf16.mxu0 0
        %2014 = vmatpush1.bf16.msra.mxu0 0
        %2015 = vmatprep.subr.bf16.mxu0 0
        %2016 = vmatpush1.bf16.msra.mxu0 0
        %2017 = vmatprep.subr.bf16.mxu0 0
        %2018 = vmatpush1.bf16.msra.mxu0 0
        %2019 = vmatprep.subr.bf16.mxu0 0
        %2020 = vmatpush1.bf16.msra.mxu0 0
        %2021 = vmatprep.subr.bf16.mxu0 0
        %2022 = vmatpush1.bf16.msra.mxu0 0
        %2023 = vmatprep.subr.bf16.mxu0 0
        %2024 = vmatpush1.bf16.msra.mxu0 0
        %2025 = vmatprep.subr.bf16.mxu0 0
        %2026 = vmatpush1.bf16.msra.mxu0 0
        %2027 = vmatprep.subr.bf16.mxu0 0
        %2028 = vmatpush1.bf16.msra.mxu0 0
        %2029 = vmatprep.subr.bf16.mxu0 0
        %2030 = vmatpush1.bf16.msra.mxu0 0
        %2031 = vmatprep.subr.bf16.mxu0 0
        %2032 = vmatpush1.bf16.msra.mxu0 0
        %2033 = vmatprep.subr.bf16.mxu0 0
        %2034 = vmatpush1.bf16.msra.mxu0 0
        %2035 = vmatprep.mubr.bf16.mxu0 0
        %2036 = vmatmul.mubr.bf16.gmra.mrb[0].mxu0 %v2001
        %v2037 = vpop.f32.mrb[0].mxu0
        %v2038 = vadd.f32 0.0, %v2037
        %v2039 = vpop.f32.mrb[0].mxu0
        %v2040 = vpop.f32.mrb[0].mxu0
        %v2041 = vpop.f32.mrb[0].mxu0
        %2042 = vdwg.mxu0
        %v2045 = vunpack.c.l.b16 %v1452
        %v2046 = vunpack.c.l.b16 %v1453
        %v2047 = vpack.c.b16 %v2046, %v2045
        %v2050 = vsel %vm1082, %v1993, 0
        %2052 = vmatprep.subr.bf16.mxu0 0
        %2053 = vmatpush1.bf16.msra.mxu0 %v2047
        %2054 = vmatprep.subr.bf16.mxu0 0
        %2055 = vmatpush1.bf16.msra.mxu0 0
        %2056 = vmatprep.subr.bf16.mxu0 0
        %2057 = vmatpush1.bf16.msra.mxu0 0
        %2058 = vmatprep.subr.bf16.mxu0 0
        %2059 = vmatpush1.bf16.msra.mxu0 0
        %2060 = vmatprep.subr.bf16.mxu0 0
        %2061 = vmatpush1.bf16.msra.mxu0 0
        %2062 = vmatprep.subr.bf16.mxu0 0
        %2063 = vmatpush1.bf16.msra.mxu0 0
        %2064 = vmatprep.subr.bf16.mxu0 0
        %2065 = vmatpush1.bf16.msra.mxu0 0
        %2066 = vmatprep.subr.bf16.mxu0 0
        %2067 = vmatpush1.bf16.msra.mxu0 0
        %2068 = vmatprep.subr.bf16.mxu0 0
        %2069 = vmatpush1.bf16.msra.mxu0 0
        %2070 = vmatprep.subr.bf16.mxu0 0
        %2071 = vmatpush1.bf16.msra.mxu0 0
        %2072 = vmatprep.subr.bf16.mxu0 0
        %2073 = vmatpush1.bf16.msra.mxu0 0
        %2074 = vmatprep.subr.bf16.mxu0 0
        %2075 = vmatpush1.bf16.msra.mxu0 0
        %2076 = vmatprep.subr.bf16.mxu0 0
        %2077 = vmatpush1.bf16.msra.mxu0 0
        %2078 = vmatprep.subr.bf16.mxu0 0
        %2079 = vmatpush1.bf16.msra.mxu0 0
        %2080 = vmatprep.subr.bf16.mxu0 0
        %2081 = vmatpush1.bf16.msra.mxu0 0
        %2082 = vmatprep.subr.bf16.mxu0 0
        %2083 = vmatpush1.bf16.msra.mxu0 0
        %2084 = vmatprep.mubr.bf16.mxu0 0
        %2085 = vmatmul.mubr.bf16.gmra.mrb[0].mxu0 %v2050
        %v2086 = vpop.f32.mrb[0].mxu0
        %v2087 = vadd.f32 0.0, %v2086
        %v2088 = vpop.f32.mrb[0].mxu0
        %v2089 = vpop.f32.mrb[0].mxu0
        %v2090 = vpop.f32.mrb[0].mxu0
        %2091 = vdwg.mxu0
        %v2092 = vsel %vm701, %v2038, 0.0
        %v2093 = vsel %vm701, %v2087, 0.0
        %v2094 = vadd.f32 %v2092, %v2093
        %v2095 = vadd.f32 %v2094, %v1425
        %v2096 = vsel %vm701, %v2095, 0.0
        %2097 = vadd.xlane.f32.xlu0 %v2096
        %v2098 = vpop.xlane.xlu0 %2097
        %v2099 = vmul.f32 %v2098, %v705
        %v2100 = vsub.f32 %v2095, %v2099
        %v2101 = vmul.f32 %v2100, %v2100
        %v2102 = vsel %vm701, %v2101, 0.0
        %2103 = vadd.xlane.f32.xlu0 %v2102
        %v2104 = vpop.xlane.xlu0 %2103
        %v2105 = vmul.f32 %v2104, %v705
        %v2106 = vadd.f32 %v2105, 1e-06
        %v2107 = vrsqrt.pop %v2106
        %v2108 = vmul.f32 %v2100, %v2107
        %v2110 = vlaneseq
        %v2111 = vshrl.u32 %v2110, 7
        %v2112 = vsub.s32 0, %v2111
        %v2113 = vrot.slane %v1454, %v2112
        %v2115 = vmul.f32 %v2108, %v2113
        %v2117 = vlaneseq
        %v2118 = vshrl.u32 %v2117, 7
        %v2119 = vsub.s32 0, %v2118
        %v2120 = vrot.slane %v1455, %v2119
        %v2122 = vadd.f32 %v2115, %v2120
        %v2123 = vld [vmem:[%s16] sm:$0xf]
        %v2124 = vld [vmem:[%s16 + $0x4] sm:$0xf]
        %v2125 = vld [vmem:[%s16 + $0x8] sm:$0xf]
        %v2126 = vld [vmem:[%s16 + $0xc] sm:$0xf]
        %v2127 = vld [vmem:[%s17] sm:$0x1]
        %v2128 = vld [vmem:[%s18] sm:$0xf]
        %v2129 = vld [vmem:[%s18 + $0x4] sm:$0xf]
        %v2130 = vld [vmem:[%s18 + $0x8] sm:$0xf]
        %v2131 = vld [vmem:[%s18 + $0xc] sm:$0xf]
        %v2132 = vld [vmem:[%s18 + $0x10] sm:$0xf]
        %v2133 = vld [vmem:[%s18 + $0x14] sm:$0xf]
        %v2134 = vld [vmem:[%s18 + $0x18] sm:$0xf]
        %v2135 = vld [vmem:[%s18 + $0x1c] sm:$0xf]
        %v2136 = vld [vmem:[%s19] sm:$0x1]
        %v2137 = vld [vmem:[%s20] sm:$0x1]
        %v2138 = vld [vmem:[%s21] sm:$0x1]
        %v2139 = vpack.c.bf16 %v2122, %v2122
        %v2141 = vlaneseq
        %v2142 = vshrl.u32 %v2141, 7
        %v2143 = vsub.s32 0, %v2142
        %v2144 = vrot.slane %v2127, %v2143
        %v2150 = vunpack.c.l.b16 %v2123
        %v2151 = vunpack.c.l.b16 %v2124
        %v2152 = vunpack.c.l.b16 %v2125
        %v2153 = vunpack.c.l.b16 %v2126
        %v2154 = vpack.c.b16 %v2151, %v2150
        %v2155 = vpack.c.b16 %v2153, %v2152
        %v2159 = vsel %vm701, %v2139, 0
        %2161 = vmatprep.subr.bf16.mxu0 0
        %2162 = vmatpush1.bf16.msra.mxu0 %v2154
        %2163 = vmatprep.subr.bf16.mxu0 0
        %2164 = vmatpush1.bf16.msra.mxu0 %v2155
        %2165 = vmatprep.subr.bf16.mxu0 0
        %2166 = vmatpush1.bf16.msra.mxu0 0
        %2167 = vmatprep.subr.bf16.mxu0 0
        %2168 = vmatpush1.bf16.msra.mxu0 0
        %2169 = vmatprep.subr.bf16.mxu0 0
        %2170 = vmatpush1.bf16.msra.mxu0 0
        %2171 = vmatprep.subr.bf16.mxu0 0
        %2172 = vmatpush1.bf16.msra.mxu0 0
        %2173 = vmatprep.subr.bf16.mxu0 0
        %2174 = vmatpush1.bf16.msra.mxu0 0
        %2175 = vmatprep.subr.bf16.mxu0 0
        %2176 = vmatpush1.bf16.msra.mxu0 0
        %2177 = vmatprep.subr.bf16.mxu0 0
        %2178 = vmatpush1.bf16.msra.mxu0 0
        %2179 = vmatprep.subr.bf16.mxu0 0
        %2180 = vmatpush1.bf16.msra.mxu0 0
        %2181 = vmatprep.subr.bf16.mxu0 0
        %2182 = vmatpush1.bf16.msra.mxu0 0
        %2183 = vmatprep.subr.bf16.mxu0 0
        %2184 = vmatpush1.bf16.msra.mxu0 0
        %2185 = vmatprep.subr.bf16.mxu0 0
        %2186 = vmatpush1.bf16.msra.mxu0 0
        %2187 = vmatprep.subr.bf16.mxu0 0
        %2188 = vmatpush1.bf16.msra.mxu0 0
        %2189 = vmatprep.subr.bf16.mxu0 0
        %2190 = vmatpush1.bf16.msra.mxu0 0
        %2191 = vmatprep.subr.bf16.mxu0 0
        %2192 = vmatpush1.bf16.msra.mxu0 0
        %2193 = vmatprep.mubr.bf16.mxu0 0
        %2194 = vmatmul.mubr.bf16.gmra.mrb[0].mxu0 %v2159
        %v2195 = vpop.f32.mrb[0].mxu0
        %v2196 = vadd.f32 %v2144, %v2195
        %v2197 = vpop.f32.mrb[0].mxu0
        %v2198 = vpop.f32.mrb[0].mxu0
        %v2199 = vpop.f32.mrb[0].mxu0
        %2200 = vdwg.mxu0
        %v2201 = vmax.f32 %v2196, 0.0
        %v2202 = vpack.c.bf16 %v2201, %v2201
        %v2204 = vlaneseq
        %v2205 = vshrl.u32 %v2204, 7
        %v2206 = vsub.s32 0, %v2205
        %v2207 = vrot.slane %v2136, %v2206
        %v2217 = vunpack.c.l.b16 %v2128
        %v2218 = vunpack.c.l.b16 %v2129
        %v2219 = vunpack.c.l.b16 %v2130
        %v2220 = vunpack.c.l.b16 %v2131
        %v2221 = vunpack.c.l.b16 %v2132
        %v2222 = vunpack.c.l.b16 %v2133
        %v2223 = vunpack.c.l.b16 %v2134
        %v2224 = vunpack.c.l.b16 %v2135
        %v2225 = vpack.c.b16 %v2218, %v2217
        %v2226 = vpack.c.b16 %v2220, %v2219
        %v2227 = vpack.c.b16 %v2222, %v2221
        %v2228 = vpack.c.b16 %v2224, %v2223
        %vm2233 = vcmask 523264
        %v2235 = vsel %vm2233, %v2202, 0
        %2237 = vmatprep.subr.bf16.mxu0 0
        %2238 = vmatpush1.bf16.msra.mxu0 %v2225
        %2239 = vmatprep.subr.bf16.mxu0 0
        %2240 = vmatpush1.bf16.msra.mxu0 %v2226
        %2241 = vmatprep.subr.bf16.mxu0 0
        %2242 = vmatpush1.bf16.msra.mxu0 %v2227
        %2243 = vmatprep.subr.bf16.mxu0 0
        %2244 = vmatpush1.bf16.msra.mxu0 %v2228
        %2245 = vmatprep.subr.bf16.mxu0 0
        %2246 = vmatpush1.bf16.msra.mxu0 0
        %2247 = vmatprep.subr.bf16.mxu0 0
        %2248 = vmatpush1.bf16.msra.mxu0 0
        %2249 = vmatprep.subr.bf16.mxu0 0
        %2250 = vmatpush1.bf16.msra.mxu0 0
        %2251 = vmatprep.subr.bf16.mxu0 0
        %2252 = vmatpush1.bf16.msra.mxu0 0
        %2253 = vmatprep.subr.bf16.mxu0 0
        %2254 = vmatpush1.bf16.msra.mxu0 0
        %2255 = vmatprep.subr.bf16.mxu0 0
        %2256 = vmatpush1.bf16.msra.mxu0 0
        %2257 = vmatprep.subr.bf16.mxu0 0
        %2258 = vmatpush1.bf16.msra.mxu0 0
        %2259 = vmatprep.subr.bf16.mxu0 0
        %2260 = vmatpush1.bf16.msra.mxu0 0
        %2261 = vmatprep.subr.bf16.mxu0 0
        %2262 = vmatpush1.bf16.msra.mxu0 0
        %2263 = vmatprep.subr.bf16.mxu0 0
        %2264 = vmatpush1.bf16.msra.mxu0 0
        %2265 = vmatprep.subr.bf16.mxu0 0
        %2266 = vmatpush1.bf16.msra.mxu0 0
        %2267 = vmatprep.subr.bf16.mxu0 0
        %2268 = vmatpush1.bf16.msra.mxu0 0
        %2269 = vmatprep.mubr.bf16.mxu0 0
        %2270 = vmatmul.mubr.bf16.gmra.mrb[0].mxu0 %v2235
        %v2271 = vpop.f32.mrb[0].mxu0
        %v2272 = vadd.f32 %v2207, %v2271
        %v2273 = vpop.f32.mrb[0].mxu0
        %v2274 = vpop.f32.mrb[0].mxu0
        %v2275 = vpop.f32.mrb[0].mxu0
        %2276 = vdwg.mxu0
        %v2277 = vadd.f32 %v2272, %v2122
        %v2278 = vsel %vm701, %v2277, 0.0
        %2279 = vadd.xlane.f32.xlu0 %v2278
        %v2280 = vpop.xlane.xlu0 %2279
        %v2281 = vmul.f32 %v2280, %v705
        %v2282 = vsub.f32 %v2277, %v2281
        %v2283 = vmul.f32 %v2282, %v2282
        %v2284 = vsel %vm701, %v2283, 0.0
        %2285 = vadd.xlane.f32.xlu0 %v2284
        %v2286 = vpop.xlane.xlu0 %2285
        %v2287 = vmul.f32 %v2286, %v705
        %v2288 = vadd.f32 %v2287, 1e-06
        %v2289 = vrsqrt.pop %v2288
        %v2290 = vmul.f32 %v2282, %v2289
        %v2292 = vlaneseq
        %v2293 = vshrl.u32 %v2292, 7
        %v2294 = vsub.s32 0, %v2293
        %v2295 = vrot.slane %v2137, %v2294
        %v2297 = vmul.f32 %v2290, %v2295
        %v2299 = vlaneseq
        %v2300 = vshrl.u32 %v2299, 7
        %v2301 = vsub.s32 0, %v2300
        %v2302 = vrot.slane %v2138, %v2301
        %v2304 = vadd.f32 %v2297, %v2302
        %s2305 = scalar_lea.vmem %s4, 32
        %v2306 = vld [vmem:[%s2305] sm:$0xf]
        %v2307 = vld [vmem:[%s2305 + $0x4] sm:$0xf]
        %v2308 = vld [vmem:[%s2305 + $0x8] sm:$0xf]
        %v2309 = vld [vmem:[%s2305 + $0xc] sm:$0xf]
        %v2310 = vld [vmem:[%s2305 + $0x10] sm:$0xf]
        %v2311 = vld [vmem:[%s2305 + $0x14] sm:$0xf]
        %v2312 = vld [vmem:[%s2305 + $0x18] sm:$0xf]
        %v2313 = vld [vmem:[%s2305 + $0x1c] sm:$0xf]
        %s2314 = scalar_lea.vmem %s5, 32
        %v2315 = vld [vmem:[%s2314] sm:$0xf]
        %v2316 = vld [vmem:[%s2314 + $0x4] sm:$0xf]
        %v2317 = vld [vmem:[%s2314 + $0x8] sm:$0xf]
        %v2318 = vld [vmem:[%s2314 + $0xc] sm:$0xf]
        %v2319 = vld [vmem:[%s2314 + $0x10] sm:$0xf]
        %v2320 = vld [vmem:[%s2314 + $0x14] sm:$0xf]
        %v2321 = vld [vmem:[%s2314 + $0x18] sm:$0xf]
        %v2322 = vld [vmem:[%s2314 + $0x1c] sm:$0xf]
        %s2323 = scalar_lea.vmem %s6, 32
        %v2324 = vld [vmem:[%s2323] sm:$0xf]
        %v2325 = vld [vmem:[%s2323 + $0x4] sm:$0xf]
        %v2326 = vld [vmem:[%s2323 + $0x8] sm:$0xf]
        %v2327 = vld [vmem:[%s2323 + $0xc] sm:$0xf]
        %v2328 = vld [vmem:[%s2323 + $0x10] sm:$0xf]
        %v2329 = vld [vmem:[%s2323 + $0x14] sm:$0xf]
        %v2330 = vld [vmem:[%s2323 + $0x18] sm:$0xf]
        %v2331 = vld [vmem:[%s2323 + $0x1c] sm:$0xf]
        %s2332 = scalar_lea.vmem %s7, 16
        %v2333 = vld [vmem:[%s2332] sm:$0xf]
        %v2334 = vld [vmem:[%s2332 + $0x4] sm:$0xf]
        %v2335 = vld [vmem:[%s2332 + $0x8] sm:$0xf]
        %v2336 = vld [vmem:[%s2332 + $0xc] sm:$0xf]
        %s2337 = scalar_lea.vmem %s8, 1
        %v2338 = vld [vmem:[%s2337] sm:$0x1]
        %s2339 = scalar_lea.vmem %s9, 1
        %v2340 = vld [vmem:[%s2339] sm:$0x1]
        %v2341 = vpack.c.bf16 %v2304, %v2304
        %v2346 = vunpack.c.l.b16 %v2306
        %v2347 = vunpack.c.l.b16 %v2307
        %v2348 = vunpack.c.l.b16 %v2308
        %v2349 = vunpack.c.l.b16 %v2309
        %v2350 = vpack.c.b16 %v2347, %v2346
        %v2351 = vpack.c.b16 %v2349, %v2348
        %v2355 = vsel %vm701, %v2341, 0
        %2357 = vmatprep.subr.bf16.mxu0 0
        %2358 = vmatpush1.bf16.msra.mxu0 %v2350
        %2359 = vmatprep.subr.bf16.mxu0 0
        %2360 = vmatpush1.bf16.msra.mxu0 %v2351
        %2361 = vmatprep.subr.bf16.mxu0 0
        %2362 = vmatpush1.bf16.msra.mxu0 0
        %2363 = vmatprep.subr.bf16.mxu0 0
        %2364 = vmatpush1.bf16.msra.mxu0 0
        %2365 = vmatprep.subr.bf16.mxu0 0
        %2366 = vmatpush1.bf16.msra.mxu0 0
        %2367 = vmatprep.subr.bf16.mxu0 0
        %2368 = vmatpush1.bf16.msra.mxu0 0
        %2369 = vmatprep.subr.bf16.mxu0 0
        %2370 = vmatpush1.bf16.msra.mxu0 0
        %2371 = vmatprep.subr.bf16.mxu0 0
        %2372 = vmatpush1.bf16.msra.mxu0 0
        %2373 = vmatprep.subr.bf16.mxu0 0
        %2374 = vmatpush1.bf16.msra.mxu0 0
        %2375 = vmatprep.subr.bf16.mxu0 0
        %2376 = vmatpush1.bf16.msra.mxu0 0
        %2377 = vmatprep.subr.bf16.mxu0 0
        %2378 = vmatpush1.bf16.msra.mxu0 0
        %2379 = vmatprep.subr.bf16.mxu0 0
        %2380 = vmatpush1.bf16.msra.mxu0 0
        %2381 = vmatprep.subr.bf16.mxu0 0
        %2382 = vmatpush1.bf16.msra.mxu0 0
        %2383 = vmatprep.subr.bf16.mxu0 0
        %2384 = vmatpush1.bf16.msra.mxu0 0
        %2385 = vmatprep.subr.bf16.mxu0 0
        %2386 = vmatpush1.bf16.msra.mxu0 0
        %2387 = vmatprep.subr.bf16.mxu0 0
        %2388 = vmatpush1.bf16.msra.mxu0 0
        %2389 = vmatprep.mubr.bf16.mxu0 0
        %2390 = vmatmul.mubr.bf16.gmra.mrb[0].mxu0 %v2355
        %v2391 = vpop.f32.mrb[0].mxu0
        %v2392 = vadd.f32 0.0, %v2391
        %v2393 = vpop.f32.mrb[0].mxu0
        %v2394 = vpop.f32.mrb[0].mxu0
        %v2395 = vpop.f32.mrb[0].mxu0
        %2396 = vdwg.mxu0
        %v2401 = vunpack.c.l.b16 %v2310
        %v2402 = vunpack.c.l.b16 %v2311
        %v2403 = vunpack.c.l.b16 %v2312
        %v2404 = vunpack.c.l.b16 %v2313
        %v2405 = vpack.c.b16 %v2402, %v2401
        %v2406 = vpack.c.b16 %v2404, %v2403
        %2409 = vmatprep.subr.bf16.mxu0 0
        %2410 = vmatpush1.bf16.msra.mxu0 %v2405
        %2411 = vmatprep.subr.bf16.mxu0 0
        %2412 = vmatpush1.bf16.msra.mxu0 %v2406
        %2413 = vmatprep.subr.bf16.mxu0 0
        %2414 = vmatpush1.bf16.msra.mxu0 0
        %2415 = vmatprep.subr.bf16.mxu0 0
        %2416 = vmatpush1.bf16.msra.mxu0 0
        %2417 = vmatprep.subr.bf16.mxu0 0
        %2418 = vmatpush1.bf16.msra.mxu0 0
        %2419 = vmatprep.subr.bf16.mxu0 0
        %2420 = vmatpush1.bf16.msra.mxu0 0
        %2421 = vmatprep.subr.bf16.mxu0 0
        %2422 = vmatpush1.bf16.msra.mxu0 0
        %2423 = vmatprep.subr.bf16.mxu0 0
        %2424 = vmatpush1.bf16.msra.mxu0 0
        %2425 = vmatprep.subr.bf16.mxu0 0
        %2426 = vmatpush1.bf16.msra.mxu0 0
        %2427 = vmatprep.subr.bf16.mxu0 0
        %2428 = vmatpush1.bf16.msra.mxu0 0
        %2429 = vmatprep.subr.bf16.mxu0 0
        %2430 = vmatpush1.bf16.msra.mxu0 0
        %2431 = vmatprep.subr.bf16.mxu0 0
        %2432 = vmatpush1.bf16.msra.mxu0 0
        %2433 = vmatprep.subr.bf16.mxu0 0
        %2434 = vmatpush1.bf16.msra.mxu0 0
        %2435 = vmatprep.subr.bf16.mxu0 0
        %2436 = vmatpush1.bf16.msra.mxu0 0
        %2437 = vmatprep.subr.bf16.mxu0 0
        %2438 = vmatpush1.bf16.msra.mxu0 0
        %2439 = vmatprep.subr.bf16.mxu0 0
        %2440 = vmatpush1.bf16.msra.mxu0 0
        %2441 = vmatprep.mubr.bf16.mxu0 0
        %2442 = vmatmul.mubr.bf16.gmra.mrb[0].mxu0 %v2355
        %v2443 = vpop.f32.mrb[0].mxu0
        %v2444 = vadd.f32 0.0, %v2443
        %v2445 = vpop.f32.mrb[0].mxu0
        %v2446 = vpop.f32.mrb[0].mxu0
        %v2447 = vpop.f32.mrb[0].mxu0
        %2448 = vdwg.mxu0
        %v2449 = vmul.f32 %v2392, 0.25
        %v2450 = vmul.f32 %v2444, 0.25
        %v2455 = vunpack.c.l.b16 %v2315
        %v2456 = vunpack.c.l.b16 %v2316
        %v2457 = vunpack.c.l.b16 %v2317
        %v2458 = vunpack.c.l.b16 %v2318
        %v2459 = vpack.c.b16 %v2456, %v2455
        %v2460 = vpack.c.b16 %v2458, %v2457
        %2463 = vmatprep.subr.bf16.mxu0 0
        %2464 = vmatpush1.bf16.msra.mxu0 %v2459
        %2465 = vmatprep.subr.bf16.mxu0 0
        %2466 = vmatpush1.bf16.msra.mxu0 %v2460
        %2467 = vmatprep.subr.bf16.mxu0 0
        %2468 = vmatpush1.bf16.msra.mxu0 0
        %2469 = vmatprep.subr.bf16.mxu0 0
        %2470 = vmatpush1.bf16.msra.mxu0 0
        %2471 = vmatprep.subr.bf16.mxu0 0
        %2472 = vmatpush1.bf16.msra.mxu0 0
        %2473 = vmatprep.subr.bf16.mxu0 0
        %2474 = vmatpush1.bf16.msra.mxu0 0
        %2475 = vmatprep.subr.bf16.mxu0 0
        %2476 = vmatpush1.bf16.msra.mxu0 0
        %2477 = vmatprep.subr.bf16.mxu0 0
        %2478 = vmatpush1.bf16.msra.mxu0 0
        %2479 = vmatprep.subr.bf16.mxu0 0
        %2480 = vmatpush1.bf16.msra.mxu0 0
        %2481 = vmatprep.subr.bf16.mxu0 0
        %2482 = vmatpush1.bf16.msra.mxu0 0
        %2483 = vmatprep.subr.bf16.mxu0 0
        %2484 = vmatpush1.bf16.msra.mxu0 0
        %2485 = vmatprep.subr.bf16.mxu0 0
        %2486 = vmatpush1.bf16.msra.mxu0 0
        %2487 = vmatprep.subr.bf16.mxu0 0
        %2488 = vmatpush1.bf16.msra.mxu0 0
        %2489 = vmatprep.subr.bf16.mxu0 0
        %2490 = vmatpush1.bf16.msra.mxu0 0
        %2491 = vmatprep.subr.bf16.mxu0 0
        %2492 = vmatpush1.bf16.msra.mxu0 0
        %2493 = vmatprep.subr.bf16.mxu0 0
        %2494 = vmatpush1.bf16.msra.mxu0 0
        %2495 = vmatprep.mubr.bf16.mxu0 0
        %2496 = vmatmul.mubr.bf16.gmra.mrb[0].mxu0 %v2355
        %v2497 = vpop.f32.mrb[0].mxu0
        %v2498 = vadd.f32 0.0, %v2497
        %v2499 = vpop.f32.mrb[0].mxu0
        %v2500 = vpop.f32.mrb[0].mxu0
        %v2501 = vpop.f32.mrb[0].mxu0
        %2502 = vdwg.mxu0
        %v2507 = vunpack.c.l.b16 %v2319
        %v2508 = vunpack.c.l.b16 %v2320
        %v2509 = vunpack.c.l.b16 %v2321
        %v2510 = vunpack.c.l.b16 %v2322
        %v2511 = vpack.c.b16 %v2508, %v2507
        %v2512 = vpack.c.b16 %v2510, %v2509
        %2515 = vmatprep.subr.bf16.mxu0 0
        %2516 = vmatpush1.bf16.msra.mxu0 %v2511
        %2517 = vmatprep.subr.bf16.mxu0 0
        %2518 = vmatpush1.bf16.msra.mxu0 %v2512
        %2519 = vmatprep.subr.bf16.mxu0 0
        %2520 = vmatpush1.bf16.msra.mxu0 0
        %2521 = vmatprep.subr.bf16.mxu0 0
        %2522 = vmatpush1.bf16.msra.mxu0 0
        %2523 = vmatprep.subr.bf16.mxu0 0
        %2524 = vmatpush1.bf16.msra.mxu0 0
        %2525 = vmatprep.subr.bf16.mxu0 0
        %2526 = vmatpush1.bf16.msra.mxu0 0
        %2527 = vmatprep.subr.bf16.mxu0 0
        %2528 = vmatpush1.bf16.msra.mxu0 0
        %2529 = vmatprep.subr.bf16.mxu0 0
        %2530 = vmatpush1.bf16.msra.mxu0 0
        %2531 = vmatprep.subr.bf16.mxu0 0
        %2532 = vmatpush1.bf16.msra.mxu0 0
        %2533 = vmatprep.subr.bf16.mxu0 0
        %2534 = vmatpush1.bf16.msra.mxu0 0
        %2535 = vmatprep.subr.bf16.mxu0 0
        %2536 = vmatpush1.bf16.msra.mxu0 0
        %2537 = vmatprep.subr.bf16.mxu0 0
        %2538 = vmatpush1.bf16.msra.mxu0 0
        %2539 = vmatprep.subr.bf16.mxu0 0
        %2540 = vmatpush1.bf16.msra.mxu0 0
        %2541 = vmatprep.subr.bf16.mxu0 0
        %2542 = vmatpush1.bf16.msra.mxu0 0
        %2543 = vmatprep.subr.bf16.mxu0 0
        %2544 = vmatpush1.bf16.msra.mxu0 0
        %2545 = vmatprep.subr.bf16.mxu0 0
        %2546 = vmatpush1.bf16.msra.mxu0 0
        %2547 = vmatprep.mubr.bf16.mxu0 0
        %2548 = vmatmul.mubr.bf16.gmra.mrb[0].mxu0 %v2355
        %v2549 = vpop.f32.mrb[0].mxu0
        %v2550 = vadd.f32 0.0, %v2549
        %v2551 = vpop.f32.mrb[0].mxu0
        %v2552 = vpop.f32.mrb[0].mxu0
        %v2553 = vpop.f32.mrb[0].mxu0
        %2554 = vdwg.mxu0
        %v2559 = vunpack.c.l.b16 %v2324
        %v2560 = vunpack.c.l.b16 %v2325
        %v2561 = vunpack.c.l.b16 %v2326
        %v2562 = vunpack.c.l.b16 %v2327
        %v2563 = vpack.c.b16 %v2560, %v2559
        %v2564 = vpack.c.b16 %v2562, %v2561
        %2567 = vmatprep.subr.bf16.mxu0 0
        %2568 = vmatpush1.bf16.msra.mxu0 %v2563
        %2569 = vmatprep.subr.bf16.mxu0 0
        %2570 = vmatpush1.bf16.msra.mxu0 %v2564
        %2571 = vmatprep.subr.bf16.mxu0 0
        %2572 = vmatpush1.bf16.msra.mxu0 0
        %2573 = vmatprep.subr.bf16.mxu0 0
        %2574 = vmatpush1.bf16.msra.mxu0 0
        %2575 = vmatprep.subr.bf16.mxu0 0
        %2576 = vmatpush1.bf16.msra.mxu0 0
        %2577 = vmatprep.subr.bf16.mxu0 0
        %2578 = vmatpush1.bf16.msra.mxu0 0
        %2579 = vmatprep.subr.bf16.mxu0 0
        %2580 = vmatpush1.bf16.msra.mxu0 0
        %2581 = vmatprep.subr.bf16.mxu0 0
        %2582 = vmatpush1.bf16.msra.mxu0 0
        %2583 = vmatprep.subr.bf16.mxu0 0
        %2584 = vmatpush1.bf16.msra.mxu0 0
        %2585 = vmatprep.subr.bf16.mxu0 0
        %2586 = vmatpush1.bf16.msra.mxu0 0
        %2587 = vmatprep.subr.bf16.mxu0 0
        %2588 = vmatpush1.bf16.msra.mxu0 0
        %2589 = vmatprep.subr.bf16.mxu0 0
        %2590 = vmatpush1.bf16.msra.mxu0 0
        %2591 = vmatprep.subr.bf16.mxu0 0
        %2592 = vmatpush1.bf16.msra.mxu0 0
        %2593 = vmatprep.subr.bf16.mxu0 0
        %2594 = vmatpush1.bf16.msra.mxu0 0
        %2595 = vmatprep.subr.bf16.mxu0 0
        %2596 = vmatpush1.bf16.msra.mxu0 0
        %2597 = vmatprep.subr.bf16.mxu0 0
        %2598 = vmatpush1.bf16.msra.mxu0 0
        %2599 = vmatprep.mubr.bf16.mxu0 0
        %2600 = vmatmul.mubr.bf16.gmra.mrb[0].mxu0 %v2355
        %v2601 = vpop.f32.mrb[0].mxu0
        %v2602 = vadd.f32 0.0, %v2601
        %v2603 = vpop.f32.mrb[0].mxu0
        %v2604 = vpop.f32.mrb[0].mxu0
        %v2605 = vpop.f32.mrb[0].mxu0
        %2606 = vdwg.mxu0
        %v2611 = vunpack.c.l.b16 %v2328
        %v2612 = vunpack.c.l.b16 %v2329
        %v2613 = vunpack.c.l.b16 %v2330
        %v2614 = vunpack.c.l.b16 %v2331
        %v2615 = vpack.c.b16 %v2612, %v2611
        %v2616 = vpack.c.b16 %v2614, %v2613
        %2619 = vmatprep.subr.bf16.mxu0 0
        %2620 = vmatpush1.bf16.msra.mxu0 %v2615
        %2621 = vmatprep.subr.bf16.mxu0 0
        %2622 = vmatpush1.bf16.msra.mxu0 %v2616
        %2623 = vmatprep.subr.bf16.mxu0 0
        %2624 = vmatpush1.bf16.msra.mxu0 0
        %2625 = vmatprep.subr.bf16.mxu0 0
        %2626 = vmatpush1.bf16.msra.mxu0 0
        %2627 = vmatprep.subr.bf16.mxu0 0
        %2628 = vmatpush1.bf16.msra.mxu0 0
        %2629 = vmatprep.subr.bf16.mxu0 0
        %2630 = vmatpush1.bf16.msra.mxu0 0
        %2631 = vmatprep.subr.bf16.mxu0 0
        %2632 = vmatpush1.bf16.msra.mxu0 0
        %2633 = vmatprep.subr.bf16.mxu0 0
        %2634 = vmatpush1.bf16.msra.mxu0 0
        %2635 = vmatprep.subr.bf16.mxu0 0
        %2636 = vmatpush1.bf16.msra.mxu0 0
        %2637 = vmatprep.subr.bf16.mxu0 0
        %2638 = vmatpush1.bf16.msra.mxu0 0
        %2639 = vmatprep.subr.bf16.mxu0 0
        %2640 = vmatpush1.bf16.msra.mxu0 0
        %2641 = vmatprep.subr.bf16.mxu0 0
        %2642 = vmatpush1.bf16.msra.mxu0 0
        %2643 = vmatprep.subr.bf16.mxu0 0
        %2644 = vmatpush1.bf16.msra.mxu0 0
        %2645 = vmatprep.subr.bf16.mxu0 0
        %2646 = vmatpush1.bf16.msra.mxu0 0
        %2647 = vmatprep.subr.bf16.mxu0 0
        %2648 = vmatpush1.bf16.msra.mxu0 0
        %2649 = vmatprep.subr.bf16.mxu0 0
        %2650 = vmatpush1.bf16.msra.mxu0 0
        %2651 = vmatprep.mubr.bf16.mxu0 0
        %2652 = vmatmul.mubr.bf16.gmra.mrb[0].mxu0 %v2355
        %v2653 = vpop.f32.mrb[0].mxu0
        %v2654 = vadd.f32 0.0, %v2653
        %v2655 = vpop.f32.mrb[0].mxu0
        %v2656 = vpop.f32.mrb[0].mxu0
        %v2657 = vpop.f32.mrb[0].mxu0
        %2658 = vdwg.mxu0
        %v2659 = vpack.c.bf16 %v2449, %v2449
        %v2660 = vpack.c.bf16 %v2450, %v2450
        %v2661 = vpack.c.bf16 %v2498, %v2498
        %v2662 = vpack.c.bf16 %v2550, %v2550
        %v2664 = vsel %vm1082, %v2659, 0
        %v2667 = vsel %vm1082, %v2661, 0
        %2669 = vmatprep.subr.bf16.mxu0 0
        %2670 = vmatpush1.bf16.xpose.msra.mxu0 %v2667
        %2671 = vmatprep.subr.bf16.mxu0 0
        %2672 = vmatpush1.bf16.xpose.msra.mxu0 0
        %2673 = vmatprep.subr.bf16.mxu0 0
        %2674 = vmatpush1.bf16.xpose.msra.mxu0 0
        %2675 = vmatprep.subr.bf16.mxu0 0
        %2676 = vmatpush1.bf16.xpose.msra.mxu0 0
        %2677 = vmatprep.subr.bf16.mxu0 0
        %2678 = vmatpush1.bf16.xpose.msra.mxu0 0
        %2679 = vmatprep.subr.bf16.mxu0 0
        %2680 = vmatpush1.bf16.xpose.msra.mxu0 0
        %2681 = vmatprep.subr.bf16.mxu0 0
        %2682 = vmatpush1.bf16.xpose.msra.mxu0 0
        %2683 = vmatprep.subr.bf16.mxu0 0
        %2684 = vmatpush1.bf16.xpose.msra.mxu0 0
        %2685 = vmatprep.subr.bf16.mxu0 0
        %2686 = vmatpush1.bf16.xpose.msra.mxu0 0
        %2687 = vmatprep.subr.bf16.mxu0 0
        %2688 = vmatpush1.bf16.xpose.msra.mxu0 0
        %2689 = vmatprep.subr.bf16.mxu0 0
        %2690 = vmatpush1.bf16.xpose.msra.mxu0 0
        %2691 = vmatprep.subr.bf16.mxu0 0
        %2692 = vmatpush1.bf16.xpose.msra.mxu0 0
        %2693 = vmatprep.subr.bf16.mxu0 0
        %2694 = vmatpush1.bf16.xpose.msra.mxu0 0
        %2695 = vmatprep.subr.bf16.mxu0 0
        %2696 = vmatpush1.bf16.xpose.msra.mxu0 0
        %2697 = vmatprep.subr.bf16.mxu0 0
        %2698 = vmatpush1.bf16.xpose.msra.mxu0 0
        %2699 = vmatprep.subr.bf16.mxu0 0
        %2700 = vmatpush1.bf16.xpose.msra.mxu0 0
        %2701 = vmatprep.mubr.bf16.mxu0 0
        %2702 = vmatmul.mubr.bf16.gmra.mrb[0].mxu0 %v2664
        %v2703 = vpop.f32.mrb[0].mxu0
        %v2704 = vadd.f32 0.0, %v2703
        %v2705 = vpop.f32.mrb[0].mxu0
        %v2706 = vpop.f32.mrb[0].mxu0
        %v2707 = vpop.f32.mrb[0].mxu0
        %2708 = vdwg.mxu0
        %v2710 = vsel %vm1082, %v2660, 0
        %v2713 = vsel %vm1082, %v2662, 0
        %2715 = vmatprep.subr.bf16.mxu0 0
        %2716 = vmatpush1.bf16.xpose.msra.mxu0 %v2713
        %2717 = vmatprep.subr.bf16.mxu0 0
        %2718 = vmatpush1.bf16.xpose.msra.mxu0 0
        %2719 = vmatprep.subr.bf16.mxu0 0
        %2720 = vmatpush1.bf16.xpose.msra.mxu0 0
        %2721 = vmatprep.subr.bf16.mxu0 0
        %2722 = vmatpush1.bf16.xpose.msra.mxu0 0
        %2723 = vmatprep.subr.bf16.mxu0 0
        %2724 = vmatpush1.bf16.xpose.msra.mxu0 0
        %2725 = vmatprep.subr.bf16.mxu0 0
        %2726 = vmatpush1.bf16.xpose.msra.mxu0 0
        %2727 = vmatprep.subr.bf16.mxu0 0
        %2728 = vmatpush1.bf16.xpose.msra.mxu0 0
        %2729 = vmatprep.subr.bf16.mxu0 0
        %2730 = vmatpush1.bf16.xpose.msra.mxu0 0
        %2731 = vmatprep.subr.bf16.mxu0 0
        %2732 = vmatpush1.bf16.xpose.msra.mxu0 0
        %2733 = vmatprep.subr.bf16.mxu0 0
        %2734 = vmatpush1.bf16.xpose.msra.mxu0 0
        %2735 = vmatprep.subr.bf16.mxu0 0
        %2736 = vmatpush1.bf16.xpose.msra.mxu0 0
        %2737 = vmatprep.subr.bf16.mxu0 0
        %2738 = vmatpush1.bf16.xpose.msra.mxu0 0
        %2739 = vmatprep.subr.bf16.mxu0 0
        %2740 = vmatpush1.bf16.xpose.msra.mxu0 0
        %2741 = vmatprep.subr.bf16.mxu0 0
        %2742 = vmatpush1.bf16.xpose.msra.mxu0 0
        %2743 = vmatprep.subr.bf16.mxu0 0
        %2744 = vmatpush1.bf16.xpose.msra.mxu0 0
        %2745 = vmatprep.subr.bf16.mxu0 0
        %2746 = vmatpush1.bf16.xpose.msra.mxu0 0
        %2747 = vmatprep.mubr.bf16.mxu0 0
        %2748 = vmatmul.mubr.bf16.gmra.mrb[0].mxu0 %v2710
        %v2749 = vpop.f32.mrb[0].mxu0
        %v2750 = vadd.f32 0.0, %v2749
        %v2751 = vpop.f32.mrb[0].mxu0
        %v2752 = vpop.f32.mrb[0].mxu0
        %v2753 = vpop.f32.mrb[0].mxu0
        %2754 = vdwg.mxu0
        %v2755 = vsel %vm1175, %v2704, -inf
        %2756 = vmax.xlane.f32.xlu0 %v2755
        %v2757 = vpop.xlane.xlu0 %2756
        %v2758 = vsel %vm1175, %v2750, -inf
        %2759 = vmax.xlane.f32.xlu0 %v2758
        %v2760 = vpop.xlane.xlu0 %2759
        %v2761 = vsub.f32 %v2704, %v2757
        %v2762 = vsub.f32 %v2750, %v2760
        %v2763 = vmul.f32 %v2761, 1.442695
        %v2764 = vpow.pop %v2763
        %v2765 = vmul.f32 %v2762, 1.442695
        %v2766 = vpow.pop %v2765
        %v2767 = vsel %vm1175, %v2764, 0.0
        %2768 = vadd.xlane.f32.xlu0 %v2767
        %v2769 = vpop.xlane.xlu0 %2768
        %v2770 = vsel %vm1175, %v2766, 0.0
        %2771 = vadd.xlane.f32.xlu0 %v2770
        %v2772 = vpop.xlane.xlu0 %2771
        %v2773 = vrcp.pop %v2769
        %v2774 = vrcp.pop %v2772
        %v2775 = vmul.f32 %v2764, %v2773
        %v2776 = vmul.f32 %v2766, %v2774
        %v2777 = vpack.c.bf16 %v2775, %v2775
        %v2778 = vpack.c.bf16 %v2776, %v2776
        %v2779 = vpack.c.bf16 %v2602, %v2602
        %v2780 = vpack.c.bf16 %v2654, %v2654
        %v2782 = vsel %vm1175, %v2777, 0
        %v2785 = vsel %vm1205, %v2779, 0
        %2787 = vmatprep.subr.bf16.mxu0 0
        %2788 = vmatpush1.bf16.msra.mxu0 %v2785
        %2789 = vmatprep.subr.bf16.mxu0 0
        %2790 = vmatpush1.bf16.msra.mxu0 0
        %2791 = vmatprep.subr.bf16.mxu0 0
        %2792 = vmatpush1.bf16.msra.mxu0 0
        %2793 = vmatprep.subr.bf16.mxu0 0
        %2794 = vmatpush1.bf16.msra.mxu0 0
        %2795 = vmatprep.subr.bf16.mxu0 0
        %2796 = vmatpush1.bf16.msra.mxu0 0
        %2797 = vmatprep.subr.bf16.mxu0 0
        %2798 = vmatpush1.bf16.msra.mxu0 0
        %2799 = vmatprep.subr.bf16.mxu0 0
        %2800 = vmatpush1.bf16.msra.mxu0 0
        %2801 = vmatprep.subr.bf16.mxu0 0
        %2802 = vmatpush1.bf16.msra.mxu0 0
        %2803 = vmatprep.subr.bf16.mxu0 0
        %2804 = vmatpush1.bf16.msra.mxu0 0
        %2805 = vmatprep.subr.bf16.mxu0 0
        %2806 = vmatpush1.bf16.msra.mxu0 0
        %2807 = vmatprep.subr.bf16.mxu0 0
        %2808 = vmatpush1.bf16.msra.mxu0 0
        %2809 = vmatprep.subr.bf16.mxu0 0
        %2810 = vmatpush1.bf16.msra.mxu0 0
        %2811 = vmatprep.subr.bf16.mxu0 0
        %2812 = vmatpush1.bf16.msra.mxu0 0
        %2813 = vmatprep.subr.bf16.mxu0 0
        %2814 = vmatpush1.bf16.msra.mxu0 0
        %2815 = vmatprep.subr.bf16.mxu0 0
        %2816 = vmatpush1.bf16.msra.mxu0 0
        %2817 = vmatprep.subr.bf16.mxu0 0
        %2818 = vmatpush1.bf16.msra.mxu0 0
        %2819 = vmatprep.mubr.bf16.mxu0 0
        %2820 = vmatmul.mubr.bf16.gmra.mrb[0].mxu0 %v2782
        %v2821 = vpop.f32.mrb[0].mxu0
        %v2822 = vadd.f32 0.0, %v2821
        %v2823 = vpop.f32.mrb[0].mxu0
        %v2824 = vpop.f32.mrb[0].mxu0
        %v2825 = vpop.f32.mrb[0].mxu0
        %2826 = vdwg.mxu0
        %v2828 = vsel %vm1175, %v2778, 0
        %v2831 = vsel %vm1205, %v2780, 0
        %2833 = vmatprep.subr.bf16.mxu0 0
        %2834 = vmatpush1.bf16.msra.mxu0 %v2831
        %2835 = vmatprep.subr.bf16.mxu0 0
        %2836 = vmatpush1.bf16.msra.mxu0 0
        %2837 = vmatprep.subr.bf16.mxu0 0
        %2838 = vmatpush1.bf16.msra.mxu0 0
        %2839 = vmatprep.subr.bf16.mxu0 0
        %2840 = vmatpush1.bf16.msra.mxu0 0
        %2841 = vmatprep.subr.bf16.mxu0 0
        %2842 = vmatpush1.bf16.msra.mxu0 0
        %2843 = vmatprep.subr.bf16.mxu0 0
        %2844 = vmatpush1.bf16.msra.mxu0 0
        %2845 = vmatprep.subr.bf16.mxu0 0
        %2846 = vmatpush1.bf16.msra.mxu0 0
        %2847 = vmatprep.subr.bf16.mxu0 0
        %2848 = vmatpush1.bf16.msra.mxu0 0
        %2849 = vmatprep.subr.bf16.mxu0 0
        %2850 = vmatpush1.bf16.msra.mxu0 0
        %2851 = vmatprep.subr.bf16.mxu0 0
        %2852 = vmatpush1.bf16.msra.mxu0 0
        %2853 = vmatprep.subr.bf16.mxu0 0
        %2854 = vmatpush1.bf16.msra.mxu0 0
        %2855 = vmatprep.subr.bf16.mxu0 0
        %2856 = vmatpush1.bf16.msra.mxu0 0
        %2857 = vmatprep.subr.bf16.mxu0 0
        %2858 = vmatpush1.bf16.msra.mxu0 0
        %2859 = vmatprep.subr.bf16.mxu0 0
        %2860 = vmatpush1.bf16.msra.mxu0 0
        %2861 = vmatprep.subr.bf16.mxu0 0
        %2862 = vmatpush1.bf16.msra.mxu0 0
        %2863 = vmatprep.subr.bf16.mxu0 0
        %2864 = vmatpush1.bf16.msra.mxu0 0
        %2865 = vmatprep.mubr.bf16.mxu0 0
        %2866 = vmatmul.mubr.bf16.gmra.mrb[0].mxu0 %v2828
        %v2867 = vpop.f32.mrb[0].mxu0
        %v2868 = vadd.f32 0.0, %v2867
        %v2869 = vpop.f32.mrb[0].mxu0
        %v2870 = vpop.f32.mrb[0].mxu0
        %v2871 = vpop.f32.mrb[0].mxu0
        %2872 = vdwg.mxu0
        %v2873 = vpack.c.bf16 %v2822, %v2822
        %v2874 = vpack.c.bf16 %v2868, %v2868
        %v2877 = vunpack.c.l.b16 %v2333
        %v2878 = vunpack.c.l.b16 %v2334
        %v2879 = vpack.c.b16 %v2878, %v2877
        %v2882 = vsel %vm1082, %v2873, 0
        %2884 = vmatprep.subr.bf16.mxu0 0
        %2885 = vmatpush1.bf16.msra.mxu0 %v2879
        %2886 = vmatprep.subr.bf16.mxu0 0
        %2887 = vmatpush1.bf16.msra.mxu0 0
        %2888 = vmatprep.subr.bf16.mxu0 0
        %2889 = vmatpush1.bf16.msra.mxu0 0
        %2890 = vmatprep.subr.bf16.mxu0 0
        %2891 = vmatpush1.bf16.msra.mxu0 0
        %2892 = vmatprep.subr.bf16.mxu0 0
        %2893 = vmatpush1.bf16.msra.mxu0 0
        %2894 = vmatprep.subr.bf16.mxu0 0
        %2895 = vmatpush1.bf16.msra.mxu0 0
        %2896 = vmatprep.subr.bf16.mxu0 0
        %2897 = vmatpush1.bf16.msra.mxu0 0
        %2898 = vmatprep.subr.bf16.mxu0 0
        %2899 = vmatpush1.bf16.msra.mxu0 0
        %2900 = vmatprep.subr.bf16.mxu0 0
        %2901 = vmatpush1.bf16.msra.mxu0 0
        %2902 = vmatprep.subr.bf16.mxu0 0
        %2903 = vmatpush1.bf16.msra.mxu0 0
        %2904 = vmatprep.subr.bf16.mxu0 0
        %2905 = vmatpush1.bf16.msra.mxu0 0
        %2906 = vmatprep.subr.bf16.mxu0 0
        %2907 = vmatpush1.bf16.msra.mxu0 0
        %2908 = vmatprep.subr.bf16.mxu0 0
        %2909 = vmatpush1.bf16.msra.mxu0 0
        %2910 = vmatprep.subr.bf16.mxu0 0
        %2911 = vmatpush1.bf16.msra.mxu0 0
        %2912 = vmatprep.subr.bf16.mxu0 0
        %2913 = vmatpush1.bf16.msra.mxu0 0
        %2914 = vmatprep.subr.bf16.mxu0 0
        %2915 = vmatpush1.bf16.msra.mxu0 0
        %2916 = vmatprep.mubr.bf16.mxu0 0
        %2917 = vmatmul.mubr.bf16.gmra.mrb[0].mxu0 %v2882
        %v2918 = vpop.f32.mrb[0].mxu0
        %v2919 = vadd.f32 0.0, %v2918
        %v2920 = vpop.f32.mrb[0].mxu0
        %v2921 = vpop.f32.mrb[0].mxu0
        %v2922 = vpop.f32.mrb[0].mxu0
        %2923 = vdwg.mxu0
        %v2926 = vunpack.c.l.b16 %v2335
        %v2927 = vunpack.c.l.b16 %v2336
        %v2928 = vpack.c.b16 %v2927, %v2926
        %v2931 = vsel %vm1082, %v2874, 0
        %2933 = vmatprep.subr.bf16.mxu0 0
        %2934 = vmatpush1.bf16.msra.mxu0 %v2928
        %2935 = vmatprep.subr.bf16.mxu0 0
        %2936 = vmatpush1.bf16.msra.mxu0 0
        %2937 = vmatprep.subr.bf16.mxu0 0
        %2938 = vmatpush1.bf16.msra.mxu0 0
        %2939 = vmatprep.subr.bf16.mxu0 0
        %2940 = vmatpush1.bf16.msra.mxu0 0
        %2941 = vmatprep.subr.bf16.mxu0 0
        %2942 = vmatpush1.bf16.msra.mxu0 0
        %2943 = vmatprep.subr.bf16.mxu0 0
        %2944 = vmatpush1.bf16.msra.mxu0 0
        %2945 = vmatprep.subr.bf16.mxu0 0
        %2946 = vmatpush1.bf16.msra.mxu0 0
        %2947 = vmatprep.subr.bf16.mxu0 0
        %2948 = vmatpush1.bf16.msra.mxu0 0
        %2949 = vmatprep.subr.bf16.mxu0 0
        %2950 = vmatpush1.bf16.msra.mxu0 0
        %2951 = vmatprep.subr.bf16.mxu0 0
        %2952 = vmatpush1.bf16.msra.mxu0 0
        %2953 = vmatprep.subr.bf16.mxu0 0
        %2954 = vmatpush1.bf16.msra.mxu0 0
        %2955 = vmatprep.subr.bf16.mxu0 0
        %2956 = vmatpush1.bf16.msra.mxu0 0
        %2957 = vmatprep.subr.bf16.mxu0 0
        %2958 = vmatpush1.bf16.msra.mxu0 0
        %2959 = vmatprep.subr.bf16.mxu0 0
        %2960 = vmatpush1.bf16.msra.mxu0 0
        %2961 = vmatprep.subr.bf16.mxu0 0
        %2962 = vmatpush1.bf16.msra.mxu0 0
        %2963 = vmatprep.subr.bf16.mxu0 0
        %2964 = vmatpush1.bf16.msra.mxu0 0
        %2965 = vmatprep.mubr.bf16.mxu0 0
        %2966 = vmatmul.mubr.bf16.gmra.mrb[0].mxu0 %v2931
        %v2967 = vpop.f32.mrb[0].mxu0
        %v2968 = vadd.f32 0.0, %v2967
        %v2969 = vpop.f32.mrb[0].mxu0
        %v2970 = vpop.f32.mrb[0].mxu0
        %v2971 = vpop.f32.mrb[0].mxu0
        %2972 = vdwg.mxu0
        %v2973 = vsel %vm701, %v2919, 0.0
        %v2974 = vsel %vm701, %v2968, 0.0
        %v2975 = vadd.f32 %v2973, %v2974
        %v2976 = vadd.f32 %v2975, %v2304
        %v2977 = vsel %vm701, %v2976, 0.0
        %2978 = vadd.xlane.f32.xlu0 %v2977
        %v2979 = vpop.xlane.xlu0 %2978
        %v2980 = vmul.f32 %v2979, %v705
        %v2981 = vsub.f32 %v2976, %v2980
        %v2982 = vmul.f32 %v2981, %v2981
        %v2983 = vsel %vm701, %v2982, 0.0
        %2984 = vadd.xlane.f32.xlu0 %v2983
        %v2985 = vpop.xlane.xlu0 %2984
        %v2986 = vmul.f32 %v2985, %v705
        %v2987 = vadd.f32 %v2986, 1e-06
        %v2988 = vrsqrt.pop %v2987
        %v2989 = vmul.f32 %v2981, %v2988
        %v2991 = vlaneseq
        %v2992 = vshrl.u32 %v2991, 7
        %v2993 = vsub.s32 0, %v2992
        %v2994 = vrot.slane %v2338, %v2993
        %v2996 = vmul.f32 %v2989, %v2994
        %v2998 = vlaneseq
        %v2999 = vshrl.u32 %v2998, 7
        %v3000 = vsub.s32 0, %v2999
        %v3001 = vrot.slane %v2340, %v3000
        %v3003 = vadd.f32 %v2996, %v3001
        %s3004 = scalar_lea.vmem %s10, 32
        %v3005 = vld [vmem:[%s3004] sm:$0xf]
        %v3006 = vld [vmem:[%s3004 + $0x4] sm:$0xf]
        %v3007 = vld [vmem:[%s3004 + $0x8] sm:$0xf]
        %v3008 = vld [vmem:[%s3004 + $0xc] sm:$0xf]
        %v3009 = vld [vmem:[%s3004 + $0x10] sm:$0xf]
        %v3010 = vld [vmem:[%s3004 + $0x14] sm:$0xf]
        %v3011 = vld [vmem:[%s3004 + $0x18] sm:$0xf]
        %v3012 = vld [vmem:[%s3004 + $0x1c] sm:$0xf]
        %s3013 = scalar_lea.vmem %s11, 32
        %v3014 = vld [vmem:[%s3013] sm:$0xf]
        %v3015 = vld [vmem:[%s3013 + $0x4] sm:$0xf]
        %v3016 = vld [vmem:[%s3013 + $0x8] sm:$0xf]
        %v3017 = vld [vmem:[%s3013 + $0xc] sm:$0xf]
        %v3018 = vld [vmem:[%s3013 + $0x10] sm:$0xf]
        %v3019 = vld [vmem:[%s3013 + $0x14] sm:$0xf]
        %v3020 = vld [vmem:[%s3013 + $0x18] sm:$0xf]
        %v3021 = vld [vmem:[%s3013 + $0x1c] sm:$0xf]
        %s3022 = scalar_lea.vmem %s12, 32
        %v3023 = vld [vmem:[%s3022] sm:$0xf]
        %v3024 = vld [vmem:[%s3022 + $0x4] sm:$0xf]
        %v3025 = vld [vmem:[%s3022 + $0x8] sm:$0xf]
        %v3026 = vld [vmem:[%s3022 + $0xc] sm:$0xf]
        %v3027 = vld [vmem:[%s3022 + $0x10] sm:$0xf]
        %v3028 = vld [vmem:[%s3022 + $0x14] sm:$0xf]
        %v3029 = vld [vmem:[%s3022 + $0x18] sm:$0xf]
        %v3030 = vld [vmem:[%s3022 + $0x1c] sm:$0xf]
        %s3031 = scalar_lea.vmem %s13, 16
        %v3032 = vld [vmem:[%s3031] sm:$0xf]
        %v3033 = vld [vmem:[%s3031 + $0x4] sm:$0xf]
        %v3034 = vld [vmem:[%s3031 + $0x8] sm:$0xf]
        %v3035 = vld [vmem:[%s3031 + $0xc] sm:$0xf]
        %s3036 = scalar_lea.vmem %s14, 1
        %v3037 = vld [vmem:[%s3036] sm:$0x1]
        %s3038 = scalar_lea.vmem %s15, 1
        %v3039 = vld [vmem:[%s3038] sm:$0x1]
        %v3040 = vpack.c.bf16 %v3003, %v3003
        %v3045 = vunpack.c.l.b16 %v3005
        %v3046 = vunpack.c.l.b16 %v3006
        %v3047 = vunpack.c.l.b16 %v3007
        %v3048 = vunpack.c.l.b16 %v3008
        %v3049 = vpack.c.b16 %v3046, %v3045
        %v3050 = vpack.c.b16 %v3048, %v3047
        %v3054 = vsel %vm701, %v3040, 0
        %3056 = vmatprep.subr.bf16.mxu0 0
        %3057 = vmatpush1.bf16.msra.mxu0 %v3049
        %3058 = vmatprep.subr.bf16.mxu0 0
        %3059 = vmatpush1.bf16.msra.mxu0 %v3050
        %3060 = vmatprep.subr.bf16.mxu0 0
        %3061 = vmatpush1.bf16.msra.mxu0 0
        %3062 = vmatprep.subr.bf16.mxu0 0
        %3063 = vmatpush1.bf16.msra.mxu0 0
        %3064 = vmatprep.subr.bf16.mxu0 0
        %3065 = vmatpush1.bf16.msra.mxu0 0
        %3066 = vmatprep.subr.bf16.mxu0 0
        %3067 = vmatpush1.bf16.msra.mxu0 0
        %3068 = vmatprep.subr.bf16.mxu0 0
        %3069 = vmatpush1.bf16.msra.mxu0 0
        %3070 = vmatprep.subr.bf16.mxu0 0
        %3071 = vmatpush1.bf16.msra.mxu0 0
        %3072 = vmatprep.subr.bf16.mxu0 0
        %3073 = vmatpush1.bf16.msra.mxu0 0
        %3074 = vmatprep.subr.bf16.mxu0 0
        %3075 = vmatpush1.bf16.msra.mxu0 0
        %3076 = vmatprep.subr.bf16.mxu0 0
        %3077 = vmatpush1.bf16.msra.mxu0 0
        %3078 = vmatprep.subr.bf16.mxu0 0
        %3079 = vmatpush1.bf16.msra.mxu0 0
        %3080 = vmatprep.subr.bf16.mxu0 0
        %3081 = vmatpush1.bf16.msra.mxu0 0
        %3082 = vmatprep.subr.bf16.mxu0 0
        %3083 = vmatpush1.bf16.msra.mxu0 0
        %3084 = vmatprep.subr.bf16.mxu0 0
        %3085 = vmatpush1.bf16.msra.mxu0 0
        %3086 = vmatprep.subr.bf16.mxu0 0
        %3087 = vmatpush1.bf16.msra.mxu0 0
        %3088 = vmatprep.mubr.bf16.mxu0 0
        %3089 = vmatmul.mubr.bf16.gmra.mrb[0].mxu0 %v3054
        %v3090 = vpop.f32.mrb[0].mxu0
        %v3091 = vadd.f32 0.0, %v3090
        %v3092 = vpop.f32.mrb[0].mxu0
        %v3093 = vpop.f32.mrb[0].mxu0
        %v3094 = vpop.f32.mrb[0].mxu0
        %3095 = vdwg.mxu0
        %v3100 = vunpack.c.l.b16 %v3009
        %v3101 = vunpack.c.l.b16 %v3010
        %v3102 = vunpack.c.l.b16 %v3011
        %v3103 = vunpack.c.l.b16 %v3012
        %v3104 = vpack.c.b16 %v3101, %v3100
        %v3105 = vpack.c.b16 %v3103, %v3102
        %3108 = vmatprep.subr.bf16.mxu0 0
        %3109 = vmatpush1.bf16.msra.mxu0 %v3104
        %3110 = vmatprep.subr.bf16.mxu0 0
        %3111 = vmatpush1.bf16.msra.mxu0 %v3105
        %3112 = vmatprep.subr.bf16.mxu0 0
        %3113 = vmatpush1.bf16.msra.mxu0 0
        %3114 = vmatprep.subr.bf16.mxu0 0
        %3115 = vmatpush1.bf16.msra.mxu0 0
        %3116 = vmatprep.subr.bf16.mxu0 0
        %3117 = vmatpush1.bf16.msra.mxu0 0
        %3118 = vmatprep.subr.bf16.mxu0 0
        %3119 = vmatpush1.bf16.msra.mxu0 0
        %3120 = vmatprep.subr.bf16.mxu0 0
        %3121 = vmatpush1.bf16.msra.mxu0 0
        %3122 = vmatprep.subr.bf16.mxu0 0
        %3123 = vmatpush1.bf16.msra.mxu0 0
        %3124 = vmatprep.subr.bf16.mxu0 0
        %3125 = vmatpush1.bf16.msra.mxu0 0
        %3126 = vmatprep.subr.bf16.mxu0 0
        %3127 = vmatpush1.bf16.msra.mxu0 0
        %3128 = vmatprep.subr.bf16.mxu0 0
        %3129 = vmatpush1.bf16.msra.mxu0 0
        %3130 = vmatprep.subr.bf16.mxu0 0
        %3131 = vmatpush1.bf16.msra.mxu0 0
        %3132 = vmatprep.subr.bf16.mxu0 0
        %3133 = vmatpush1.bf16.msra.mxu0 0
        %3134 = vmatprep.subr.bf16.mxu0 0
        %3135 = vmatpush1.bf16.msra.mxu0 0
        %3136 = vmatprep.subr.bf16.mxu0 0
        %3137 = vmatpush1.bf16.msra.mxu0 0
        %3138 = vmatprep.subr.bf16.mxu0 0
        %3139 = vmatpush1.bf16.msra.mxu0 0
        %3140 = vmatprep.mubr.bf16.mxu0 0
        %3141 = vmatmul.mubr.bf16.gmra.mrb[0].mxu0 %v3054
        %v3142 = vpop.f32.mrb[0].mxu0
        %v3143 = vadd.f32 0.0, %v3142
        %v3144 = vpop.f32.mrb[0].mxu0
        %v3145 = vpop.f32.mrb[0].mxu0
        %v3146 = vpop.f32.mrb[0].mxu0
        %3147 = vdwg.mxu0
        %v3148 = vmul.f32 %v3091, 0.25
        %v3149 = vmul.f32 %v3143, 0.25
        %v3154 = vunpack.c.l.b16 %v3014
        %v3155 = vunpack.c.l.b16 %v3015
        %v3156 = vunpack.c.l.b16 %v3016
        %v3157 = vunpack.c.l.b16 %v3017
        %v3158 = vpack.c.b16 %v3155, %v3154
        %v3159 = vpack.c.b16 %v3157, %v3156
        %3162 = vmatprep.subr.bf16.mxu0 0
        %3163 = vmatpush1.bf16.msra.mxu0 %v3158
        %3164 = vmatprep.subr.bf16.mxu0 0
        %3165 = vmatpush1.bf16.msra.mxu0 %v3159
        %3166 = vmatprep.subr.bf16.mxu0 0
        %3167 = vmatpush1.bf16.msra.mxu0 0
        %3168 = vmatprep.subr.bf16.mxu0 0
        %3169 = vmatpush1.bf16.msra.mxu0 0
        %3170 = vmatprep.subr.bf16.mxu0 0
        %3171 = vmatpush1.bf16.msra.mxu0 0
        %3172 = vmatprep.subr.bf16.mxu0 0
        %3173 = vmatpush1.bf16.msra.mxu0 0
        %3174 = vmatprep.subr.bf16.mxu0 0
        %3175 = vmatpush1.bf16.msra.mxu0 0
        %3176 = vmatprep.subr.bf16.mxu0 0
        %3177 = vmatpush1.bf16.msra.mxu0 0
        %3178 = vmatprep.subr.bf16.mxu0 0
        %3179 = vmatpush1.bf16.msra.mxu0 0
        %3180 = vmatprep.subr.bf16.mxu0 0
        %3181 = vmatpush1.bf16.msra.mxu0 0
        %3182 = vmatprep.subr.bf16.mxu0 0
        %3183 = vmatpush1.bf16.msra.mxu0 0
        %3184 = vmatprep.subr.bf16.mxu0 0
        %3185 = vmatpush1.bf16.msra.mxu0 0
        %3186 = vmatprep.subr.bf16.mxu0 0
        %3187 = vmatpush1.bf16.msra.mxu0 0
        %3188 = vmatprep.subr.bf16.mxu0 0
        %3189 = vmatpush1.bf16.msra.mxu0 0
        %3190 = vmatprep.subr.bf16.mxu0 0
        %3191 = vmatpush1.bf16.msra.mxu0 0
        %3192 = vmatprep.subr.bf16.mxu0 0
        %3193 = vmatpush1.bf16.msra.mxu0 0
        %3194 = vmatprep.mubr.bf16.mxu0 0
        %3195 = vmatmul.mubr.bf16.gmra.mrb[0].mxu0 %v1580
        %v3196 = vpop.f32.mrb[0].mxu0
        %v3197 = vadd.f32 0.0, %v3196
        %v3198 = vpop.f32.mrb[0].mxu0
        %v3199 = vpop.f32.mrb[0].mxu0
        %v3200 = vpop.f32.mrb[0].mxu0
        %3201 = vdwg.mxu0
        %v3206 = vunpack.c.l.b16 %v3018
        %v3207 = vunpack.c.l.b16 %v3019
        %v3208 = vunpack.c.l.b16 %v3020
        %v3209 = vunpack.c.l.b16 %v3021
        %v3210 = vpack.c.b16 %v3207, %v3206
        %v3211 = vpack.c.b16 %v3209, %v3208
        %3214 = vmatprep.subr.bf16.mxu0 0
        %3215 = vmatpush1.bf16.msra.mxu0 %v3210
        %3216 = vmatprep.subr.bf16.mxu0 0
        %3217 = vmatpush1.bf16.msra.mxu0 %v3211
        %3218 = vmatprep.subr.bf16.mxu0 0
        %3219 = vmatpush1.bf16.msra.mxu0 0
        %3220 = vmatprep.subr.bf16.mxu0 0
        %3221 = vmatpush1.bf16.msra.mxu0 0
        %3222 = vmatprep.subr.bf16.mxu0 0
        %3223 = vmatpush1.bf16.msra.mxu0 0
        %3224 = vmatprep.subr.bf16.mxu0 0
        %3225 = vmatpush1.bf16.msra.mxu0 0
        %3226 = vmatprep.subr.bf16.mxu0 0
        %3227 = vmatpush1.bf16.msra.mxu0 0
        %3228 = vmatprep.subr.bf16.mxu0 0
        %3229 = vmatpush1.bf16.msra.mxu0 0
        %3230 = vmatprep.subr.bf16.mxu0 0
        %3231 = vmatpush1.bf16.msra.mxu0 0
        %3232 = vmatprep.subr.bf16.mxu0 0
        %3233 = vmatpush1.bf16.msra.mxu0 0
        %3234 = vmatprep.subr.bf16.mxu0 0
        %3235 = vmatpush1.bf16.msra.mxu0 0
        %3236 = vmatprep.subr.bf16.mxu0 0
        %3237 = vmatpush1.bf16.msra.mxu0 0
        %3238 = vmatprep.subr.bf16.mxu0 0
        %3239 = vmatpush1.bf16.msra.mxu0 0
        %3240 = vmatprep.subr.bf16.mxu0 0
        %3241 = vmatpush1.bf16.msra.mxu0 0
        %3242 = vmatprep.subr.bf16.mxu0 0
        %3243 = vmatpush1.bf16.msra.mxu0 0
        %3244 = vmatprep.subr.bf16.mxu0 0
        %3245 = vmatpush1.bf16.msra.mxu0 0
        %3246 = vmatprep.mubr.bf16.mxu0 0
        %3247 = vmatmul.mubr.bf16.gmra.mrb[0].mxu0 %v1580
        %v3248 = vpop.f32.mrb[0].mxu0
        %v3249 = vadd.f32 0.0, %v3248
        %v3250 = vpop.f32.mrb[0].mxu0
        %v3251 = vpop.f32.mrb[0].mxu0
        %v3252 = vpop.f32.mrb[0].mxu0
        %3253 = vdwg.mxu0
        %v3258 = vunpack.c.l.b16 %v3023
        %v3259 = vunpack.c.l.b16 %v3024
        %v3260 = vunpack.c.l.b16 %v3025
        %v3261 = vunpack.c.l.b16 %v3026
        %v3262 = vpack.c.b16 %v3259, %v3258
        %v3263 = vpack.c.b16 %v3261, %v3260
        %3266 = vmatprep.subr.bf16.mxu0 0
        %3267 = vmatpush1.bf16.msra.mxu0 %v3262
        %3268 = vmatprep.subr.bf16.mxu0 0
        %3269 = vmatpush1.bf16.msra.mxu0 %v3263
        %3270 = vmatprep.subr.bf16.mxu0 0
        %3271 = vmatpush1.bf16.msra.mxu0 0
        %3272 = vmatprep.subr.bf16.mxu0 0
        %3273 = vmatpush1.bf16.msra.mxu0 0
        %3274 = vmatprep.subr.bf16.mxu0 0
        %3275 = vmatpush1.bf16.msra.mxu0 0
        %3276 = vmatprep.subr.bf16.mxu0 0
        %3277 = vmatpush1.bf16.msra.mxu0 0
        %3278 = vmatprep.subr.bf16.mxu0 0
        %3279 = vmatpush1.bf16.msra.mxu0 0
        %3280 = vmatprep.subr.bf16.mxu0 0
        %3281 = vmatpush1.bf16.msra.mxu0 0
        %3282 = vmatprep.subr.bf16.mxu0 0
        %3283 = vmatpush1.bf16.msra.mxu0 0
        %3284 = vmatprep.subr.bf16.mxu0 0
        %3285 = vmatpush1.bf16.msra.mxu0 0
        %3286 = vmatprep.subr.bf16.mxu0 0
        %3287 = vmatpush1.bf16.msra.mxu0 0
        %3288 = vmatprep.subr.bf16.mxu0 0
        %3289 = vmatpush1.bf16.msra.mxu0 0
        %3290 = vmatprep.subr.bf16.mxu0 0
        %3291 = vmatpush1.bf16.msra.mxu0 0
        %3292 = vmatprep.subr.bf16.mxu0 0
        %3293 = vmatpush1.bf16.msra.mxu0 0
        %3294 = vmatprep.subr.bf16.mxu0 0
        %3295 = vmatpush1.bf16.msra.mxu0 0
        %3296 = vmatprep.subr.bf16.mxu0 0
        %3297 = vmatpush1.bf16.msra.mxu0 0
        %3298 = vmatprep.mubr.bf16.mxu0 0
        %3299 = vmatmul.mubr.bf16.gmra.mrb[0].mxu0 %v1580
        %v3300 = vpop.f32.mrb[0].mxu0
        %v3301 = vadd.f32 0.0, %v3300
        %v3302 = vpop.f32.mrb[0].mxu0
        %v3303 = vpop.f32.mrb[0].mxu0
        %v3304 = vpop.f32.mrb[0].mxu0
        %3305 = vdwg.mxu0
        %v3310 = vunpack.c.l.b16 %v3027
        %v3311 = vunpack.c.l.b16 %v3028
        %v3312 = vunpack.c.l.b16 %v3029
        %v3313 = vunpack.c.l.b16 %v3030
        %v3314 = vpack.c.b16 %v3311, %v3310
        %v3315 = vpack.c.b16 %v3313, %v3312
        %3318 = vmatprep.subr.bf16.mxu0 0
        %3319 = vmatpush1.bf16.msra.mxu0 %v3314
        %3320 = vmatprep.subr.bf16.mxu0 0
        %3321 = vmatpush1.bf16.msra.mxu0 %v3315
        %3322 = vmatprep.subr.bf16.mxu0 0
        %3323 = vmatpush1.bf16.msra.mxu0 0
        %3324 = vmatprep.subr.bf16.mxu0 0
        %3325 = vmatpush1.bf16.msra.mxu0 0
        %3326 = vmatprep.subr.bf16.mxu0 0
        %3327 = vmatpush1.bf16.msra.mxu0 0
        %3328 = vmatprep.subr.bf16.mxu0 0
        %3329 = vmatpush1.bf16.msra.mxu0 0
        %3330 = vmatprep.subr.bf16.mxu0 0
        %3331 = vmatpush1.bf16.msra.mxu0 0
        %3332 = vmatprep.subr.bf16.mxu0 0
        %3333 = vmatpush1.bf16.msra.mxu0 0
        %3334 = vmatprep.subr.bf16.mxu0 0
        %3335 = vmatpush1.bf16.msra.mxu0 0
        %3336 = vmatprep.subr.bf16.mxu0 0
        %3337 = vmatpush1.bf16.msra.mxu0 0
        %3338 = vmatprep.subr.bf16.mxu0 0
        %3339 = vmatpush1.bf16.msra.mxu0 0
        %3340 = vmatprep.subr.bf16.mxu0 0
        %3341 = vmatpush1.bf16.msra.mxu0 0
        %3342 = vmatprep.subr.bf16.mxu0 0
        %3343 = vmatpush1.bf16.msra.mxu0 0
        %3344 = vmatprep.subr.bf16.mxu0 0
        %3345 = vmatpush1.bf16.msra.mxu0 0
        %3346 = vmatprep.subr.bf16.mxu0 0
        %3347 = vmatpush1.bf16.msra.mxu0 0
        %3348 = vmatprep.subr.bf16.mxu0 0
        %3349 = vmatpush1.bf16.msra.mxu0 0
        %3350 = vmatprep.mubr.bf16.mxu0 0
        %3351 = vmatmul.mubr.bf16.gmra.mrb[0].mxu0 %v1580
        %v3352 = vpop.f32.mrb[0].mxu0
        %v3353 = vadd.f32 0.0, %v3352
        %v3354 = vpop.f32.mrb[0].mxu0
        %v3355 = vpop.f32.mrb[0].mxu0
        %v3356 = vpop.f32.mrb[0].mxu0
        %3357 = vdwg.mxu0
        %v3358 = vpack.c.bf16 %v3148, %v3148
        %v3359 = vpack.c.bf16 %v3149, %v3149
        %v3360 = vpack.c.bf16 %v3197, %v3197
        %v3361 = vpack.c.bf16 %v3249, %v3249
        %v3363 = vsel %vm1082, %v3358, 0
        %v3366 = vsel %vm1082, %v3360, 0
        %3368 = vmatprep.subr.bf16.mxu0 0
        %3369 = vmatpush1.bf16.xpose.msra.mxu0 %v3366
        %3370 = vmatprep.subr.bf16.mxu0 0
        %3371 = vmatpush1.bf16.xpose.msra.mxu0 0
        %3372 = vmatprep.subr.bf16.mxu0 0
        %3373 = vmatpush1.bf16.xpose.msra.mxu0 0
        %3374 = vmatprep.subr.bf16.mxu0 0
        %3375 = vmatpush1.bf16.xpose.msra.mxu0 0
        %3376 = vmatprep.subr.bf16.mxu0 0
        %3377 = vmatpush1.bf16.xpose.msra.mxu0 0
        %3378 = vmatprep.subr.bf16.mxu0 0
        %3379 = vmatpush1.bf16.xpose.msra.mxu0 0
        %3380 = vmatprep.subr.bf16.mxu0 0
        %3381 = vmatpush1.bf16.xpose.msra.mxu0 0
        %3382 = vmatprep.subr.bf16.mxu0 0
        %3383 = vmatpush1.bf16.xpose.msra.mxu0 0
        %3384 = vmatprep.subr.bf16.mxu0 0
        %3385 = vmatpush1.bf16.xpose.msra.mxu0 0
        %3386 = vmatprep.subr.bf16.mxu0 0
        %3387 = vmatpush1.bf16.xpose.msra.mxu0 0
        %3388 = vmatprep.subr.bf16.mxu0 0
        %3389 = vmatpush1.bf16.xpose.msra.mxu0 0
        %3390 = vmatprep.subr.bf16.mxu0 0
        %3391 = vmatpush1.bf16.xpose.msra.mxu0 0
        %3392 = vmatprep.subr.bf16.mxu0 0
        %3393 = vmatpush1.bf16.xpose.msra.mxu0 0
        %3394 = vmatprep.subr.bf16.mxu0 0
        %3395 = vmatpush1.bf16.xpose.msra.mxu0 0
        %3396 = vmatprep.subr.bf16.mxu0 0
        %3397 = vmatpush1.bf16.xpose.msra.mxu0 0
        %3398 = vmatprep.subr.bf16.mxu0 0
        %3399 = vmatpush1.bf16.xpose.msra.mxu0 0
        %3400 = vmatprep.mubr.bf16.mxu0 0
        %3401 = vmatmul.mubr.bf16.gmra.mrb[0].mxu0 %v3363
        %v3402 = vpop.f32.mrb[0].mxu0
        %v3403 = vadd.f32 0.0, %v3402
        %v3404 = vpop.f32.mrb[0].mxu0
        %v3405 = vpop.f32.mrb[0].mxu0
        %v3406 = vpop.f32.mrb[0].mxu0
        %3407 = vdwg.mxu0
        %v3409 = vsel %vm1082, %v3359, 0
        %v3412 = vsel %vm1082, %v3361, 0
        %3414 = vmatprep.subr.bf16.mxu0 0
        %3415 = vmatpush1.bf16.xpose.msra.mxu0 %v3412
        %3416 = vmatprep.subr.bf16.mxu0 0
        %3417 = vmatpush1.bf16.xpose.msra.mxu0 0
        %3418 = vmatprep.subr.bf16.mxu0 0
        %3419 = vmatpush1.bf16.xpose.msra.mxu0 0
        %3420 = vmatprep.subr.bf16.mxu0 0
        %3421 = vmatpush1.bf16.xpose.msra.mxu0 0
        %3422 = vmatprep.subr.bf16.mxu0 0
        %3423 = vmatpush1.bf16.xpose.msra.mxu0 0
        %3424 = vmatprep.subr.bf16.mxu0 0
        %3425 = vmatpush1.bf16.xpose.msra.mxu0 0
        %3426 = vmatprep.subr.bf16.mxu0 0
        %3427 = vmatpush1.bf16.xpose.msra.mxu0 0
        %3428 = vmatprep.subr.bf16.mxu0 0
        %3429 = vmatpush1.bf16.xpose.msra.mxu0 0
        %3430 = vmatprep.subr.bf16.mxu0 0
        %3431 = vmatpush1.bf16.xpose.msra.mxu0 0
        %3432 = vmatprep.subr.bf16.mxu0 0
        %3433 = vmatpush1.bf16.xpose.msra.mxu0 0
        %3434 = vmatprep.subr.bf16.mxu0 0
        %3435 = vmatpush1.bf16.xpose.msra.mxu0 0
        %3436 = vmatprep.subr.bf16.mxu0 0
        %3437 = vmatpush1.bf16.xpose.msra.mxu0 0
        %3438 = vmatprep.subr.bf16.mxu0 0
        %3439 = vmatpush1.bf16.xpose.msra.mxu0 0
        %3440 = vmatprep.subr.bf16.mxu0 0
        %3441 = vmatpush1.bf16.xpose.msra.mxu0 0
        %3442 = vmatprep.subr.bf16.mxu0 0
        %3443 = vmatpush1.bf16.xpose.msra.mxu0 0
        %3444 = vmatprep.subr.bf16.mxu0 0
        %3445 = vmatpush1.bf16.xpose.msra.mxu0 0
        %3446 = vmatprep.mubr.bf16.mxu0 0
        %3447 = vmatmul.mubr.bf16.gmra.mrb[0].mxu0 %v3409
        %v3448 = vpop.f32.mrb[0].mxu0
        %v3449 = vadd.f32 0.0, %v3448
        %v3450 = vpop.f32.mrb[0].mxu0
        %v3451 = vpop.f32.mrb[0].mxu0
        %v3452 = vpop.f32.mrb[0].mxu0
        %3453 = vdwg.mxu0
        %v3454 = vsel %vm1175, %v3403, -inf
        %3455 = vmax.xlane.f32.xlu0 %v3454
        %v3456 = vpop.xlane.xlu0 %3455
        %v3457 = vsel %vm1175, %v3449, -inf
        %3458 = vmax.xlane.f32.xlu0 %v3457
        %v3459 = vpop.xlane.xlu0 %3458
        %v3460 = vsub.f32 %v3403, %v3456
        %v3461 = vsub.f32 %v3449, %v3459
        %v3462 = vmul.f32 %v3460, 1.442695
        %v3463 = vpow.pop %v3462
        %v3464 = vmul.f32 %v3461, 1.442695
        %v3465 = vpow.pop %v3464
        %v3466 = vsel %vm1175, %v3463, 0.0
        %3467 = vadd.xlane.f32.xlu0 %v3466
        %v3468 = vpop.xlane.xlu0 %3467
        %v3469 = vsel %vm1175, %v3465, 0.0
        %3470 = vadd.xlane.f32.xlu0 %v3469
        %v3471 = vpop.xlane.xlu0 %3470
        %v3472 = vrcp.pop %v3468
        %v3473 = vrcp.pop %v3471
        %v3474 = vmul.f32 %v3463, %v3472
        %v3475 = vmul.f32 %v3465, %v3473
        %v3476 = vpack.c.bf16 %v3474, %v3474
        %v3477 = vpack.c.bf16 %v3475, %v3475
        %v3478 = vpack.c.bf16 %v3301, %v3301
        %v3479 = vpack.c.bf16 %v3353, %v3353
        %v3481 = vsel %vm1175, %v3476, 0
        %v3484 = vsel %vm1205, %v3478, 0
        %3486 = vmatprep.subr.bf16.mxu0 0
        %3487 = vmatpush1.bf16.msra.mxu0 %v3484
        %3488 = vmatprep.subr.bf16.mxu0 0
        %3489 = vmatpush1.bf16.msra.mxu0 0
        %3490 = vmatprep.subr.bf16.mxu0 0
        %3491 = vmatpush1.bf16.msra.mxu0 0
        %3492 = vmatprep.subr.bf16.mxu0 0
        %3493 = vmatpush1.bf16.msra.mxu0 0
        %3494 = vmatprep.subr.bf16.mxu0 0
        %3495 = vmatpush1.bf16.msra.mxu0 0
        %3496 = vmatprep.subr.bf16.mxu0 0
        %3497 = vmatpush1.bf16.msra.mxu0 0
        %3498 = vmatprep.subr.bf16.mxu0 0
        %3499 = vmatpush1.bf16.msra.mxu0 0
        %3500 = vmatprep.subr.bf16.mxu0 0
        %3501 = vmatpush1.bf16.msra.mxu0 0
        %3502 = vmatprep.subr.bf16.mxu0 0
        %3503 = vmatpush1.bf16.msra.mxu0 0
        %3504 = vmatprep.subr.bf16.mxu0 0
        %3505 = vmatpush1.bf16.msra.mxu0 0
        %3506 = vmatprep.subr.bf16.mxu0 0
        %3507 = vmatpush1.bf16.msra.mxu0 0
        %3508 = vmatprep.subr.bf16.mxu0 0
        %3509 = vmatpush1.bf16.msra.mxu0 0
        %3510 = vmatprep.subr.bf16.mxu0 0
        %3511 = vmatpush1.bf16.msra.mxu0 0
        %3512 = vmatprep.subr.bf16.mxu0 0
        %3513 = vmatpush1.bf16.msra.mxu0 0
        %3514 = vmatprep.subr.bf16.mxu0 0
        %3515 = vmatpush1.bf16.msra.mxu0 0
        %3516 = vmatprep.subr.bf16.mxu0 0
        %3517 = vmatpush1.bf16.msra.mxu0 0
        %3518 = vmatprep.mubr.bf16.mxu0 0
        %3519 = vmatmul.mubr.bf16.gmra.mrb[0].mxu0 %v3481
        %v3520 = vpop.f32.mrb[0].mxu0
        %v3521 = vadd.f32 0.0, %v3520
        %v3522 = vpop.f32.mrb[0].mxu0
        %v3523 = vpop.f32.mrb[0].mxu0
        %v3524 = vpop.f32.mrb[0].mxu0
        %3525 = vdwg.mxu0
        %v3527 = vsel %vm1175, %v3477, 0
        %v3530 = vsel %vm1205, %v3479, 0
        %3532 = vmatprep.subr.bf16.mxu0 0
        %3533 = vmatpush1.bf16.msra.mxu0 %v3530
        %3534 = vmatprep.subr.bf16.mxu0 0
        %3535 = vmatpush1.bf16.msra.mxu0 0
        %3536 = vmatprep.subr.bf16.mxu0 0
        %3537 = vmatpush1.bf16.msra.mxu0 0
        %3538 = vmatprep.subr.bf16.mxu0 0
        %3539 = vmatpush1.bf16.msra.mxu0 0
        %3540 = vmatprep.subr.bf16.mxu0 0
        %3541 = vmatpush1.bf16.msra.mxu0 0
        %3542 = vmatprep.subr.bf16.mxu0 0
        %3543 = vmatpush1.bf16.msra.mxu0 0
        %3544 = vmatprep.subr.bf16.mxu0 0
        %3545 = vmatpush1.bf16.msra.mxu0 0
        %3546 = vmatprep.subr.bf16.mxu0 0
        %3547 = vmatpush1.bf16.msra.mxu0 0
        %3548 = vmatprep.subr.bf16.mxu0 0
        %3549 = vmatpush1.bf16.msra.mxu0 0
        %3550 = vmatprep.subr.bf16.mxu0 0
        %3551 = vmatpush1.bf16.msra.mxu0 0
        %3552 = vmatprep.subr.bf16.mxu0 0
        %3553 = vmatpush1.bf16.msra.mxu0 0
        %3554 = vmatprep.subr.bf16.mxu0 0
        %3555 = vmatpush1.bf16.msra.mxu0 0
        %3556 = vmatprep.subr.bf16.mxu0 0
        %3557 = vmatpush1.bf16.msra.mxu0 0
        %3558 = vmatprep.subr.bf16.mxu0 0
        %3559 = vmatpush1.bf16.msra.mxu0 0
        %3560 = vmatprep.subr.bf16.mxu0 0
        %3561 = vmatpush1.bf16.msra.mxu0 0
        %3562 = vmatprep.subr.bf16.mxu0 0
        %3563 = vmatpush1.bf16.msra.mxu0 0
        %3564 = vmatprep.mubr.bf16.mxu0 0
        %3565 = vmatmul.mubr.bf16.gmra.mrb[0].mxu0 %v3527
        %v3566 = vpop.f32.mrb[0].mxu0
        %v3567 = vadd.f32 0.0, %v3566
        %v3568 = vpop.f32.mrb[0].mxu0
        %v3569 = vpop.f32.mrb[0].mxu0
        %v3570 = vpop.f32.mrb[0].mxu0
        %3571 = vdwg.mxu0
        %v3572 = vpack.c.bf16 %v3521, %v3521
        %v3573 = vpack.c.bf16 %v3567, %v3567
        %v3576 = vunpack.c.l.b16 %v3032
        %v3577 = vunpack.c.l.b16 %v3033
        %v3578 = vpack.c.b16 %v3577, %v3576
        %v3581 = vsel %vm1082, %v3572, 0
        %3583 = vmatprep.subr.bf16.mxu0 0
        %3584 = vmatpush1.bf16.msra.mxu0 %v3578
        %3585 = vmatprep.subr.bf16.mxu0 0
        %3586 = vmatpush1.bf16.msra.mxu0 0
        %3587 = vmatprep.subr.bf16.mxu0 0
        %3588 = vmatpush1.bf16.msra.mxu0 0
        %3589 = vmatprep.subr.bf16.mxu0 0
        %3590 = vmatpush1.bf16.msra.mxu0 0
        %3591 = vmatprep.subr.bf16.mxu0 0
        %3592 = vmatpush1.bf16.msra.mxu0 0
        %3593 = vmatprep.subr.bf16.mxu0 0
        %3594 = vmatpush1.bf16.msra.mxu0 0
        %3595 = vmatprep.subr.bf16.mxu0 0
        %3596 = vmatpush1.bf16.msra.mxu0 0
        %3597 = vmatprep.subr.bf16.mxu0 0
        %3598 = vmatpush1.bf16.msra.mxu0 0
        %3599 = vmatprep.subr.bf16.mxu0 0
        %3600 = vmatpush1.bf16.msra.mxu0 0
        %3601 = vmatprep.subr.bf16.mxu0 0
        %3602 = vmatpush1.bf16.msra.mxu0 0
        %3603 = vmatprep.subr.bf16.mxu0 0
        %3604 = vmatpush1.bf16.msra.mxu0 0
        %3605 = vmatprep.subr.bf16.mxu0 0
        %3606 = vmatpush1.bf16.msra.mxu0 0
        %3607 = vmatprep.subr.bf16.mxu0 0
        %3608 = vmatpush1.bf16.msra.mxu0 0
        %3609 = vmatprep.subr.bf16.mxu0 0
        %3610 = vmatpush1.bf16.msra.mxu0 0
        %3611 = vmatprep.subr.bf16.mxu0 0
        %3612 = vmatpush1.bf16.msra.mxu0 0
        %3613 = vmatprep.subr.bf16.mxu0 0
        %3614 = vmatpush1.bf16.msra.mxu0 0
        %3615 = vmatprep.mubr.bf16.mxu0 0
        %3616 = vmatmul.mubr.bf16.gmra.mrb[0].mxu0 %v3581
        %v3617 = vpop.f32.mrb[0].mxu0
        %v3618 = vadd.f32 0.0, %v3617
        %v3619 = vpop.f32.mrb[0].mxu0
        %v3620 = vpop.f32.mrb[0].mxu0
        %v3621 = vpop.f32.mrb[0].mxu0
        %3622 = vdwg.mxu0
        %v3625 = vunpack.c.l.b16 %v3034
        %v3626 = vunpack.c.l.b16 %v3035
        %v3627 = vpack.c.b16 %v3626, %v3625
        %v3630 = vsel %vm1082, %v3573, 0
        %3632 = vmatprep.subr.bf16.mxu0 0
        %3633 = vmatpush1.bf16.msra.mxu0 %v3627
        %3634 = vmatprep.subr.bf16.mxu0 0
        %3635 = vmatpush1.bf16.msra.mxu0 0
        %3636 = vmatprep.subr.bf16.mxu0 0
        %3637 = vmatpush1.bf16.msra.mxu0 0
        %3638 = vmatprep.subr.bf16.mxu0 0
        %3639 = vmatpush1.bf16.msra.mxu0 0
        %3640 = vmatprep.subr.bf16.mxu0 0
        %3641 = vmatpush1.bf16.msra.mxu0 0
        %3642 = vmatprep.subr.bf16.mxu0 0
        %3643 = vmatpush1.bf16.msra.mxu0 0
        %3644 = vmatprep.subr.bf16.mxu0 0
        %3645 = vmatpush1.bf16.msra.mxu0 0
        %3646 = vmatprep.subr.bf16.mxu0 0
        %3647 = vmatpush1.bf16.msra.mxu0 0
        %3648 = vmatprep.subr.bf16.mxu0 0
        %3649 = vmatpush1.bf16.msra.mxu0 0
        %3650 = vmatprep.subr.bf16.mxu0 0
        %3651 = vmatpush1.bf16.msra.mxu0 0
        %3652 = vmatprep.subr.bf16.mxu0 0
        %3653 = vmatpush1.bf16.msra.mxu0 0
        %3654 = vmatprep.subr.bf16.mxu0 0
        %3655 = vmatpush1.bf16.msra.mxu0 0
        %3656 = vmatprep.subr.bf16.mxu0 0
        %3657 = vmatpush1.bf16.msra.mxu0 0
        %3658 = vmatprep.subr.bf16.mxu0 0
        %3659 = vmatpush1.bf16.msra.mxu0 0
        %3660 = vmatprep.subr.bf16.mxu0 0
        %3661 = vmatpush1.bf16.msra.mxu0 0
        %3662 = vmatprep.subr.bf16.mxu0 0
        %3663 = vmatpush1.bf16.msra.mxu0 0
        %3664 = vmatprep.mubr.bf16.mxu0 0
        %3665 = vmatmul.mubr.bf16.gmra.mrb[0].mxu0 %v3630
        %v3666 = vpop.f32.mrb[0].mxu0
        %v3667 = vadd.f32 0.0, %v3666
        %v3668 = vpop.f32.mrb[0].mxu0
        %v3669 = vpop.f32.mrb[0].mxu0
        %v3670 = vpop.f32.mrb[0].mxu0
        %3671 = vdwg.mxu0
        %v3672 = vsel %vm701, %v3618, 0.0
        %v3673 = vsel %vm701, %v3667, 0.0
        %v3674 = vadd.f32 %v3672, %v3673
        %v3675 = vadd.f32 %v3674, %v3003
        %v3676 = vsel %vm701, %v3675, 0.0
        %3677 = vadd.xlane.f32.xlu0 %v3676
        %v3678 = vpop.xlane.xlu0 %3677
        %v3679 = vmul.f32 %v3678, %v705
        %v3680 = vsub.f32 %v3675, %v3679
        %v3681 = vmul.f32 %v3680, %v3680
        %v3682 = vsel %vm701, %v3681, 0.0
        %3683 = vadd.xlane.f32.xlu0 %v3682
        %v3684 = vpop.xlane.xlu0 %3683
        %v3685 = vmul.f32 %v3684, %v705
        %v3686 = vadd.f32 %v3685, 1e-06
        %v3687 = vrsqrt.pop %v3686
        %v3688 = vmul.f32 %v3680, %v3687
        %v3690 = vlaneseq
        %v3691 = vshrl.u32 %v3690, 7
        %v3692 = vsub.s32 0, %v3691
        %v3693 = vrot.slane %v3037, %v3692
        %v3695 = vmul.f32 %v3688, %v3693
        %v3697 = vlaneseq
        %v3698 = vshrl.u32 %v3697, 7
        %v3699 = vsub.s32 0, %v3698
        %v3700 = vrot.slane %v3039, %v3699
        %v3702 = vadd.f32 %v3695, %v3700
        %s3703 = scalar_lea.vmem %s16, 16
        %v3704 = vld [vmem:[%s3703] sm:$0xf]
        %v3705 = vld [vmem:[%s3703 + $0x4] sm:$0xf]
        %v3706 = vld [vmem:[%s3703 + $0x8] sm:$0xf]
        %v3707 = vld [vmem:[%s3703 + $0xc] sm:$0xf]
        %s3708 = scalar_lea.vmem %s17, 1
        %v3709 = vld [vmem:[%s3708] sm:$0x1]
        %s3710 = scalar_lea.vmem %s18, 32
        %v3711 = vld [vmem:[%s3710] sm:$0xf]
        %v3712 = vld [vmem:[%s3710 + $0x4] sm:$0xf]
        %v3713 = vld [vmem:[%s3710 + $0x8] sm:$0xf]
        %v3714 = vld [vmem:[%s3710 + $0xc] sm:$0xf]
        %v3715 = vld [vmem:[%s3710 + $0x10] sm:$0xf]
        %v3716 = vld [vmem:[%s3710 + $0x14] sm:$0xf]
        %v3717 = vld [vmem:[%s3710 + $0x18] sm:$0xf]
        %v3718 = vld [vmem:[%s3710 + $0x1c] sm:$0xf]
        %s3719 = scalar_lea.vmem %s19, 1
        %v3720 = vld [vmem:[%s3719] sm:$0x1]
        %s3721 = scalar_lea.vmem %s20, 1
        %v3722 = vld [vmem:[%s3721] sm:$0x1]
        %s3723 = scalar_lea.vmem %s21, 1
        %v3724 = vld [vmem:[%s3723] sm:$0x1]
        %v3725 = vpack.c.bf16 %v3702, %v3702
        %v3727 = vlaneseq
        %v3728 = vshrl.u32 %v3727, 7
        %v3729 = vsub.s32 0, %v3728
        %v3730 = vrot.slane %v3709, %v3729
        %v3736 = vunpack.c.l.b16 %v3704
        %v3737 = vunpack.c.l.b16 %v3705
        %v3738 = vunpack.c.l.b16 %v3706
        %v3739 = vunpack.c.l.b16 %v3707
        %v3740 = vpack.c.b16 %v3737, %v3736
        %v3741 = vpack.c.b16 %v3739, %v3738
        %v3745 = vsel %vm701, %v3725, 0
        %3747 = vmatprep.subr.bf16.mxu0 0
        %3748 = vmatpush1.bf16.msra.mxu0 %v3740
        %3749 = vmatprep.subr.bf16.mxu0 0
        %3750 = vmatpush1.bf16.msra.mxu0 %v3741
        %3751 = vmatprep.subr.bf16.mxu0 0
        %3752 = vmatpush1.bf16.msra.mxu0 0
        %3753 = vmatprep.subr.bf16.mxu0 0
        %3754 = vmatpush1.bf16.msra.mxu0 0
        %3755 = vmatprep.subr.bf16.mxu0 0
        %3756 = vmatpush1.bf16.msra.mxu0 0
        %3757 = vmatprep.subr.bf16.mxu0 0
        %3758 = vmatpush1.bf16.msra.mxu0 0
        %3759 = vmatprep.subr.bf16.mxu0 0
        %3760 = vmatpush1.bf16.msra.mxu0 0
        %3761 = vmatprep.subr.bf16.mxu0 0
        %3762 = vmatpush1.bf16.msra.mxu0 0
        %3763 = vmatprep.subr.bf16.mxu0 0
        %3764 = vmatpush1.bf16.msra.mxu0 0
        %3765 = vmatprep.subr.bf16.mxu0 0
        %3766 = vmatpush1.bf16.msra.mxu0 0
        %3767 = vmatprep.subr.bf16.mxu0 0
        %3768 = vmatpush1.bf16.msra.mxu0 0
        %3769 = vmatprep.subr.bf16.mxu0 0
        %3770 = vmatpush1.bf16.msra.mxu0 0
        %3771 = vmatprep.subr.bf16.mxu0 0
        %3772 = vmatpush1.bf16.msra.mxu0 0
        %3773 = vmatprep.subr.bf16.mxu0 0
        %3774 = vmatpush1.bf16.msra.mxu0 0
        %3775 = vmatprep.subr.bf16.mxu0 0
        %3776 = vmatpush1.bf16.msra.mxu0 0
        %3777 = vmatprep.subr.bf16.mxu0 0
        %3778 = vmatpush1.bf16.msra.mxu0 0
        %3779 = vmatprep.mubr.bf16.mxu0 0
        %3780 = vmatmul.mubr.bf16.gmra.mrb[0].mxu0 %v3745
        %v3781 = vpop.f32.mrb[0].mxu0
        %v3782 = vadd.f32 %v3730, %v3781
        %v3783 = vpop.f32.mrb[0].mxu0
        %v3784 = vpop.f32.mrb[0].mxu0
        %v3785 = vpop.f32.mrb[0].mxu0
        %3786 = vdwg.mxu0
        %v3787 = vmax.f32 %v3782, 0.0
        %v3788 = vpack.c.bf16 %v3787, %v3787
        %v3790 = vlaneseq
        %v3791 = vshrl.u32 %v3790, 7
        %v3792 = vsub.s32 0, %v3791
        %v3793 = vrot.slane %v3720, %v3792
        %v3803 = vunpack.c.l.b16 %v3711
        %v3804 = vunpack.c.l.b16 %v3712
        %v3805 = vunpack.c.l.b16 %v3713
        %v3806 = vunpack.c.l.b16 %v3714
        %v3807 = vunpack.c.l.b16 %v3715
        %v3808 = vunpack.c.l.b16 %v3716
        %v3809 = vunpack.c.l.b16 %v3717
        %v3810 = vunpack.c.l.b16 %v3718
        %v3811 = vpack.c.b16 %v3804, %v3803
        %v3812 = vpack.c.b16 %v3806, %v3805
        %v3813 = vpack.c.b16 %v3808, %v3807
        %v3814 = vpack.c.b16 %v3810, %v3809
        %v3820 = vsel %vm2233, %v3788, 0
        %3822 = vmatprep.subr.bf16.mxu0 0
        %3823 = vmatpush1.bf16.msra.mxu0 %v3811
        %3824 = vmatprep.subr.bf16.mxu0 0
        %3825 = vmatpush1.bf16.msra.mxu0 %v3812
        %3826 = vmatprep.subr.bf16.mxu0 0
        %3827 = vmatpush1.bf16.msra.mxu0 %v3813
        %3828 = vmatprep.subr.bf16.mxu0 0
        %3829 = vmatpush1.bf16.msra.mxu0 %v3814
        %3830 = vmatprep.subr.bf16.mxu0 0
        %3831 = vmatpush1.bf16.msra.mxu0 0
        %3832 = vmatprep.subr.bf16.mxu0 0
        %3833 = vmatpush1.bf16.msra.mxu0 0
        %3834 = vmatprep.subr.bf16.mxu0 0
        %3835 = vmatpush1.bf16.msra.mxu0 0
        %3836 = vmatprep.subr.bf16.mxu0 0
        %3837 = vmatpush1.bf16.msra.mxu0 0
        %3838 = vmatprep.subr.bf16.mxu0 0
        %3839 = vmatpush1.bf16.msra.mxu0 0
        %3840 = vmatprep.subr.bf16.mxu0 0
        %3841 = vmatpush1.bf16.msra.mxu0 0
        %3842 = vmatprep.subr.bf16.mxu0 0
        %3843 = vmatpush1.bf16.msra.mxu0 0
        %3844 = vmatprep.subr.bf16.mxu0 0
        %3845 = vmatpush1.bf16.msra.mxu0 0
        %3846 = vmatprep.subr.bf16.mxu0 0
        %3847 = vmatpush1.bf16.msra.mxu0 0
        %3848 = vmatprep.subr.bf16.mxu0 0
        %3849 = vmatpush1.bf16.msra.mxu0 0
        %3850 = vmatprep.subr.bf16.mxu0 0
        %3851 = vmatpush1.bf16.msra.mxu0 0
        %3852 = vmatprep.subr.bf16.mxu0 0
        %3853 = vmatpush1.bf16.msra.mxu0 0
        %3854 = vmatprep.mubr.bf16.mxu0 0
        %3855 = vmatmul.mubr.bf16.gmra.mrb[0].mxu0 %v3820
        %v3856 = vpop.f32.mrb[0].mxu0
        %v3857 = vadd.f32 %v3793, %v3856
        %v3858 = vpop.f32.mrb[0].mxu0
        %v3859 = vpop.f32.mrb[0].mxu0
        %v3860 = vpop.f32.mrb[0].mxu0
        %3861 = vdwg.mxu0
        %v3862 = vadd.f32 %v3857, %v3702
        %v3863 = vsel %vm701, %v3862, 0.0
        %3864 = vadd.xlane.f32.xlu0 %v3863
        %v3865 = vpop.xlane.xlu0 %3864
        %v3866 = vmul.f32 %v3865, %v705
        %v3867 = vsub.f32 %v3862, %v3866
        %v3868 = vmul.f32 %v3867, %v3867
        %v3869 = vsel %vm701, %v3868, 0.0
        %3870 = vadd.xlane.f32.xlu0 %v3869
        %v3871 = vpop.xlane.xlu0 %3870
        %v3872 = vmul.f32 %v3871, %v705
        %v3873 = vadd.f32 %v3872, 1e-06
        %v3874 = vrsqrt.pop %v3873
        %v3875 = vmul.f32 %v3867, %v3874
        %v3877 = vlaneseq
        %v3878 = vshrl.u32 %v3877, 7
        %v3879 = vsub.s32 0, %v3878
        %v3880 = vrot.slane %v3722, %v3879
        %v3882 = vmul.f32 %v3875, %v3880
        %v3884 = vlaneseq
        %v3885 = vshrl.u32 %v3884, 7
        %v3886 = vsub.s32 0, %v3885
        %v3887 = vrot.slane %v3724, %v3886
        %v3889 = vadd.f32 %v3882, %v3887
        %3890 = vst.msk [vmem:[%s687] sm:$0xff] %vm701, %v3889
        %s3891 = sand.u32 %s516, 1
        %s3892 = scalar_lea.sflag [#allocation3], %s3891
        %s3893 = sand.u32 %s516, 1
        %s3894 = smul.addr %s3893, 8
        %s3895 = scalar_lea.vmem [#allocation2], %s3894
        // Predicated region
        $region109: #{decoder_forward.1} parent=107 // pred_check
          %p3896 = pneg %p526
        $region110: #{decoder_forward.1} parent=107 // pred_check_branch
          %3898 = sbr.rel (%p3896) target = $region112
        $region111: #{decoder_forward.1} parent=107 // pred_region
          %s3900 = ssub.s32 128, 128
          %3901 = vsyncadd %s3892, %s3900
          %s3902 = smul.addr %s36, 128
          %s3903 = scalar_lea.hbm %s22, %s3902
          %s3905 = sshll.u32 %s3895, 4
          %s3906 = int_to_ptr.vmem [resolvable:$true] %s3905
          %3908 = dma.vmem_to_hbm [thread:$0]  %s3906, 128, %s3903, %s3892
        $region112: #{decoder_forward.1} parent=107 // pred_fallthru
          _
      $region108: #{decoder_forward.1} parent=5 // pred_fallthru
        _
      %p3909 = scmp.le.s32.totalorder 2, %s31
      // Predicated region
      $region113: #{decoder_forward.1} parent=5 // pred_check
        %p3910 = pneg %p3909
      $region114: #{decoder_forward.1} parent=5 // pred_check_branch
        %3912 = sbr.rel (%p3910) target = $region116
      $region115: #{decoder_forward.1} parent=5 // pred_region
        %s3913 = ssub.s32 %s31, 2
        // Predicated region
        $region117: #{decoder_forward.1} parent=115 // pred_check
          %p3914 = pneg %p532
        $region118: #{decoder_forward.1} parent=115 // pred_check_branch
          %3916 = sbr.rel (%p3914) target = $region120
        $region119: #{decoder_forward.1} parent=115 // pred_region
          %s3917 = sand.u32 %s517, 1
          %s3918 = scalar_lea.sflag [#allocation3], %s3917
          %s3919 = sand.u32 %s517, 1
          %s3920 = smul.addr %s3919, 8
          %s3921 = scalar_lea.vmem [#allocation2], %s3920
          %3922 = dma.done %s3918, 128
        $region120: #{decoder_forward.1} parent=115 // pred_fallthru
          _
      $region116: #{decoder_forward.1} parent=5 // pred_fallthru
        _
    $region6: #{decoder_forward.1} parent=1 // loop_footer
      %s35 = sadd.s32 1, %s31
    $region7: #{decoder_forward.1} parent=1 // loop_footer_branch
      %30 = sbr.rel target = $region3
    $region8: #{decoder_forward.1} parent=1 // loop_exit
      _
    %3923 = vsyncpa [#allocation3], 1
    %s3924 = scalar_lea.sflag [#allocation3], 1
    %3925 = vsyncpa %s3924, 1

</llo_original>
